<compile_context>
chip_gen: v7x
topology: tpu7x:2x2x1
jax: 0.10.0
libtpu: 0.0.40
codegen_flags: <defaults>
</compile_context>

<pallas_src>
import math
import jax
import jax.numpy as jnp
from jax import lax
from jax.experimental import pallas as pl
from jax.experimental.pallas import tpu as pltpu

# ---------------- small, forward-consistent config ----------------
N_LAYERS   = 2
N_HEADS    = 2
HIDDEN     = 32
SEQ_LEN    = 16
INNER      = 64
BLOCK_SIZE = 4
HALO_SIZE  = 2
LN_EPS     = 1e-12
BATCH      = 2

HEAD_SIZE = HIDDEN // N_HEADS
N_BLOCKS  = SEQ_LEN // BLOCK_SIZE


def _halo_bounds(i):
    # Exact PyTorch window: left clipped only for block 0, right halo dropped
    # only for the last block.
    left = i * BLOCK_SIZE - HALO_SIZE if i > 0 else 0
    right = ((i + 1) * BLOCK_SIZE + HALO_SIZE) if i < N_BLOCKS - 1 \
        else (i + 1) * BLOCK_SIZE
    return left, right


def _layer_norm(x, gamma, beta, eps):
    mean = jnp.mean(x, axis=-1, keepdims=True)
    var = jnp.mean((x - mean) ** 2, axis=-1, keepdims=True)   # biased, like torch LN
    return (x - mean) * lax.rsqrt(var + eps) * gamma + beta


def _gelu_exact(x):
    # RecBole's gelu: x * 0.5 * (1 + erf(x / sqrt(2)))
    return x * 0.5 * (1.0 + lax.erf(x / jnp.float32(math.sqrt(2.0))))


def halonet_encoder_kernel(
    x_ref,        # (1, S, H)   one batch element
    w_qkv_ref,    # (L, H, 3H)  fused q|k|v weights (1/sqrt(DH) folded into Wq)
    b_qkv_ref,    # (L, 1, 3H)  fused q|k|v biases  (1/sqrt(DH) folded into bq)
    w_o_ref,      # (L, H, H)   attention output dense
    w1_ref,       # (L, H, INNER)
    b1_ref,       # (L, 1, INNER)
    w2_ref,       # (L, INNER, H)
    vec_ref,      # (L, 6, H): [bo, ln1_g, ln1_b, b2, ln2_g, ln2_b]
    out_ref,      # (L, 1, S, H) per-layer encoder outputs for this batch element
):
    H, DH, S = HIDDEN, HEAD_SIZE, SEQ_LEN

    h = x_ref[0].astype(jnp.float32)                    # (S, H) resident activations

    for l in range(N_LAYERS):                           # static loop over layers
        vecs = vec_ref[l].astype(jnp.float32)           # (6, H)
        bo, ln1g, ln1b = vecs[0:1], vecs[1:2], vecs[2:3]
        b2, ln2g, ln2b = vecs[3:4], vecs[4:5], vecs[5:6]

        # fused Q/K/V projection: one matmul, lane width 3H
        qkv = jnp.dot(h, w_qkv_ref[l], preferred_element_type=jnp.float32)
        qkv = qkv + b_qkv_ref[l]                        # (S, 3H)
        w_o = w_o_ref[l].astype(jnp.float32)            # (H, H)

        # ---- block-local halo attention (no mask, static clipped windows) ----
        attn_blocks = []
        for i in range(N_BLOCKS):                       # static loop over query blocks
            q0 = i * BLOCK_SIZE
            left, right = _halo_bounds(i)
            attn_i = None
            for hh in range(N_HEADS):                   # static loop over heads
                qh = qkv[q0:q0 + BLOCK_SIZE, hh * DH:(hh + 1) * DH]          # (BS, DH)
                kh = qkv[left:right, H + hh * DH:H + (hh + 1) * DH]          # (W,  DH)
                vh = qkv[left:right, 2 * H + hh * DH:2 * H + (hh + 1) * DH]  # (W,  DH)

                # transpose-free q . k^T (contract last dims); scale already
                # folded into Wq/bq at pack time.
                scores = lax.dot_general(qh, kh, (((1,), (1,)), ((), ())),
                                         preferred_element_type=jnp.float32)  # (BS, W)
                scores = scores - jnp.max(scores, axis=-1, keepdims=True)
                p = jnp.exp(scores)
                p = p / jnp.sum(p, axis=-1, keepdims=True)   # exact divide
                # attn_dropout -> identity (eval mode)
                ctx = jnp.dot(p, vh, preferred_element_type=jnp.float32)     # (BS, DH)
                # fold the per-head context directly into the output dense:
                # sum_h ctx_h @ W_o[h*DH:(h+1)*DH, :] == concat_h(ctx_h) @ W_o
                proj = jnp.dot(ctx, w_o[hh * DH:(hh + 1) * DH, :],
                               preferred_element_type=jnp.float32)           # (BS, H)
                attn_i = proj if attn_i is None else attn_i + proj
            attn_blocks.append(attn_i)

        attn = jnp.concatenate(attn_blocks, axis=0) + bo   # (S, H), dense already applied

        # residual LayerNorm (out_dropout = identity)
        h1 = _layer_norm(attn + h, ln1g, ln1b, LN_EPS)

        # FeedForward (dense -> exact gelu -> dense) + residual LayerNorm
        ff = jnp.dot(h1, w1_ref[l], preferred_element_type=jnp.float32) + b1_ref[l]
        ff = _gelu_exact(ff)
        ff = jnp.dot(ff, w2_ref[l], preferred_element_type=jnp.float32) + b2
        h = _layer_norm(ff + h1, ln2g, ln2b, LN_EPS)

        out_ref[l, 0] = h.astype(out_ref.dtype)


def halonet_encoder(x, packed_params, output_all_encoded_layers=True):
    B, S, H = x.shape
    assert (S, H) == (SEQ_LEN, HIDDEN)

    def const_spec(a):
        nd = a.ndim
        return pl.BlockSpec(a.shape, lambda b, _nd=nd: (0,) * _nd)

    in_specs = [pl.BlockSpec((1, S, H), lambda b: (b, 0, 0))]
    in_specs += [const_spec(a) for a in packed_params]

    out = pl.pallas_call(
        halonet_encoder_kernel,
        out_shape=jax.ShapeDtypeStruct((N_LAYERS, B, S, H), x.dtype),
        grid=(B,),
        in_specs=in_specs,
        out_specs=pl.BlockSpec((N_LAYERS, 1, S, H), lambda b: (0, b, 0, 0)),
        compiler_params=pltpu.CompilerParams(
            dimension_semantics=("parallel",)),   # batch across TCs on v7x
    )(x, *packed_params)

    layers = [out[l] for l in range(N_LAYERS)]
    if output_all_encoded_layers:
        return layers
    return [layers[-1]]


def init_packed_params(key):
    # Deterministic synthetic init.  Linear weights are stored pre-transposed
    # (in_features, out_features) so the kernel computes x @ W + b, matching
    # PyTorch's x @ W.T + b.  1/sqrt(head_size) is folded into the query
    # projection.  Per-layer params are stacked along a leading layer axis.
    f32 = jnp.float32
    scale = 1.0 / math.sqrt(HEAD_SIZE)

    def w(k, shape):
        return (0.02 * jax.random.normal(k, shape)).astype(f32)

    w_qkv, b_qkv, w_o, w1s, b1s, w2s, vecs = [], [], [], [], [], [], []
    for l in range(N_LAYERS):
        kl = jax.random.fold_in(key, l)
        ks = jax.random.split(kl, 8)
        wq = w(ks[0], (HIDDEN, HIDDEN)) * scale
        bq = w(ks[1], (1, HIDDEN)) * scale
        wk = w(ks[2], (HIDDEN, HIDDEN)); bk = w(ks[3], (1, HIDDEN))
        wv = w(ks[4], (HIDDEN, HIDDEN)); bv = w(ks[5], (1, HIDDEN))
        wo = w(ks[6], (HIDDEN, HIDDEN)); bo = jnp.zeros((1, HIDDEN), f32)
        ln1g = jnp.ones((1, HIDDEN), f32); ln1b = jnp.zeros((1, HIDDEN), f32)
        w1 = w(ks[7], (HIDDEN, INNER)); b1 = jnp.zeros((1, INNER), f32)
        w2 = w(jax.random.fold_in(kl, 99), (INNER, HIDDEN))
        b2 = jnp.zeros((1, HIDDEN), f32)
        ln2g = jnp.ones((1, HIDDEN), f32); ln2b = jnp.zeros((1, HIDDEN), f32)

        w_qkv.append(jnp.concatenate([wq, wk, wv], axis=1))   # (H, 3H)
        b_qkv.append(jnp.concatenate([bq, bk, bv], axis=1))   # (1, 3H)
        w_o.append(wo)
        w1s.append(w1); b1s.append(b1); w2s.append(w2)
        vecs.append(jnp.concatenate([bo, ln1g, ln1b, b2, ln2g, ln2b], axis=0))

    pack = lambda xs: jnp.stack(xs, axis=0)
    return [pack(w_qkv), pack(b_qkv), pack(w_o), pack(w1s), pack(b1s),
            pack(w2s), pack(vecs)]


def halonet_encoder_ref(x, packed_params):
    # Pure-JAX reference of the same forward pass (same packed params, so the
    # scale fold is shared).  Used only as a loose sanity check in __main__.
    w_qkv, b_qkv, w_o, w1, b1, w2, vec = packed_params
    B, S, H = x.shape
    hp = lax.Precision.HIGHEST
    h = x
    outs = []
    for l in range(N_LAYERS):
        qkv = jnp.einsum('bsh,hk->bsk', h, w_qkv[l], precision=hp) + b_qkv[l]
        q, k, v = jnp.split(qkv, 3, axis=-1)

        def split_heads(t):
            return t.reshape(B, S, N_HEADS, HEAD_SIZE).transpose(0, 2, 1, 3)

        qh, kh, vh = split_heads(q), split_heads(k), split_heads(v)
        ctx_blocks = []
        for i in range(N_BLOCKS):
            left, right = _halo_bounds(i)
            qb = qh[:, :, i * BLOCK_SIZE:(i + 1) * BLOCK_SIZE, :]
            kb = kh[:, :, left:right, :]
            vb = vh[:, :, left:right, :]
            s = jnp.einsum('bhqd,bhkd->bhqk', qb, kb, precision=hp)
            p = jax.nn.softmax(s, axis=-1)
            ctx_blocks.append(jnp.einsum('bhqk,bhkd->bhqd', p, vb, precision=hp))
        ctx = jnp.concatenate(ctx_blocks, axis=2)
        ctx = ctx.transpose(0, 2, 1, 3).reshape(B, S, H)

        bo, ln1g, ln1b, b2, ln2g, ln2b = [vec[l][j:j + 1] for j in range(6)]
        attn = jnp.einsum('bsh,hk->bsk', ctx, w_o[l], precision=hp) + bo
        h1 = _layer_norm(attn + h, ln1g, ln1b, LN_EPS)
        ff = jnp.einsum('bsh,hk->bsk', h1, w1[l], precision=hp) + b1[l]
        ff = _gelu_exact(ff)
        ff = jnp.einsum('bsk,kh->bsh', ff, w2[l], precision=hp) + b2
        h = _layer_norm(ff + h1, ln2g, ln2b, LN_EPS)
        outs.append(h)
    return outs


if __name__ == "__main__":
    key = jax.random.PRNGKey(0)
    kx, kp = jax.random.split(key)
    x = jax.random.normal(kx, (BATCH, SEQ_LEN, HIDDEN), dtype=jnp.float32)

    packed_params = init_packed_params(kp)

    outs = halonet_encoder(x, packed_params, output_all_encoded_layers=True)
    for o in outs:
        jax.block_until_ready(o)
    assert len(outs) == N_LAYERS
    assert outs[-1].shape == (BATCH, SEQ_LEN, HIDDEN)
    assert all(bool(jnp.isfinite(o).all()) for o in outs)

    # Loose sanity check against the pure-JAX reference (f32 everywhere;
    # any structural bug would produce O(0.1-1) errors).
    refs = halonet_encoder_ref(x, packed_params)
    for o, r in zip(outs, refs):
        err = float(jnp.max(jnp.abs(o - r)))
        assert err < 1e-2, f"mismatch vs reference: {err}"

    print("KERNEL_OK")
</pallas_src>

<mosaic_0001>
module attributes {stable_mosaic.version = 11 : i64} {
  func.func @halonet_encoder_kernel(%arg0: i32, %arg1: memref<1x16x32xf32, #tpu.memory_space<vmem>>, %arg2: memref<2x32x96xf32, #tpu.memory_space<vmem>>, %arg3: memref<2x1x96xf32, #tpu.memory_space<vmem>>, %arg4: memref<2x32x32xf32, #tpu.memory_space<vmem>>, %arg5: memref<2x32x64xf32, #tpu.memory_space<vmem>>, %arg6: memref<2x1x64xf32, #tpu.memory_space<vmem>>, %arg7: memref<2x64x32xf32, #tpu.memory_space<vmem>>, %arg8: memref<2x6x32xf32, #tpu.memory_space<vmem>>, %arg9: memref<2x1x16x32xf32, #tpu.memory_space<vmem>>) attributes {dimension_semantics = [#tpu.dimension_semantics<parallel>], iteration_bounds = array<i64: 2>, scalar_prefetch = 0 : i64, scratch_operands = 0 : i64, tpu.core_type = #tpu.core_type<tc>, window_params = [{transform_indices = @transform_0, window_bounds = array<i64: 1, 16, 32>}, {pipeline_mode = #tpu.pipeline_mode<synchronous>, transform_indices = @transform_1, window_bounds = array<i64: 2, 32, 96>}, {pipeline_mode = #tpu.pipeline_mode<synchronous>, transform_indices = @transform_2, window_bounds = array<i64: 2, 1, 96>}, {pipeline_mode = #tpu.pipeline_mode<synchronous>, transform_indices = @transform_3, window_bounds = array<i64: 2, 32, 32>}, {pipeline_mode = #tpu.pipeline_mode<synchronous>, transform_indices = @transform_4, window_bounds = array<i64: 2, 32, 64>}, {pipeline_mode = #tpu.pipeline_mode<synchronous>, transform_indices = @transform_5, window_bounds = array<i64: 2, 1, 64>}, {pipeline_mode = #tpu.pipeline_mode<synchronous>, transform_indices = @transform_6, window_bounds = array<i64: 2, 64, 32>}, {pipeline_mode = #tpu.pipeline_mode<synchronous>, transform_indices = @transform_7, window_bounds = array<i64: 2, 6, 32>}, {transform_indices = @transform_8, window_bounds = array<i64: 2, 1, 16, 32>}]} {
    %c0 = arith.constant 0 : index
    %c0_0 = arith.constant 0 : index
    %c0_1 = arith.constant 0 : index
    %0 = vector.load %arg1[%c0, %c0_0, %c0_1] : memref<1x16x32xf32, #tpu.memory_space<vmem>>, vector<1x16x32xf32>
    %1 = vector.shape_cast %0 : vector<1x16x32xf32> to vector<16x32xf32>
    %c0_2 = arith.constant 0 : index
    %c0_3 = arith.constant 0 : index
    %c0_4 = arith.constant 0 : index
    %2 = vector.load %arg8[%c0_2, %c0_3, %c0_4] : memref<2x6x32xf32, #tpu.memory_space<vmem>>, vector<1x6x32xf32>
    %3 = vector.shape_cast %2 : vector<1x6x32xf32> to vector<6x32xf32>
    %4 = vector.extract_strided_slice %3 {offsets = [0, 0], sizes = [1, 32], strides = [1, 1]} : vector<6x32xf32> to vector<1x32xf32>
    %5 = vector.extract_strided_slice %3 {offsets = [1, 0], sizes = [1, 32], strides = [1, 1]} : vector<6x32xf32> to vector<1x32xf32>
    %6 = vector.extract_strided_slice %3 {offsets = [2, 0], sizes = [1, 32], strides = [1, 1]} : vector<6x32xf32> to vector<1x32xf32>
    %7 = vector.extract_strided_slice %3 {offsets = [3, 0], sizes = [1, 32], strides = [1, 1]} : vector<6x32xf32> to vector<1x32xf32>
    %8 = vector.extract_strided_slice %3 {offsets = [4, 0], sizes = [1, 32], strides = [1, 1]} : vector<6x32xf32> to vector<1x32xf32>
    %9 = vector.extract_strided_slice %3 {offsets = [5, 0], sizes = [1, 32], strides = [1, 1]} : vector<6x32xf32> to vector<1x32xf32>
    %c0_5 = arith.constant 0 : index
    %c0_6 = arith.constant 0 : index
    %c0_7 = arith.constant 0 : index
    %10 = vector.load %arg2[%c0_5, %c0_6, %c0_7] : memref<2x32x96xf32, #tpu.memory_space<vmem>>, vector<1x32x96xf32>
    %11 = vector.shape_cast %10 : vector<1x32x96xf32> to vector<32x96xf32>
    %cst = arith.constant dense<0.000000e+00> : vector<16x96xf32>
    %12 = tpu.matmul %1, %11, %cst {dimension_numbers = #tpu.dot_dimension_numbers<[1], [0], [0], [1], [0, 0, 1, 1], [], []>} : vector<16x32xf32>, vector<32x96xf32>, vector<16x96xf32> -> vector<16x96xf32>
    %c0_8 = arith.constant 0 : index
    %c0_9 = arith.constant 0 : index
    %c0_10 = arith.constant 0 : index
    %13 = vector.load %arg3[%c0_8, %c0_9, %c0_10] : memref<2x1x96xf32, #tpu.memory_space<vmem>>, vector<1x1x96xf32>
    %14 = vector.shape_cast %13 : vector<1x1x96xf32> to vector<1x96xf32>
    %15 = vector.broadcast %14 : vector<1x96xf32> to vector<16x96xf32>
    %16 = arith.addf %12, %15 : vector<16x96xf32>
    %c0_11 = arith.constant 0 : index
    %c0_12 = arith.constant 0 : index
    %c0_13 = arith.constant 0 : index
    %17 = vector.load %arg4[%c0_11, %c0_12, %c0_13] : memref<2x32x32xf32, #tpu.memory_space<vmem>>, vector<1x32x32xf32>
    %18 = vector.shape_cast %17 : vector<1x32x32xf32> to vector<32x32xf32>
    %19 = vector.extract_strided_slice %16 {offsets = [0, 0], sizes = [4, 16], strides = [1, 1]} : vector<16x96xf32> to vector<4x16xf32>
    %20 = vector.extract_strided_slice %16 {offsets = [0, 32], sizes = [6, 16], strides = [1, 1]} : vector<16x96xf32> to vector<6x16xf32>
    %21 = vector.extract_strided_slice %16 {offsets = [0, 64], sizes = [6, 16], strides = [1, 1]} : vector<16x96xf32> to vector<6x16xf32>
    %cst_14 = arith.constant dense<0.000000e+00> : vector<4x6xf32>
    %22 = tpu.matmul %19, %20, %cst_14 {dimension_numbers = #tpu.dot_dimension_numbers<[1], [1], [0], [0], [0, 0, 1, 0], [], []>} : vector<4x16xf32>, vector<6x16xf32>, vector<4x6xf32> -> vector<4x6xf32>
    %cst_15 = arith.constant dense<0xFF800000> : vector<4xf32>
    %23 = vector.multi_reduction <maximumf>, %22, %cst_15 [1] : vector<4x6xf32> to vector<4xf32>
    %24 = vector.shape_cast %23 : vector<4xf32> to vector<4x1xf32>
    %25 = vector.broadcast %24 : vector<4x1xf32> to vector<4x6xf32>
    %26 = arith.subf %22, %25 : vector<4x6xf32>
    %27 = math.exp %26 : vector<4x6xf32>
    %cst_16 = arith.constant dense<0.000000e+00> : vector<4xf32>
    %28 = vector.multi_reduction <add>, %27, %cst_16 [1] : vector<4x6xf32> to vector<4xf32>
    %29 = vector.shape_cast %28 : vector<4xf32> to vector<4x1xf32>
    %30 = vector.broadcast %29 : vector<4x1xf32> to vector<4x6xf32>
    %31 = arith.divf %27, %30 : vector<4x6xf32>
    %cst_17 = arith.constant dense<0.000000e+00> : vector<4x16xf32>
    %32 = tpu.matmul %31, %21, %cst_17 {dimension_numbers = #tpu.dot_dimension_numbers<[1], [0], [0], [1], [0, 0, 1, 1], [], []>} : vector<4x6xf32>, vector<6x16xf32>, vector<4x16xf32> -> vector<4x16xf32>
    %33 = vector.extract_strided_slice %18 {offsets = [0, 0], sizes = [16, 32], strides = [1, 1]} : vector<32x32xf32> to vector<16x32xf32>
    %cst_18 = arith.constant dense<0.000000e+00> : vector<4x32xf32>
    %34 = tpu.matmul %32, %33, %cst_18 {dimension_numbers = #tpu.dot_dimension_numbers<[1], [0], [0], [1], [0, 0, 1, 1], [], []>} : vector<4x16xf32>, vector<16x32xf32>, vector<4x32xf32> -> vector<4x32xf32>
    %35 = vector.extract_strided_slice %16 {offsets = [0, 16], sizes = [4, 16], strides = [1, 1]} : vector<16x96xf32> to vector<4x16xf32>
    %36 = vector.extract_strided_slice %16 {offsets = [0, 48], sizes = [6, 16], strides = [1, 1]} : vector<16x96xf32> to vector<6x16xf32>
    %37 = vector.extract_strided_slice %16 {offsets = [0, 80], sizes = [6, 16], strides = [1, 1]} : vector<16x96xf32> to vector<6x16xf32>
    %cst_19 = arith.constant dense<0.000000e+00> : vector<4x6xf32>
    %38 = tpu.matmul %35, %36, %cst_19 {dimension_numbers = #tpu.dot_dimension_numbers<[1], [1], [0], [0], [0, 0, 1, 0], [], []>} : vector<4x16xf32>, vector<6x16xf32>, vector<4x6xf32> -> vector<4x6xf32>
    %cst_20 = arith.constant dense<0xFF800000> : vector<4xf32>
    %39 = vector.multi_reduction <maximumf>, %38, %cst_20 [1] : vector<4x6xf32> to vector<4xf32>
    %40 = vector.shape_cast %39 : vector<4xf32> to vector<4x1xf32>
    %41 = vector.broadcast %40 : vector<4x1xf32> to vector<4x6xf32>
    %42 = arith.subf %38, %41 : vector<4x6xf32>
    %43 = math.exp %42 : vector<4x6xf32>
    %cst_21 = arith.constant dense<0.000000e+00> : vector<4xf32>
    %44 = vector.multi_reduction <add>, %43, %cst_21 [1] : vector<4x6xf32> to vector<4xf32>
    %45 = vector.shape_cast %44 : vector<4xf32> to vector<4x1xf32>
    %46 = vector.broadcast %45 : vector<4x1xf32> to vector<4x6xf32>
    %47 = arith.divf %43, %46 : vector<4x6xf32>
    %cst_22 = arith.constant dense<0.000000e+00> : vector<4x16xf32>
    %48 = tpu.matmul %47, %37, %cst_22 {dimension_numbers = #tpu.dot_dimension_numbers<[1], [0], [0], [1], [0, 0, 1, 1], [], []>} : vector<4x6xf32>, vector<6x16xf32>, vector<4x16xf32> -> vector<4x16xf32>
    %49 = vector.extract_strided_slice %18 {offsets = [16, 0], sizes = [16, 32], strides = [1, 1]} : vector<32x32xf32> to vector<16x32xf32>
    %cst_23 = arith.constant dense<0.000000e+00> : vector<4x32xf32>
    %50 = tpu.matmul %48, %49, %cst_23 {dimension_numbers = #tpu.dot_dimension_numbers<[1], [0], [0], [1], [0, 0, 1, 1], [], []>} : vector<4x16xf32>, vector<16x32xf32>, vector<4x32xf32> -> vector<4x32xf32>
    %51 = arith.addf %34, %50 : vector<4x32xf32>
    %52 = vector.extract_strided_slice %16 {offsets = [4, 0], sizes = [4, 16], strides = [1, 1]} : vector<16x96xf32> to vector<4x16xf32>
    %53 = vector.extract_strided_slice %16 {offsets = [2, 32], sizes = [8, 16], strides = [1, 1]} : vector<16x96xf32> to vector<8x16xf32>
    %54 = vector.extract_strided_slice %16 {offsets = [2, 64], sizes = [8, 16], strides = [1, 1]} : vector<16x96xf32> to vector<8x16xf32>
    %cst_24 = arith.constant dense<0.000000e+00> : vector<4x8xf32>
    %55 = tpu.matmul %52, %53, %cst_24 {dimension_numbers = #tpu.dot_dimension_numbers<[1], [1], [0], [0], [0, 0, 1, 0], [], []>} : vector<4x16xf32>, vector<8x16xf32>, vector<4x8xf32> -> vector<4x8xf32>
    %cst_25 = arith.constant dense<0xFF800000> : vector<4xf32>
    %56 = vector.multi_reduction <maximumf>, %55, %cst_25 [1] : vector<4x8xf32> to vector<4xf32>
    %57 = vector.shape_cast %56 : vector<4xf32> to vector<4x1xf32>
    %58 = vector.broadcast %57 : vector<4x1xf32> to vector<4x8xf32>
    %59 = arith.subf %55, %58 : vector<4x8xf32>
    %60 = math.exp %59 : vector<4x8xf32>
    %cst_26 = arith.constant dense<0.000000e+00> : vector<4xf32>
    %61 = vector.multi_reduction <add>, %60, %cst_26 [1] : vector<4x8xf32> to vector<4xf32>
    %62 = vector.shape_cast %61 : vector<4xf32> to vector<4x1xf32>
    %63 = vector.broadcast %62 : vector<4x1xf32> to vector<4x8xf32>
    %64 = arith.divf %60, %63 : vector<4x8xf32>
    %cst_27 = arith.constant dense<0.000000e+00> : vector<4x16xf32>
    %65 = tpu.matmul %64, %54, %cst_27 {dimension_numbers = #tpu.dot_dimension_numbers<[1], [0], [0], [1], [0, 0, 1, 1], [], []>} : vector<4x8xf32>, vector<8x16xf32>, vector<4x16xf32> -> vector<4x16xf32>
    %66 = vector.extract_strided_slice %18 {offsets = [0, 0], sizes = [16, 32], strides = [1, 1]} : vector<32x32xf32> to vector<16x32xf32>
    %cst_28 = arith.constant dense<0.000000e+00> : vector<4x32xf32>
    %67 = tpu.matmul %65, %66, %cst_28 {dimension_numbers = #tpu.dot_dimension_numbers<[1], [0], [0], [1], [0, 0, 1, 1], [], []>} : vector<4x16xf32>, vector<16x32xf32>, vector<4x32xf32> -> vector<4x32xf32>
    %68 = vector.extract_strided_slice %16 {offsets = [4, 16], sizes = [4, 16], strides = [1, 1]} : vector<16x96xf32> to vector<4x16xf32>
    %69 = vector.extract_strided_slice %16 {offsets = [2, 48], sizes = [8, 16], strides = [1, 1]} : vector<16x96xf32> to vector<8x16xf32>
    %70 = vector.extract_strided_slice %16 {offsets = [2, 80], sizes = [8, 16], strides = [1, 1]} : vector<16x96xf32> to vector<8x16xf32>
    %cst_29 = arith.constant dense<0.000000e+00> : vector<4x8xf32>
    %71 = tpu.matmul %68, %69, %cst_29 {dimension_numbers = #tpu.dot_dimension_numbers<[1], [1], [0], [0], [0, 0, 1, 0], [], []>} : vector<4x16xf32>, vector<8x16xf32>, vector<4x8xf32> -> vector<4x8xf32>
    %cst_30 = arith.constant dense<0xFF800000> : vector<4xf32>
    %72 = vector.multi_reduction <maximumf>, %71, %cst_30 [1] : vector<4x8xf32> to vector<4xf32>
    %73 = vector.shape_cast %72 : vector<4xf32> to vector<4x1xf32>
    %74 = vector.broadcast %73 : vector<4x1xf32> to vector<4x8xf32>
    %75 = arith.subf %71, %74 : vector<4x8xf32>
    %76 = math.exp %75 : vector<4x8xf32>
    %cst_31 = arith.constant dense<0.000000e+00> : vector<4xf32>
    %77 = vector.multi_reduction <add>, %76, %cst_31 [1] : vector<4x8xf32> to vector<4xf32>
    %78 = vector.shape_cast %77 : vector<4xf32> to vector<4x1xf32>
    %79 = vector.broadcast %78 : vector<4x1xf32> to vector<4x8xf32>
    %80 = arith.divf %76, %79 : vector<4x8xf32>
    %cst_32 = arith.constant dense<0.000000e+00> : vector<4x16xf32>
    %81 = tpu.matmul %80, %70, %cst_32 {dimension_numbers = #tpu.dot_dimension_numbers<[1], [0], [0], [1], [0, 0, 1, 1], [], []>} : vector<4x8xf32>, vector<8x16xf32>, vector<4x16xf32> -> vector<4x16xf32>
    %82 = vector.extract_strided_slice %18 {offsets = [16, 0], sizes = [16, 32], strides = [1, 1]} : vector<32x32xf32> to vector<16x32xf32>
    %cst_33 = arith.constant dense<0.000000e+00> : vector<4x32xf32>
    %83 = tpu.matmul %81, %82, %cst_33 {dimension_numbers = #tpu.dot_dimension_numbers<[1], [0], [0], [1], [0, 0, 1, 1], [], []>} : vector<4x16xf32>, vector<16x32xf32>, vector<4x32xf32> -> vector<4x32xf32>
    %84 = arith.addf %67, %83 : vector<4x32xf32>
    %85 = vector.extract_strided_slice %16 {offsets = [8, 0], sizes = [4, 16], strides = [1, 1]} : vector<16x96xf32> to vector<4x16xf32>
    %86 = vector.extract_strided_slice %16 {offsets = [6, 32], sizes = [8, 16], strides = [1, 1]} : vector<16x96xf32> to vector<8x16xf32>
    %87 = vector.extract_strided_slice %16 {offsets = [6, 64], sizes = [8, 16], strides = [1, 1]} : vector<16x96xf32> to vector<8x16xf32>
    %cst_34 = arith.constant dense<0.000000e+00> : vector<4x8xf32>
    %88 = tpu.matmul %85, %86, %cst_34 {dimension_numbers = #tpu.dot_dimension_numbers<[1], [1], [0], [0], [0, 0, 1, 0], [], []>} : vector<4x16xf32>, vector<8x16xf32>, vector<4x8xf32> -> vector<4x8xf32>
    %cst_35 = arith.constant dense<0xFF800000> : vector<4xf32>
    %89 = vector.multi_reduction <maximumf>, %88, %cst_35 [1] : vector<4x8xf32> to vector<4xf32>
    %90 = vector.shape_cast %89 : vector<4xf32> to vector<4x1xf32>
    %91 = vector.broadcast %90 : vector<4x1xf32> to vector<4x8xf32>
    %92 = arith.subf %88, %91 : vector<4x8xf32>
    %93 = math.exp %92 : vector<4x8xf32>
    %cst_36 = arith.constant dense<0.000000e+00> : vector<4xf32>
    %94 = vector.multi_reduction <add>, %93, %cst_36 [1] : vector<4x8xf32> to vector<4xf32>
    %95 = vector.shape_cast %94 : vector<4xf32> to vector<4x1xf32>
    %96 = vector.broadcast %95 : vector<4x1xf32> to vector<4x8xf32>
    %97 = arith.divf %93, %96 : vector<4x8xf32>
    %cst_37 = arith.constant dense<0.000000e+00> : vector<4x16xf32>
    %98 = tpu.matmul %97, %87, %cst_37 {dimension_numbers = #tpu.dot_dimension_numbers<[1], [0], [0], [1], [0, 0, 1, 1], [], []>} : vector<4x8xf32>, vector<8x16xf32>, vector<4x16xf32> -> vector<4x16xf32>
    %99 = vector.extract_strided_slice %18 {offsets = [0, 0], sizes = [16, 32], strides = [1, 1]} : vector<32x32xf32> to vector<16x32xf32>
    %cst_38 = arith.constant dense<0.000000e+00> : vector<4x32xf32>
    %100 = tpu.matmul %98, %99, %cst_38 {dimension_numbers = #tpu.dot_dimension_numbers<[1], [0], [0], [1], [0, 0, 1, 1], [], []>} : vector<4x16xf32>, vector<16x32xf32>, vector<4x32xf32> -> vector<4x32xf32>
    %101 = vector.extract_strided_slice %16 {offsets = [8, 16], sizes = [4, 16], strides = [1, 1]} : vector<16x96xf32> to vector<4x16xf32>
    %102 = vector.extract_strided_slice %16 {offsets = [6, 48], sizes = [8, 16], strides = [1, 1]} : vector<16x96xf32> to vector<8x16xf32>
    %103 = vector.extract_strided_slice %16 {offsets = [6, 80], sizes = [8, 16], strides = [1, 1]} : vector<16x96xf32> to vector<8x16xf32>
    %cst_39 = arith.constant dense<0.000000e+00> : vector<4x8xf32>
    %104 = tpu.matmul %101, %102, %cst_39 {dimension_numbers = #tpu.dot_dimension_numbers<[1], [1], [0], [0], [0, 0, 1, 0], [], []>} : vector<4x16xf32>, vector<8x16xf32>, vector<4x8xf32> -> vector<4x8xf32>
    %cst_40 = arith.constant dense<0xFF800000> : vector<4xf32>
    %105 = vector.multi_reduction <maximumf>, %104, %cst_40 [1] : vector<4x8xf32> to vector<4xf32>
    %106 = vector.shape_cast %105 : vector<4xf32> to vector<4x1xf32>
    %107 = vector.broadcast %106 : vector<4x1xf32> to vector<4x8xf32>
    %108 = arith.subf %104, %107 : vector<4x8xf32>
    %109 = math.exp %108 : vector<4x8xf32>
    %cst_41 = arith.constant dense<0.000000e+00> : vector<4xf32>
    %110 = vector.multi_reduction <add>, %109, %cst_41 [1] : vector<4x8xf32> to vector<4xf32>
    %111 = vector.shape_cast %110 : vector<4xf32> to vector<4x1xf32>
    %112 = vector.broadcast %111 : vector<4x1xf32> to vector<4x8xf32>
    %113 = arith.divf %109, %112 : vector<4x8xf32>
    %cst_42 = arith.constant dense<0.000000e+00> : vector<4x16xf32>
    %114 = tpu.matmul %113, %103, %cst_42 {dimension_numbers = #tpu.dot_dimension_numbers<[1], [0], [0], [1], [0, 0, 1, 1], [], []>} : vector<4x8xf32>, vector<8x16xf32>, vector<4x16xf32> -> vector<4x16xf32>
    %115 = vector.extract_strided_slice %18 {offsets = [16, 0], sizes = [16, 32], strides = [1, 1]} : vector<32x32xf32> to vector<16x32xf32>
    %cst_43 = arith.constant dense<0.000000e+00> : vector<4x32xf32>
    %116 = tpu.matmul %114, %115, %cst_43 {dimension_numbers = #tpu.dot_dimension_numbers<[1], [0], [0], [1], [0, 0, 1, 1], [], []>} : vector<4x16xf32>, vector<16x32xf32>, vector<4x32xf32> -> vector<4x32xf32>
    %117 = arith.addf %100, %116 : vector<4x32xf32>
    %118 = vector.extract_strided_slice %16 {offsets = [12, 0], sizes = [4, 16], strides = [1, 1]} : vector<16x96xf32> to vector<4x16xf32>
    %119 = vector.extract_strided_slice %16 {offsets = [10, 32], sizes = [6, 16], strides = [1, 1]} : vector<16x96xf32> to vector<6x16xf32>
    %120 = vector.extract_strided_slice %16 {offsets = [10, 64], sizes = [6, 16], strides = [1, 1]} : vector<16x96xf32> to vector<6x16xf32>
    %cst_44 = arith.constant dense<0.000000e+00> : vector<4x6xf32>
    %121 = tpu.matmul %118, %119, %cst_44 {dimension_numbers = #tpu.dot_dimension_numbers<[1], [1], [0], [0], [0, 0, 1, 0], [], []>} : vector<4x16xf32>, vector<6x16xf32>, vector<4x6xf32> -> vector<4x6xf32>
    %cst_45 = arith.constant dense<0xFF800000> : vector<4xf32>
    %122 = vector.multi_reduction <maximumf>, %121, %cst_45 [1] : vector<4x6xf32> to vector<4xf32>
    %123 = vector.shape_cast %122 : vector<4xf32> to vector<4x1xf32>
    %124 = vector.broadcast %123 : vector<4x1xf32> to vector<4x6xf32>
    %125 = arith.subf %121, %124 : vector<4x6xf32>
    %126 = math.exp %125 : vector<4x6xf32>
    %cst_46 = arith.constant dense<0.000000e+00> : vector<4xf32>
    %127 = vector.multi_reduction <add>, %126, %cst_46 [1] : vector<4x6xf32> to vector<4xf32>
    %128 = vector.shape_cast %127 : vector<4xf32> to vector<4x1xf32>
    %129 = vector.broadcast %128 : vector<4x1xf32> to vector<4x6xf32>
    %130 = arith.divf %126, %129 : vector<4x6xf32>
    %cst_47 = arith.constant dense<0.000000e+00> : vector<4x16xf32>
    %131 = tpu.matmul %130, %120, %cst_47 {dimension_numbers = #tpu.dot_dimension_numbers<[1], [0], [0], [1], [0, 0, 1, 1], [], []>} : vector<4x6xf32>, vector<6x16xf32>, vector<4x16xf32> -> vector<4x16xf32>
    %132 = vector.extract_strided_slice %18 {offsets = [0, 0], sizes = [16, 32], strides = [1, 1]} : vector<32x32xf32> to vector<16x32xf32>
    %cst_48 = arith.constant dense<0.000000e+00> : vector<4x32xf32>
    %133 = tpu.matmul %131, %132, %cst_48 {dimension_numbers = #tpu.dot_dimension_numbers<[1], [0], [0], [1], [0, 0, 1, 1], [], []>} : vector<4x16xf32>, vector<16x32xf32>, vector<4x32xf32> -> vector<4x32xf32>
    %134 = vector.extract_strided_slice %16 {offsets = [12, 16], sizes = [4, 16], strides = [1, 1]} : vector<16x96xf32> to vector<4x16xf32>
    %135 = vector.extract_strided_slice %16 {offsets = [10, 48], sizes = [6, 16], strides = [1, 1]} : vector<16x96xf32> to vector<6x16xf32>
    %136 = vector.extract_strided_slice %16 {offsets = [10, 80], sizes = [6, 16], strides = [1, 1]} : vector<16x96xf32> to vector<6x16xf32>
    %cst_49 = arith.constant dense<0.000000e+00> : vector<4x6xf32>
    %137 = tpu.matmul %134, %135, %cst_49 {dimension_numbers = #tpu.dot_dimension_numbers<[1], [1], [0], [0], [0, 0, 1, 0], [], []>} : vector<4x16xf32>, vector<6x16xf32>, vector<4x6xf32> -> vector<4x6xf32>
    %cst_50 = arith.constant dense<0xFF800000> : vector<4xf32>
    %138 = vector.multi_reduction <maximumf>, %137, %cst_50 [1] : vector<4x6xf32> to vector<4xf32>
    %139 = vector.shape_cast %138 : vector<4xf32> to vector<4x1xf32>
    %140 = vector.broadcast %139 : vector<4x1xf32> to vector<4x6xf32>
    %141 = arith.subf %137, %140 : vector<4x6xf32>
    %142 = math.exp %141 : vector<4x6xf32>
    %cst_51 = arith.constant dense<0.000000e+00> : vector<4xf32>
    %143 = vector.multi_reduction <add>, %142, %cst_51 [1] : vector<4x6xf32> to vector<4xf32>
    %144 = vector.shape_cast %143 : vector<4xf32> to vector<4x1xf32>
    %145 = vector.broadcast %144 : vector<4x1xf32> to vector<4x6xf32>
    %146 = arith.divf %142, %145 : vector<4x6xf32>
    %cst_52 = arith.constant dense<0.000000e+00> : vector<4x16xf32>
    %147 = tpu.matmul %146, %136, %cst_52 {dimension_numbers = #tpu.dot_dimension_numbers<[1], [0], [0], [1], [0, 0, 1, 1], [], []>} : vector<4x6xf32>, vector<6x16xf32>, vector<4x16xf32> -> vector<4x16xf32>
    %148 = vector.extract_strided_slice %18 {offsets = [16, 0], sizes = [16, 32], strides = [1, 1]} : vector<32x32xf32> to vector<16x32xf32>
    %cst_53 = arith.constant dense<0.000000e+00> : vector<4x32xf32>
    %149 = tpu.matmul %147, %148, %cst_53 {dimension_numbers = #tpu.dot_dimension_numbers<[1], [0], [0], [1], [0, 0, 1, 1], [], []>} : vector<4x16xf32>, vector<16x32xf32>, vector<4x32xf32> -> vector<4x32xf32>
    %150 = arith.addf %133, %149 : vector<4x32xf32>
    %151 = tpu.concatenate %51, %84, %117, %150 in 0 : vector<4x32xf32>, vector<4x32xf32>, vector<4x32xf32>, vector<4x32xf32> -> vector<16x32xf32>
    %152 = vector.broadcast %4 : vector<1x32xf32> to vector<16x32xf32>
    %153 = arith.addf %151, %152 : vector<16x32xf32>
    %154 = arith.addf %153, %1 : vector<16x32xf32>
    %cst_54 = arith.constant dense<0.000000e+00> : vector<16xf32>
    %155 = vector.multi_reduction <add>, %154, %cst_54 [1] : vector<16x32xf32> to vector<16xf32>
    %156 = vector.shape_cast %155 : vector<16xf32> to vector<16x1xf32>
    %cst_55 = arith.constant 3.200000e+01 : f32
    %157 = vector.broadcast %cst_55 : f32 to vector<16x1xf32>
    %158 = arith.divf %156, %157 : vector<16x1xf32>
    %159 = vector.broadcast %158 : vector<16x1xf32> to vector<16x32xf32>
    %160 = arith.subf %154, %159 : vector<16x32xf32>
    %161 = arith.mulf %160, %160 : vector<16x32xf32>
    %cst_56 = arith.constant dense<0.000000e+00> : vector<16xf32>
    %162 = vector.multi_reduction <add>, %161, %cst_56 [1] : vector<16x32xf32> to vector<16xf32>
    %163 = vector.shape_cast %162 : vector<16xf32> to vector<16x1xf32>
    %cst_57 = arith.constant 3.200000e+01 : f32
    %164 = vector.broadcast %cst_57 : f32 to vector<16x1xf32>
    %165 = arith.divf %163, %164 : vector<16x1xf32>
    %166 = vector.broadcast %158 : vector<16x1xf32> to vector<16x32xf32>
    %167 = arith.subf %154, %166 : vector<16x32xf32>
    %cst_58 = arith.constant 9.99999996E-13 : f32
    %168 = vector.broadcast %cst_58 : f32 to vector<16x1xf32>
    %169 = arith.addf %165, %168 : vector<16x1xf32>
    %170 = math.rsqrt %169 : vector<16x1xf32>
    %171 = vector.broadcast %170 : vector<16x1xf32> to vector<16x32xf32>
    %172 = arith.mulf %167, %171 : vector<16x32xf32>
    %173 = vector.broadcast %5 : vector<1x32xf32> to vector<16x32xf32>
    %174 = arith.mulf %172, %173 : vector<16x32xf32>
    %175 = vector.broadcast %6 : vector<1x32xf32> to vector<16x32xf32>
    %176 = arith.addf %174, %175 : vector<16x32xf32>
    %c0_59 = arith.constant 0 : index
    %c0_60 = arith.constant 0 : index
    %c0_61 = arith.constant 0 : index
    %177 = vector.load %arg5[%c0_59, %c0_60, %c0_61] : memref<2x32x64xf32, #tpu.memory_space<vmem>>, vector<1x32x64xf32>
    %178 = vector.shape_cast %177 : vector<1x32x64xf32> to vector<32x64xf32>
    %cst_62 = arith.constant dense<0.000000e+00> : vector<16x64xf32>
    %179 = tpu.matmul %176, %178, %cst_62 {dimension_numbers = #tpu.dot_dimension_numbers<[1], [0], [0], [1], [0, 0, 1, 1], [], []>} : vector<16x32xf32>, vector<32x64xf32>, vector<16x64xf32> -> vector<16x64xf32>
    %c0_63 = arith.constant 0 : index
    %c0_64 = arith.constant 0 : index
    %c0_65 = arith.constant 0 : index
    %180 = vector.load %arg6[%c0_63, %c0_64, %c0_65] : memref<2x1x64xf32, #tpu.memory_space<vmem>>, vector<1x1x64xf32>
    %181 = vector.shape_cast %180 : vector<1x1x64xf32> to vector<1x64xf32>
    %182 = vector.broadcast %181 : vector<1x64xf32> to vector<16x64xf32>
    %183 = arith.addf %179, %182 : vector<16x64xf32>
    %cst_66 = arith.constant 5.000000e-01 : f32
    %184 = vector.broadcast %cst_66 : f32 to vector<16x64xf32>
    %185 = arith.mulf %183, %184 : vector<16x64xf32>
    %cst_67 = arith.constant 1.41421354 : f32
    %186 = vector.broadcast %cst_67 : f32 to vector<16x64xf32>
    %187 = arith.divf %183, %186 : vector<16x64xf32>
    %188 = math.erf %187 : vector<16x64xf32>
    %cst_68 = arith.constant 1.000000e+00 : f32
    %189 = vector.broadcast %cst_68 : f32 to vector<16x64xf32>
    %190 = arith.addf %189, %188 : vector<16x64xf32>
    %191 = arith.mulf %185, %190 : vector<16x64xf32>
    %c0_69 = arith.constant 0 : index
    %c0_70 = arith.constant 0 : index
    %c0_71 = arith.constant 0 : index
    %192 = vector.load %arg7[%c0_69, %c0_70, %c0_71] : memref<2x64x32xf32, #tpu.memory_space<vmem>>, vector<1x64x32xf32>
    %193 = vector.shape_cast %192 : vector<1x64x32xf32> to vector<64x32xf32>
    %cst_72 = arith.constant dense<0.000000e+00> : vector<16x32xf32>
    %194 = tpu.matmul %191, %193, %cst_72 {dimension_numbers = #tpu.dot_dimension_numbers<[1], [0], [0], [1], [0, 0, 1, 1], [], []>} : vector<16x64xf32>, vector<64x32xf32>, vector<16x32xf32> -> vector<16x32xf32>
    %195 = vector.broadcast %7 : vector<1x32xf32> to vector<16x32xf32>
    %196 = arith.addf %194, %195 : vector<16x32xf32>
    %197 = arith.addf %196, %176 : vector<16x32xf32>
    %cst_73 = arith.constant dense<0.000000e+00> : vector<16xf32>
    %198 = vector.multi_reduction <add>, %197, %cst_73 [1] : vector<16x32xf32> to vector<16xf32>
    %199 = vector.shape_cast %198 : vector<16xf32> to vector<16x1xf32>
    %cst_74 = arith.constant 3.200000e+01 : f32
    %200 = vector.broadcast %cst_74 : f32 to vector<16x1xf32>
    %201 = arith.divf %199, %200 : vector<16x1xf32>
    %202 = vector.broadcast %201 : vector<16x1xf32> to vector<16x32xf32>
    %203 = arith.subf %197, %202 : vector<16x32xf32>
    %204 = arith.mulf %203, %203 : vector<16x32xf32>
    %cst_75 = arith.constant dense<0.000000e+00> : vector<16xf32>
    %205 = vector.multi_reduction <add>, %204, %cst_75 [1] : vector<16x32xf32> to vector<16xf32>
    %206 = vector.shape_cast %205 : vector<16xf32> to vector<16x1xf32>
    %cst_76 = arith.constant 3.200000e+01 : f32
    %207 = vector.broadcast %cst_76 : f32 to vector<16x1xf32>
    %208 = arith.divf %206, %207 : vector<16x1xf32>
    %209 = vector.broadcast %201 : vector<16x1xf32> to vector<16x32xf32>
    %210 = arith.subf %197, %209 : vector<16x32xf32>
    %cst_77 = arith.constant 9.99999996E-13 : f32
    %211 = vector.broadcast %cst_77 : f32 to vector<16x1xf32>
    %212 = arith.addf %208, %211 : vector<16x1xf32>
    %213 = math.rsqrt %212 : vector<16x1xf32>
    %214 = vector.broadcast %213 : vector<16x1xf32> to vector<16x32xf32>
    %215 = arith.mulf %210, %214 : vector<16x32xf32>
    %216 = vector.broadcast %8 : vector<1x32xf32> to vector<16x32xf32>
    %217 = arith.mulf %215, %216 : vector<16x32xf32>
    %218 = vector.broadcast %9 : vector<1x32xf32> to vector<16x32xf32>
    %219 = arith.addf %217, %218 : vector<16x32xf32>
    %c0_78 = arith.constant 0 : index
    %c0_79 = arith.constant 0 : index
    %c0_80 = arith.constant 0 : index
    %c0_81 = arith.constant 0 : index
    %220 = vector.load %arg9[%c0_78, %c0_79, %c0_80, %c0_81] : memref<2x1x16x32xf32, #tpu.memory_space<vmem>>, vector<1x1x16x32xf32>
    %221 = vector.shape_cast %220 : vector<1x1x16x32xf32> to vector<16x32xf32>
    %222 = vector.shape_cast %219 : vector<16x32xf32> to vector<1x1x16x32xf32>
    tpu.vector_store %arg9[%c0_78, %c0_79, %c0_80, %c0_81], %222 {strides = array<i32>} : memref<2x1x16x32xf32, #tpu.memory_space<vmem>>, vector<1x1x16x32xf32>,
    %c1 = arith.constant 1 : index
    %c0_82 = arith.constant 0 : index
    %c0_83 = arith.constant 0 : index
    %223 = vector.load %arg8[%c1, %c0_82, %c0_83] : memref<2x6x32xf32, #tpu.memory_space<vmem>>, vector<1x6x32xf32>
    %224 = vector.shape_cast %223 : vector<1x6x32xf32> to vector<6x32xf32>
    %225 = vector.extract_strided_slice %224 {offsets = [0, 0], sizes = [1, 32], strides = [1, 1]} : vector<6x32xf32> to vector<1x32xf32>
    %226 = vector.extract_strided_slice %224 {offsets = [1, 0], sizes = [1, 32], strides = [1, 1]} : vector<6x32xf32> to vector<1x32xf32>
    %227 = vector.extract_strided_slice %224 {offsets = [2, 0], sizes = [1, 32], strides = [1, 1]} : vector<6x32xf32> to vector<1x32xf32>
    %228 = vector.extract_strided_slice %224 {offsets = [3, 0], sizes = [1, 32], strides = [1, 1]} : vector<6x32xf32> to vector<1x32xf32>
    %229 = vector.extract_strided_slice %224 {offsets = [4, 0], sizes = [1, 32], strides = [1, 1]} : vector<6x32xf32> to vector<1x32xf32>
    %230 = vector.extract_strided_slice %224 {offsets = [5, 0], sizes = [1, 32], strides = [1, 1]} : vector<6x32xf32> to vector<1x32xf32>
    %c1_84 = arith.constant 1 : index
    %c0_85 = arith.constant 0 : index
    %c0_86 = arith.constant 0 : index
    %231 = vector.load %arg2[%c1_84, %c0_85, %c0_86] : memref<2x32x96xf32, #tpu.memory_space<vmem>>, vector<1x32x96xf32>
    %232 = vector.shape_cast %231 : vector<1x32x96xf32> to vector<32x96xf32>
    %cst_87 = arith.constant dense<0.000000e+00> : vector<16x96xf32>
    %233 = tpu.matmul %219, %232, %cst_87 {dimension_numbers = #tpu.dot_dimension_numbers<[1], [0], [0], [1], [0, 0, 1, 1], [], []>} : vector<16x32xf32>, vector<32x96xf32>, vector<16x96xf32> -> vector<16x96xf32>
    %c1_88 = arith.constant 1 : index
    %c0_89 = arith.constant 0 : index
    %c0_90 = arith.constant 0 : index
    %234 = vector.load %arg3[%c1_88, %c0_89, %c0_90] : memref<2x1x96xf32, #tpu.memory_space<vmem>>, vector<1x1x96xf32>
    %235 = vector.shape_cast %234 : vector<1x1x96xf32> to vector<1x96xf32>
    %236 = vector.broadcast %235 : vector<1x96xf32> to vector<16x96xf32>
    %237 = arith.addf %233, %236 : vector<16x96xf32>
    %c1_91 = arith.constant 1 : index
    %c0_92 = arith.constant 0 : index
    %c0_93 = arith.constant 0 : index
    %238 = vector.load %arg4[%c1_91, %c0_92, %c0_93] : memref<2x32x32xf32, #tpu.memory_space<vmem>>, vector<1x32x32xf32>
    %239 = vector.shape_cast %238 : vector<1x32x32xf32> to vector<32x32xf32>
    %240 = vector.extract_strided_slice %237 {offsets = [0, 0], sizes = [4, 16], strides = [1, 1]} : vector<16x96xf32> to vector<4x16xf32>
    %241 = vector.extract_strided_slice %237 {offsets = [0, 32], sizes = [6, 16], strides = [1, 1]} : vector<16x96xf32> to vector<6x16xf32>
    %242 = vector.extract_strided_slice %237 {offsets = [0, 64], sizes = [6, 16], strides = [1, 1]} : vector<16x96xf32> to vector<6x16xf32>
    %cst_94 = arith.constant dense<0.000000e+00> : vector<4x6xf32>
    %243 = tpu.matmul %240, %241, %cst_94 {dimension_numbers = #tpu.dot_dimension_numbers<[1], [1], [0], [0], [0, 0, 1, 0], [], []>} : vector<4x16xf32>, vector<6x16xf32>, vector<4x6xf32> -> vector<4x6xf32>
    %cst_95 = arith.constant dense<0xFF800000> : vector<4xf32>
    %244 = vector.multi_reduction <maximumf>, %243, %cst_95 [1] : vector<4x6xf32> to vector<4xf32>
    %245 = vector.shape_cast %244 : vector<4xf32> to vector<4x1xf32>
    %246 = vector.broadcast %245 : vector<4x1xf32> to vector<4x6xf32>
    %247 = arith.subf %243, %246 : vector<4x6xf32>
    %248 = math.exp %247 : vector<4x6xf32>
    %cst_96 = arith.constant dense<0.000000e+00> : vector<4xf32>
    %249 = vector.multi_reduction <add>, %248, %cst_96 [1] : vector<4x6xf32> to vector<4xf32>
    %250 = vector.shape_cast %249 : vector<4xf32> to vector<4x1xf32>
    %251 = vector.broadcast %250 : vector<4x1xf32> to vector<4x6xf32>
    %252 = arith.divf %248, %251 : vector<4x6xf32>
    %cst_97 = arith.constant dense<0.000000e+00> : vector<4x16xf32>
    %253 = tpu.matmul %252, %242, %cst_97 {dimension_numbers = #tpu.dot_dimension_numbers<[1], [0], [0], [1], [0, 0, 1, 1], [], []>} : vector<4x6xf32>, vector<6x16xf32>, vector<4x16xf32> -> vector<4x16xf32>
    %254 = vector.extract_strided_slice %239 {offsets = [0, 0], sizes = [16, 32], strides = [1, 1]} : vector<32x32xf32> to vector<16x32xf32>
    %cst_98 = arith.constant dense<0.000000e+00> : vector<4x32xf32>
    %255 = tpu.matmul %253, %254, %cst_98 {dimension_numbers = #tpu.dot_dimension_numbers<[1], [0], [0], [1], [0, 0, 1, 1], [], []>} : vector<4x16xf32>, vector<16x32xf32>, vector<4x32xf32> -> vector<4x32xf32>
    %256 = vector.extract_strided_slice %237 {offsets = [0, 16], sizes = [4, 16], strides = [1, 1]} : vector<16x96xf32> to vector<4x16xf32>
    %257 = vector.extract_strided_slice %237 {offsets = [0, 48], sizes = [6, 16], strides = [1, 1]} : vector<16x96xf32> to vector<6x16xf32>
    %258 = vector.extract_strided_slice %237 {offsets = [0, 80], sizes = [6, 16], strides = [1, 1]} : vector<16x96xf32> to vector<6x16xf32>
    %cst_99 = arith.constant dense<0.000000e+00> : vector<4x6xf32>
    %259 = tpu.matmul %256, %257, %cst_99 {dimension_numbers = #tpu.dot_dimension_numbers<[1], [1], [0], [0], [0, 0, 1, 0], [], []>} : vector<4x16xf32>, vector<6x16xf32>, vector<4x6xf32> -> vector<4x6xf32>
    %cst_100 = arith.constant dense<0xFF800000> : vector<4xf32>
    %260 = vector.multi_reduction <maximumf>, %259, %cst_100 [1] : vector<4x6xf32> to vector<4xf32>
    %261 = vector.shape_cast %260 : vector<4xf32> to vector<4x1xf32>
    %262 = vector.broadcast %261 : vector<4x1xf32> to vector<4x6xf32>
    %263 = arith.subf %259, %262 : vector<4x6xf32>
    %264 = math.exp %263 : vector<4x6xf32>
    %cst_101 = arith.constant dense<0.000000e+00> : vector<4xf32>
    %265 = vector.multi_reduction <add>, %264, %cst_101 [1] : vector<4x6xf32> to vector<4xf32>
    %266 = vector.shape_cast %265 : vector<4xf32> to vector<4x1xf32>
    %267 = vector.broadcast %266 : vector<4x1xf32> to vector<4x6xf32>
    %268 = arith.divf %264, %267 : vector<4x6xf32>
    %cst_102 = arith.constant dense<0.000000e+00> : vector<4x16xf32>
    %269 = tpu.matmul %268, %258, %cst_102 {dimension_numbers = #tpu.dot_dimension_numbers<[1], [0], [0], [1], [0, 0, 1, 1], [], []>} : vector<4x6xf32>, vector<6x16xf32>, vector<4x16xf32> -> vector<4x16xf32>
    %270 = vector.extract_strided_slice %239 {offsets = [16, 0], sizes = [16, 32], strides = [1, 1]} : vector<32x32xf32> to vector<16x32xf32>
    %cst_103 = arith.constant dense<0.000000e+00> : vector<4x32xf32>
    %271 = tpu.matmul %269, %270, %cst_103 {dimension_numbers = #tpu.dot_dimension_numbers<[1], [0], [0], [1], [0, 0, 1, 1], [], []>} : vector<4x16xf32>, vector<16x32xf32>, vector<4x32xf32> -> vector<4x32xf32>
    %272 = arith.addf %255, %271 : vector<4x32xf32>
    %273 = vector.extract_strided_slice %237 {offsets = [4, 0], sizes = [4, 16], strides = [1, 1]} : vector<16x96xf32> to vector<4x16xf32>
    %274 = vector.extract_strided_slice %237 {offsets = [2, 32], sizes = [8, 16], strides = [1, 1]} : vector<16x96xf32> to vector<8x16xf32>
    %275 = vector.extract_strided_slice %237 {offsets = [2, 64], sizes = [8, 16], strides = [1, 1]} : vector<16x96xf32> to vector<8x16xf32>
    %cst_104 = arith.constant dense<0.000000e+00> : vector<4x8xf32>
    %276 = tpu.matmul %273, %274, %cst_104 {dimension_numbers = #tpu.dot_dimension_numbers<[1], [1], [0], [0], [0, 0, 1, 0], [], []>} : vector<4x16xf32>, vector<8x16xf32>, vector<4x8xf32> -> vector<4x8xf32>
    %cst_105 = arith.constant dense<0xFF800000> : vector<4xf32>
    %277 = vector.multi_reduction <maximumf>, %276, %cst_105 [1] : vector<4x8xf32> to vector<4xf32>
    %278 = vector.shape_cast %277 : vector<4xf32> to vector<4x1xf32>
    %279 = vector.broadcast %278 : vector<4x1xf32> to vector<4x8xf32>
    %280 = arith.subf %276, %279 : vector<4x8xf32>
    %281 = math.exp %280 : vector<4x8xf32>
    %cst_106 = arith.constant dense<0.000000e+00> : vector<4xf32>
    %282 = vector.multi_reduction <add>, %281, %cst_106 [1] : vector<4x8xf32> to vector<4xf32>
    %283 = vector.shape_cast %282 : vector<4xf32> to vector<4x1xf32>
    %284 = vector.broadcast %283 : vector<4x1xf32> to vector<4x8xf32>
    %285 = arith.divf %281, %284 : vector<4x8xf32>
    %cst_107 = arith.constant dense<0.000000e+00> : vector<4x16xf32>
    %286 = tpu.matmul %285, %275, %cst_107 {dimension_numbers = #tpu.dot_dimension_numbers<[1], [0], [0], [1], [0, 0, 1, 1], [], []>} : vector<4x8xf32>, vector<8x16xf32>, vector<4x16xf32> -> vector<4x16xf32>
    %287 = vector.extract_strided_slice %239 {offsets = [0, 0], sizes = [16, 32], strides = [1, 1]} : vector<32x32xf32> to vector<16x32xf32>
    %cst_108 = arith.constant dense<0.000000e+00> : vector<4x32xf32>
    %288 = tpu.matmul %286, %287, %cst_108 {dimension_numbers = #tpu.dot_dimension_numbers<[1], [0], [0], [1], [0, 0, 1, 1], [], []>} : vector<4x16xf32>, vector<16x32xf32>, vector<4x32xf32> -> vector<4x32xf32>
    %289 = vector.extract_strided_slice %237 {offsets = [4, 16], sizes = [4, 16], strides = [1, 1]} : vector<16x96xf32> to vector<4x16xf32>
    %290 = vector.extract_strided_slice %237 {offsets = [2, 48], sizes = [8, 16], strides = [1, 1]} : vector<16x96xf32> to vector<8x16xf32>
    %291 = vector.extract_strided_slice %237 {offsets = [2, 80], sizes = [8, 16], strides = [1, 1]} : vector<16x96xf32> to vector<8x16xf32>
    %cst_109 = arith.constant dense<0.000000e+00> : vector<4x8xf32>
    %292 = tpu.matmul %289, %290, %cst_109 {dimension_numbers = #tpu.dot_dimension_numbers<[1], [1], [0], [0], [0, 0, 1, 0], [], []>} : vector<4x16xf32>, vector<8x16xf32>, vector<4x8xf32> -> vector<4x8xf32>
    %cst_110 = arith.constant dense<0xFF800000> : vector<4xf32>
    %293 = vector.multi_reduction <maximumf>, %292, %cst_110 [1] : vector<4x8xf32> to vector<4xf32>
    %294 = vector.shape_cast %293 : vector<4xf32> to vector<4x1xf32>
    %295 = vector.broadcast %294 : vector<4x1xf32> to vector<4x8xf32>
    %296 = arith.subf %292, %295 : vector<4x8xf32>
    %297 = math.exp %296 : vector<4x8xf32>
    %cst_111 = arith.constant dense<0.000000e+00> : vector<4xf32>
    %298 = vector.multi_reduction <add>, %297, %cst_111 [1] : vector<4x8xf32> to vector<4xf32>
    %299 = vector.shape_cast %298 : vector<4xf32> to vector<4x1xf32>
    %300 = vector.broadcast %299 : vector<4x1xf32> to vector<4x8xf32>
    %301 = arith.divf %297, %300 : vector<4x8xf32>
    %cst_112 = arith.constant dense<0.000000e+00> : vector<4x16xf32>
    %302 = tpu.matmul %301, %291, %cst_112 {dimension_numbers = #tpu.dot_dimension_numbers<[1], [0], [0], [1], [0, 0, 1, 1], [], []>} : vector<4x8xf32>, vector<8x16xf32>, vector<4x16xf32> -> vector<4x16xf32>
    %303 = vector.extract_strided_slice %239 {offsets = [16, 0], sizes = [16, 32], strides = [1, 1]} : vector<32x32xf32> to vector<16x32xf32>
    %cst_113 = arith.constant dense<0.000000e+00> : vector<4x32xf32>
    %304 = tpu.matmul %302, %303, %cst_113 {dimension_numbers = #tpu.dot_dimension_numbers<[1], [0], [0], [1], [0, 0, 1, 1], [], []>} : vector<4x16xf32>, vector<16x32xf32>, vector<4x32xf32> -> vector<4x32xf32>
    %305 = arith.addf %288, %304 : vector<4x32xf32>
    %306 = vector.extract_strided_slice %237 {offsets = [8, 0], sizes = [4, 16], strides = [1, 1]} : vector<16x96xf32> to vector<4x16xf32>
    %307 = vector.extract_strided_slice %237 {offsets = [6, 32], sizes = [8, 16], strides = [1, 1]} : vector<16x96xf32> to vector<8x16xf32>
    %308 = vector.extract_strided_slice %237 {offsets = [6, 64], sizes = [8, 16], strides = [1, 1]} : vector<16x96xf32> to vector<8x16xf32>
    %cst_114 = arith.constant dense<0.000000e+00> : vector<4x8xf32>
    %309 = tpu.matmul %306, %307, %cst_114 {dimension_numbers = #tpu.dot_dimension_numbers<[1], [1], [0], [0], [0, 0, 1, 0], [], []>} : vector<4x16xf32>, vector<8x16xf32>, vector<4x8xf32> -> vector<4x8xf32>
    %cst_115 = arith.constant dense<0xFF800000> : vector<4xf32>
    %310 = vector.multi_reduction <maximumf>, %309, %cst_115 [1] : vector<4x8xf32> to vector<4xf32>
    %311 = vector.shape_cast %310 : vector<4xf32> to vector<4x1xf32>
    %312 = vector.broadcast %311 : vector<4x1xf32> to vector<4x8xf32>
    %313 = arith.subf %309, %312 : vector<4x8xf32>
    %314 = math.exp %313 : vector<4x8xf32>
    %cst_116 = arith.constant dense<0.000000e+00> : vector<4xf32>
    %315 = vector.multi_reduction <add>, %314, %cst_116 [1] : vector<4x8xf32> to vector<4xf32>
    %316 = vector.shape_cast %315 : vector<4xf32> to vector<4x1xf32>
    %317 = vector.broadcast %316 : vector<4x1xf32> to vector<4x8xf32>
    %318 = arith.divf %314, %317 : vector<4x8xf32>
    %cst_117 = arith.constant dense<0.000000e+00> : vector<4x16xf32>
    %319 = tpu.matmul %318, %308, %cst_117 {dimension_numbers = #tpu.dot_dimension_numbers<[1], [0], [0], [1], [0, 0, 1, 1], [], []>} : vector<4x8xf32>, vector<8x16xf32>, vector<4x16xf32> -> vector<4x16xf32>
    %320 = vector.extract_strided_slice %239 {offsets = [0, 0], sizes = [16, 32], strides = [1, 1]} : vector<32x32xf32> to vector<16x32xf32>
    %cst_118 = arith.constant dense<0.000000e+00> : vector<4x32xf32>
    %321 = tpu.matmul %319, %320, %cst_118 {dimension_numbers = #tpu.dot_dimension_numbers<[1], [0], [0], [1], [0, 0, 1, 1], [], []>} : vector<4x16xf32>, vector<16x32xf32>, vector<4x32xf32> -> vector<4x32xf32>
    %322 = vector.extract_strided_slice %237 {offsets = [8, 16], sizes = [4, 16], strides = [1, 1]} : vector<16x96xf32> to vector<4x16xf32>
    %323 = vector.extract_strided_slice %237 {offsets = [6, 48], sizes = [8, 16], strides = [1, 1]} : vector<16x96xf32> to vector<8x16xf32>
    %324 = vector.extract_strided_slice %237 {offsets = [6, 80], sizes = [8, 16], strides = [1, 1]} : vector<16x96xf32> to vector<8x16xf32>
    %cst_119 = arith.constant dense<0.000000e+00> : vector<4x8xf32>
    %325 = tpu.matmul %322, %323, %cst_119 {dimension_numbers = #tpu.dot_dimension_numbers<[1], [1], [0], [0], [0, 0, 1, 0], [], []>} : vector<4x16xf32>, vector<8x16xf32>, vector<4x8xf32> -> vector<4x8xf32>
    %cst_120 = arith.constant dense<0xFF800000> : vector<4xf32>
    %326 = vector.multi_reduction <maximumf>, %325, %cst_120 [1] : vector<4x8xf32> to vector<4xf32>
    %327 = vector.shape_cast %326 : vector<4xf32> to vector<4x1xf32>
    %328 = vector.broadcast %327 : vector<4x1xf32> to vector<4x8xf32>
    %329 = arith.subf %325, %328 : vector<4x8xf32>
    %330 = math.exp %329 : vector<4x8xf32>
    %cst_121 = arith.constant dense<0.000000e+00> : vector<4xf32>
    %331 = vector.multi_reduction <add>, %330, %cst_121 [1] : vector<4x8xf32> to vector<4xf32>
    %332 = vector.shape_cast %331 : vector<4xf32> to vector<4x1xf32>
    %333 = vector.broadcast %332 : vector<4x1xf32> to vector<4x8xf32>
    %334 = arith.divf %330, %333 : vector<4x8xf32>
    %cst_122 = arith.constant dense<0.000000e+00> : vector<4x16xf32>
    %335 = tpu.matmul %334, %324, %cst_122 {dimension_numbers = #tpu.dot_dimension_numbers<[1], [0], [0], [1], [0, 0, 1, 1], [], []>} : vector<4x8xf32>, vector<8x16xf32>, vector<4x16xf32> -> vector<4x16xf32>
    %336 = vector.extract_strided_slice %239 {offsets = [16, 0], sizes = [16, 32], strides = [1, 1]} : vector<32x32xf32> to vector<16x32xf32>
    %cst_123 = arith.constant dense<0.000000e+00> : vector<4x32xf32>
    %337 = tpu.matmul %335, %336, %cst_123 {dimension_numbers = #tpu.dot_dimension_numbers<[1], [0], [0], [1], [0, 0, 1, 1], [], []>} : vector<4x16xf32>, vector<16x32xf32>, vector<4x32xf32> -> vector<4x32xf32>
    %338 = arith.addf %321, %337 : vector<4x32xf32>
    %339 = vector.extract_strided_slice %237 {offsets = [12, 0], sizes = [4, 16], strides = [1, 1]} : vector<16x96xf32> to vector<4x16xf32>
    %340 = vector.extract_strided_slice %237 {offsets = [10, 32], sizes = [6, 16], strides = [1, 1]} : vector<16x96xf32> to vector<6x16xf32>
    %341 = vector.extract_strided_slice %237 {offsets = [10, 64], sizes = [6, 16], strides = [1, 1]} : vector<16x96xf32> to vector<6x16xf32>
    %cst_124 = arith.constant dense<0.000000e+00> : vector<4x6xf32>
    %342 = tpu.matmul %339, %340, %cst_124 {dimension_numbers = #tpu.dot_dimension_numbers<[1], [1], [0], [0], [0, 0, 1, 0], [], []>} : vector<4x16xf32>, vector<6x16xf32>, vector<4x6xf32> -> vector<4x6xf32>
    %cst_125 = arith.constant dense<0xFF800000> : vector<4xf32>
    %343 = vector.multi_reduction <maximumf>, %342, %cst_125 [1] : vector<4x6xf32> to vector<4xf32>
    %344 = vector.shape_cast %343 : vector<4xf32> to vector<4x1xf32>
    %345 = vector.broadcast %344 : vector<4x1xf32> to vector<4x6xf32>
    %346 = arith.subf %342, %345 : vector<4x6xf32>
    %347 = math.exp %346 : vector<4x6xf32>
    %cst_126 = arith.constant dense<0.000000e+00> : vector<4xf32>
    %348 = vector.multi_reduction <add>, %347, %cst_126 [1] : vector<4x6xf32> to vector<4xf32>
    %349 = vector.shape_cast %348 : vector<4xf32> to vector<4x1xf32>
    %350 = vector.broadcast %349 : vector<4x1xf32> to vector<4x6xf32>
    %351 = arith.divf %347, %350 : vector<4x6xf32>
    %cst_127 = arith.constant dense<0.000000e+00> : vector<4x16xf32>
    %352 = tpu.matmul %351, %341, %cst_127 {dimension_numbers = #tpu.dot_dimension_numbers<[1], [0], [0], [1], [0, 0, 1, 1], [], []>} : vector<4x6xf32>, vector<6x16xf32>, vector<4x16xf32> -> vector<4x16xf32>
    %353 = vector.extract_strided_slice %239 {offsets = [0, 0], sizes = [16, 32], strides = [1, 1]} : vector<32x32xf32> to vector<16x32xf32>
    %cst_128 = arith.constant dense<0.000000e+00> : vector<4x32xf32>
    %354 = tpu.matmul %352, %353, %cst_128 {dimension_numbers = #tpu.dot_dimension_numbers<[1], [0], [0], [1], [0, 0, 1, 1], [], []>} : vector<4x16xf32>, vector<16x32xf32>, vector<4x32xf32> -> vector<4x32xf32>
    %355 = vector.extract_strided_slice %237 {offsets = [12, 16], sizes = [4, 16], strides = [1, 1]} : vector<16x96xf32> to vector<4x16xf32>
    %356 = vector.extract_strided_slice %237 {offsets = [10, 48], sizes = [6, 16], strides = [1, 1]} : vector<16x96xf32> to vector<6x16xf32>
    %357 = vector.extract_strided_slice %237 {offsets = [10, 80], sizes = [6, 16], strides = [1, 1]} : vector<16x96xf32> to vector<6x16xf32>
    %cst_129 = arith.constant dense<0.000000e+00> : vector<4x6xf32>
    %358 = tpu.matmul %355, %356, %cst_129 {dimension_numbers = #tpu.dot_dimension_numbers<[1], [1], [0], [0], [0, 0, 1, 0], [], []>} : vector<4x16xf32>, vector<6x16xf32>, vector<4x6xf32> -> vector<4x6xf32>
    %cst_130 = arith.constant dense<0xFF800000> : vector<4xf32>
    %359 = vector.multi_reduction <maximumf>, %358, %cst_130 [1] : vector<4x6xf32> to vector<4xf32>
    %360 = vector.shape_cast %359 : vector<4xf32> to vector<4x1xf32>
    %361 = vector.broadcast %360 : vector<4x1xf32> to vector<4x6xf32>
    %362 = arith.subf %358, %361 : vector<4x6xf32>
    %363 = math.exp %362 : vector<4x6xf32>
    %cst_131 = arith.constant dense<0.000000e+00> : vector<4xf32>
    %364 = vector.multi_reduction <add>, %363, %cst_131 [1] : vector<4x6xf32> to vector<4xf32>
    %365 = vector.shape_cast %364 : vector<4xf32> to vector<4x1xf32>
    %366 = vector.broadcast %365 : vector<4x1xf32> to vector<4x6xf32>
    %367 = arith.divf %363, %366 : vector<4x6xf32>
    %cst_132 = arith.constant dense<0.000000e+00> : vector<4x16xf32>
    %368 = tpu.matmul %367, %357, %cst_132 {dimension_numbers = #tpu.dot_dimension_numbers<[1], [0], [0], [1], [0, 0, 1, 1], [], []>} : vector<4x6xf32>, vector<6x16xf32>, vector<4x16xf32> -> vector<4x16xf32>
    %369 = vector.extract_strided_slice %239 {offsets = [16, 0], sizes = [16, 32], strides = [1, 1]} : vector<32x32xf32> to vector<16x32xf32>
    %cst_133 = arith.constant dense<0.000000e+00> : vector<4x32xf32>
    %370 = tpu.matmul %368, %369, %cst_133 {dimension_numbers = #tpu.dot_dimension_numbers<[1], [0], [0], [1], [0, 0, 1, 1], [], []>} : vector<4x16xf32>, vector<16x32xf32>, vector<4x32xf32> -> vector<4x32xf32>
    %371 = arith.addf %354, %370 : vector<4x32xf32>
    %372 = tpu.concatenate %272, %305, %338, %371 in 0 : vector<4x32xf32>, vector<4x32xf32>, vector<4x32xf32>, vector<4x32xf32> -> vector<16x32xf32>
    %373 = vector.broadcast %225 : vector<1x32xf32> to vector<16x32xf32>
    %374 = arith.addf %372, %373 : vector<16x32xf32>
    %375 = arith.addf %374, %219 : vector<16x32xf32>
    %cst_134 = arith.constant dense<0.000000e+00> : vector<16xf32>
    %376 = vector.multi_reduction <add>, %375, %cst_134 [1] : vector<16x32xf32> to vector<16xf32>
    %377 = vector.shape_cast %376 : vector<16xf32> to vector<16x1xf32>
    %cst_135 = arith.constant 3.200000e+01 : f32
    %378 = vector.broadcast %cst_135 : f32 to vector<16x1xf32>
    %379 = arith.divf %377, %378 : vector<16x1xf32>
    %380 = vector.broadcast %379 : vector<16x1xf32> to vector<16x32xf32>
    %381 = arith.subf %375, %380 : vector<16x32xf32>
    %382 = arith.mulf %381, %381 : vector<16x32xf32>
    %cst_136 = arith.constant dense<0.000000e+00> : vector<16xf32>
    %383 = vector.multi_reduction <add>, %382, %cst_136 [1] : vector<16x32xf32> to vector<16xf32>
    %384 = vector.shape_cast %383 : vector<16xf32> to vector<16x1xf32>
    %cst_137 = arith.constant 3.200000e+01 : f32
    %385 = vector.broadcast %cst_137 : f32 to vector<16x1xf32>
    %386 = arith.divf %384, %385 : vector<16x1xf32>
    %387 = vector.broadcast %379 : vector<16x1xf32> to vector<16x32xf32>
    %388 = arith.subf %375, %387 : vector<16x32xf32>
    %cst_138 = arith.constant 9.99999996E-13 : f32
    %389 = vector.broadcast %cst_138 : f32 to vector<16x1xf32>
    %390 = arith.addf %386, %389 : vector<16x1xf32>
    %391 = math.rsqrt %390 : vector<16x1xf32>
    %392 = vector.broadcast %391 : vector<16x1xf32> to vector<16x32xf32>
    %393 = arith.mulf %388, %392 : vector<16x32xf32>
    %394 = vector.broadcast %226 : vector<1x32xf32> to vector<16x32xf32>
    %395 = arith.mulf %393, %394 : vector<16x32xf32>
    %396 = vector.broadcast %227 : vector<1x32xf32> to vector<16x32xf32>
    %397 = arith.addf %395, %396 : vector<16x32xf32>
    %c1_139 = arith.constant 1 : index
    %c0_140 = arith.constant 0 : index
    %c0_141 = arith.constant 0 : index
    %398 = vector.load %arg5[%c1_139, %c0_140, %c0_141] : memref<2x32x64xf32, #tpu.memory_space<vmem>>, vector<1x32x64xf32>
    %399 = vector.shape_cast %398 : vector<1x32x64xf32> to vector<32x64xf32>
    %cst_142 = arith.constant dense<0.000000e+00> : vector<16x64xf32>
    %400 = tpu.matmul %397, %399, %cst_142 {dimension_numbers = #tpu.dot_dimension_numbers<[1], [0], [0], [1], [0, 0, 1, 1], [], []>} : vector<16x32xf32>, vector<32x64xf32>, vector<16x64xf32> -> vector<16x64xf32>
    %c1_143 = arith.constant 1 : index
    %c0_144 = arith.constant 0 : index
    %c0_145 = arith.constant 0 : index
    %401 = vector.load %arg6[%c1_143, %c0_144, %c0_145] : memref<2x1x64xf32, #tpu.memory_space<vmem>>, vector<1x1x64xf32>
    %402 = vector.shape_cast %401 : vector<1x1x64xf32> to vector<1x64xf32>
    %403 = vector.broadcast %402 : vector<1x64xf32> to vector<16x64xf32>
    %404 = arith.addf %400, %403 : vector<16x64xf32>
    %cst_146 = arith.constant 5.000000e-01 : f32
    %405 = vector.broadcast %cst_146 : f32 to vector<16x64xf32>
    %406 = arith.mulf %404, %405 : vector<16x64xf32>
    %cst_147 = arith.constant 1.41421354 : f32
    %407 = vector.broadcast %cst_147 : f32 to vector<16x64xf32>
    %408 = arith.divf %404, %407 : vector<16x64xf32>
    %409 = math.erf %408 : vector<16x64xf32>
    %cst_148 = arith.constant 1.000000e+00 : f32
    %410 = vector.broadcast %cst_148 : f32 to vector<16x64xf32>
    %411 = arith.addf %410, %409 : vector<16x64xf32>
    %412 = arith.mulf %406, %411 : vector<16x64xf32>
    %c1_149 = arith.constant 1 : index
    %c0_150 = arith.constant 0 : index
    %c0_151 = arith.constant 0 : index
    %413 = vector.load %arg7[%c1_149, %c0_150, %c0_151] : memref<2x64x32xf32, #tpu.memory_space<vmem>>, vector<1x64x32xf32>
    %414 = vector.shape_cast %413 : vector<1x64x32xf32> to vector<64x32xf32>
    %cst_152 = arith.constant dense<0.000000e+00> : vector<16x32xf32>
    %415 = tpu.matmul %412, %414, %cst_152 {dimension_numbers = #tpu.dot_dimension_numbers<[1], [0], [0], [1], [0, 0, 1, 1], [], []>} : vector<16x64xf32>, vector<64x32xf32>, vector<16x32xf32> -> vector<16x32xf32>
    %416 = vector.broadcast %228 : vector<1x32xf32> to vector<16x32xf32>
    %417 = arith.addf %415, %416 : vector<16x32xf32>
    %418 = arith.addf %417, %397 : vector<16x32xf32>
    %cst_153 = arith.constant dense<0.000000e+00> : vector<16xf32>
    %419 = vector.multi_reduction <add>, %418, %cst_153 [1] : vector<16x32xf32> to vector<16xf32>
    %420 = vector.shape_cast %419 : vector<16xf32> to vector<16x1xf32>
    %cst_154 = arith.constant 3.200000e+01 : f32
    %421 = vector.broadcast %cst_154 : f32 to vector<16x1xf32>
    %422 = arith.divf %420, %421 : vector<16x1xf32>
    %423 = vector.broadcast %422 : vector<16x1xf32> to vector<16x32xf32>
    %424 = arith.subf %418, %423 : vector<16x32xf32>
    %425 = arith.mulf %424, %424 : vector<16x32xf32>
    %cst_155 = arith.constant dense<0.000000e+00> : vector<16xf32>
    %426 = vector.multi_reduction <add>, %425, %cst_155 [1] : vector<16x32xf32> to vector<16xf32>
    %427 = vector.shape_cast %426 : vector<16xf32> to vector<16x1xf32>
    %cst_156 = arith.constant 3.200000e+01 : f32
    %428 = vector.broadcast %cst_156 : f32 to vector<16x1xf32>
    %429 = arith.divf %427, %428 : vector<16x1xf32>
    %430 = vector.broadcast %422 : vector<16x1xf32> to vector<16x32xf32>
    %431 = arith.subf %418, %430 : vector<16x32xf32>
    %cst_157 = arith.constant 9.99999996E-13 : f32
    %432 = vector.broadcast %cst_157 : f32 to vector<16x1xf32>
    %433 = arith.addf %429, %432 : vector<16x1xf32>
    %434 = math.rsqrt %433 : vector<16x1xf32>
    %435 = vector.broadcast %434 : vector<16x1xf32> to vector<16x32xf32>
    %436 = arith.mulf %431, %435 : vector<16x32xf32>
    %437 = vector.broadcast %229 : vector<1x32xf32> to vector<16x32xf32>
    %438 = arith.mulf %436, %437 : vector<16x32xf32>
    %439 = vector.broadcast %230 : vector<1x32xf32> to vector<16x32xf32>
    %440 = arith.addf %438, %439 : vector<16x32xf32>
    %c1_158 = arith.constant 1 : index
    %c0_159 = arith.constant 0 : index
    %c0_160 = arith.constant 0 : index
    %c0_161 = arith.constant 0 : index
    %441 = vector.load %arg9[%c1_158, %c0_159, %c0_160, %c0_161] : memref<2x1x16x32xf32, #tpu.memory_space<vmem>>, vector<1x1x16x32xf32>
    %442 = vector.shape_cast %441 : vector<1x1x16x32xf32> to vector<16x32xf32>
    %443 = vector.shape_cast %440 : vector<16x32xf32> to vector<1x1x16x32xf32>
    tpu.vector_store %arg9[%c1_158, %c0_159, %c0_160, %c0_161], %443 {strides = array<i32>} : memref<2x1x16x32xf32, #tpu.memory_space<vmem>>, vector<1x1x16x32xf32>,
    return
  }
  func.func @transform_0(%arg0: i32) -> (i32, i32, i32) {
    %c0_i32 = arith.constant 0 : i32
    %c0_i32_0 = arith.constant 0 : i32
    %c0_i32_1 = arith.constant 0 : i32
    return %arg0, %c0_i32, %c0_i32_0 : i32, i32, i32
  }
  func.func @transform_1(%arg0: i32) -> (i32, i32, i32) {
    %c0_i32 = arith.constant 0 : i32
    %c0_i32_0 = arith.constant 0 : i32
    %c0_i32_1 = arith.constant 0 : i32
    %c0_i32_2 = arith.constant 0 : i32
    return %c0_i32, %c0_i32_0, %c0_i32_1 : i32, i32, i32
  }
  func.func @transform_2(%arg0: i32) -> (i32, i32, i32) {
    %c0_i32 = arith.constant 0 : i32
    %c0_i32_0 = arith.constant 0 : i32
    %c0_i32_1 = arith.constant 0 : i32
    %c0_i32_2 = arith.constant 0 : i32
    return %c0_i32, %c0_i32_0, %c0_i32_1 : i32, i32, i32
  }
  func.func @transform_3(%arg0: i32) -> (i32, i32, i32) {
    %c0_i32 = arith.constant 0 : i32
    %c0_i32_0 = arith.constant 0 : i32
    %c0_i32_1 = arith.constant 0 : i32
    %c0_i32_2 = arith.constant 0 : i32
    return %c0_i32, %c0_i32_0, %c0_i32_1 : i32, i32, i32
  }
  func.func @transform_4(%arg0: i32) -> (i32, i32, i32) {
    %c0_i32 = arith.constant 0 : i32
    %c0_i32_0 = arith.constant 0 : i32
    %c0_i32_1 = arith.constant 0 : i32
    %c0_i32_2 = arith.constant 0 : i32
    return %c0_i32, %c0_i32_0, %c0_i32_1 : i32, i32, i32
  }
  func.func @transform_5(%arg0: i32) -> (i32, i32, i32) {
    %c0_i32 = arith.constant 0 : i32
    %c0_i32_0 = arith.constant 0 : i32
    %c0_i32_1 = arith.constant 0 : i32
    %c0_i32_2 = arith.constant 0 : i32
    return %c0_i32, %c0_i32_0, %c0_i32_1 : i32, i32, i32
  }
  func.func @transform_6(%arg0: i32) -> (i32, i32, i32) {
    %c0_i32 = arith.constant 0 : i32
    %c0_i32_0 = arith.constant 0 : i32
    %c0_i32_1 = arith.constant 0 : i32
    %c0_i32_2 = arith.constant 0 : i32
    return %c0_i32, %c0_i32_0, %c0_i32_1 : i32, i32, i32
  }
  func.func @transform_7(%arg0: i32) -> (i32, i32, i32) {
    %c0_i32 = arith.constant 0 : i32
    %c0_i32_0 = arith.constant 0 : i32
    %c0_i32_1 = arith.constant 0 : i32
    %c0_i32_2 = arith.constant 0 : i32
    return %c0_i32, %c0_i32_0, %c0_i32_1 : i32, i32, i32
  }
  func.func @transform_8(%arg0: i32) -> (i32, i32, i32, i32) {
    %c0_i32 = arith.constant 0 : i32
    %c0_i32_0 = arith.constant 0 : i32
    %c0_i32_1 = arith.constant 0 : i32
    %c0_i32_2 = arith.constant 0 : i32
    return %c0_i32, %arg0, %c0_i32_0, %c0_i32_1 : i32, i32, i32, i32
  }
}

</mosaic_0001>

<llo_original>
// kernel: tpu_custom_call.1
$region0: #{tpu_custom_call.1}
  #allocation0 [shape = 'u32[]', space=smem, size = 0x4, offset = 0x4, fixed_abs, tag = 'smem constant byte address 0x4 - core index']
  #allocation1 [shape = 'u32[144,128]{1,0:T(1,128)}', space=vmem, size = 0x12000, scoped, tag = 'internal scratch']
  #allocation6 [shape = 's32[]', space=sflag, size = 0x4, offset = 0, fixed_abs, tag = 'sflag constant byte address 0x0 - dummy sync flag']
  %s0 = inlined_call_operand.hbm [shape: f32[2,16,32], index: 0, kind: input, shape index: {}]
  %s1 = inlined_call_operand.vmem [shape: f32[2,32,96], index: 1, kind: input, shape index: {}]
  %s2 = inlined_call_operand.vmem [shape: f32[2,1,96], index: 2, kind: input, shape index: {}]
  %s3 = inlined_call_operand.vmem [shape: f32[2,32,32], index: 3, kind: input, shape index: {}]
  %s4 = inlined_call_operand.vmem [shape: f32[2,32,64], index: 4, kind: input, shape index: {}]
  %s5 = inlined_call_operand.vmem [shape: f32[2,1,64], index: 5, kind: input, shape index: {}]
  %s6 = inlined_call_operand.vmem [shape: f32[2,64,32], index: 6, kind: input, shape index: {}]
  %s7 = inlined_call_operand.vmem [shape: f32[2,6,32], index: 7, kind: input, shape index: {}]
  %s8 = inlined_call_operand.hbm [shape: f32[2,2,16,32], index: 8, kind: output, shape index: {}]
  %s9 = sld [smem:[#allocation0]]
  $region69: #{tpu_custom_call.1} parent=0
    _
  %s11 = ssub.s32 1, %s9
  %s12 = scalar_select 0, %s11, %s9
  $region1: #{tpu_custom_call.1} parent=0
    #allocation2 [shape = 'u8[16384]{0}', space=vmem, size = 0x4000, scoped, tag = 'input window, operand 0']
    #allocation3 [shape = 's32[2]{0}', space=sflag, size = 0x8, scoped, tag = 'scoped memory for tpu_custom_call.1']
    #allocation4 [shape = 's32[2]{0}', space=sflag, size = 0x8, scoped, tag = 'scoped memory for tpu_custom_call.1']
    #allocation5 [shape = 'u8[32768]{0}', space=vmem, size = 0x8000, scoped, tag = 'output window, operand 0']
    %13 = vsyncpa [#allocation3], 0
    %s14 = scalar_lea.sflag [#allocation3], 1
    %15 = vsyncpa %s14, 0
    %16 = vsyncpa [#allocation4], 0
    %s17 = scalar_lea.sflag [#allocation4], 1
    %18 = vsyncpa %s17, 0
    loop: start=0, step=1, limit=4
    $region2: #{tpu_custom_call.1} parent=1 // loop_pre_header
      _
    $region3: #{tpu_custom_call.1} parent=1 // loop_header
      %s20 = sphi 0, %s24
      %p21 = scmp.ge.s32.totalorder %s20, 4
      %s30 = sphi 0, %s32
      %s33 = sphi 0, %s30
      %s34 = sphi 0, %s33
      %s50 = sphi 0, %s34
      %s54 = sphi 0, %s54
      %s56 = sphi 0, %s54
      %s57 = sphi 0, %s56
      %s71 = sphi 0, %s57
      %s75 = sphi 0, %s75
      %s77 = sphi 0, %s75
      %s78 = sphi 0, %s77
      %s92 = sphi 0, %s78
      %s96 = sphi 0, %s96
      %s98 = sphi 0, %s96
      %s99 = sphi 0, %s98
      %s113 = sphi 0, %s99
      %s117 = sphi 0, %s117
      %s119 = sphi 0, %s117
      %s120 = sphi 0, %s119
      %s134 = sphi 0, %s120
      %s138 = sphi 0, %s138
      %s140 = sphi 0, %s138
      %s141 = sphi 0, %s140
      %s155 = sphi 0, %s141
      %s159 = sphi 0, %s159
      %s161 = sphi 0, %s159
      %s162 = sphi 0, %s161
      %s176 = sphi 0, %s162
      %s180 = sphi 0, %s180
      %s182 = sphi 0, %s180
      %s183 = sphi 0, %s182
      %s197 = sphi 0, %s183
      %s203 = sphi 0, %s205
      %s206 = sphi 0, %s203
      %s207 = sphi 0, %s206
      %s223 = sphi 0, %s207
    $region4: #{tpu_custom_call.1} parent=1 // loop_header_branch
      %23 = sbr.rel (%p21) target = $region8
    $region5: #{tpu_custom_call.1} parent=1 // loop_body
      %s25 = ssub.s32 %s20, 1
      %s26 = ssub.s32 %s20, 2
      %s27 = sadd.s32 %s20, 1
      %s28 = ssub.s32 %s20, %s27
      %p29 = scmp.eq.s32.totalorder %s28, 0
      %s31 = sadd.s32 %s30, 1
      %s32 = scalar_select %p29, %s30, %s31
      %p35 = pneg %p29
      %p36 = scmp.eq.s32.totalorder %s20, 1
      %p37 = por %p35, %p36
      %p38 = scmp.ne.s32.totalorder %s30, %s33
      %p39 = scmp.eq.s32.totalorder %s20, 0
      %p40 = por %p38, %p39
      %p41 = scmp.ne.s32.totalorder %s30, %s33
      %p42 = scmp.eq.s32.totalorder %s25, 1
      %p43 = por %p41, %p42
      %p44 = scmp.ne.s32.totalorder %s33, %s34
      %p45 = scmp.eq.s32.totalorder %s25, 0
      %p46 = por %p44, %p45
      %p47 = scmp.ne.s32.totalorder %s33, %s34
      %p48 = scmp.eq.s32.totalorder %s26, 1
      %p49 = por %p47, %p48
      %p51 = scmp.ne.s32.totalorder %s34, %s50
      %p52 = scmp.eq.s32.totalorder %s26, 0
      %p53 = por %p51, %p52
      %s55 = sadd.s32 %s54, 1
      %p58 = scmp.eq.s32.totalorder %s20, 1
      %p59 = scmp.ne.s32.totalorder %s54, %s56
      %p60 = scmp.eq.s32.totalorder %s20, 0
      %p61 = por %p59, %p60
      %p62 = scmp.ne.s32.totalorder %s54, %s56
      %p63 = scmp.eq.s32.totalorder %s25, 1
      %p64 = por %p62, %p63
      %p65 = scmp.ne.s32.totalorder %s56, %s57
      %p66 = scmp.eq.s32.totalorder %s25, 0
      %p67 = por %p65, %p66
      %p68 = scmp.ne.s32.totalorder %s56, %s57
      %p69 = scmp.eq.s32.totalorder %s26, 1
      %p70 = por %p68, %p69
      %p72 = scmp.ne.s32.totalorder %s57, %s71
      %p73 = scmp.eq.s32.totalorder %s26, 0
      %p74 = por %p72, %p73
      %s76 = sadd.s32 %s75, 1
      %p79 = scmp.eq.s32.totalorder %s20, 1
      %p80 = scmp.ne.s32.totalorder %s75, %s77
      %p81 = scmp.eq.s32.totalorder %s20, 0
      %p82 = por %p80, %p81
      %p83 = scmp.ne.s32.totalorder %s75, %s77
      %p84 = scmp.eq.s32.totalorder %s25, 1
      %p85 = por %p83, %p84
      %p86 = scmp.ne.s32.totalorder %s77, %s78
      %p87 = scmp.eq.s32.totalorder %s25, 0
      %p88 = por %p86, %p87
      %p89 = scmp.ne.s32.totalorder %s77, %s78
      %p90 = scmp.eq.s32.totalorder %s26, 1
      %p91 = por %p89, %p90
      %p93 = scmp.ne.s32.totalorder %s78, %s92
      %p94 = scmp.eq.s32.totalorder %s26, 0
      %p95 = por %p93, %p94
      %s97 = sadd.s32 %s96, 1
      %p100 = scmp.eq.s32.totalorder %s20, 1
      %p101 = scmp.ne.s32.totalorder %s96, %s98
      %p102 = scmp.eq.s32.totalorder %s20, 0
      %p103 = por %p101, %p102
      %p104 = scmp.ne.s32.totalorder %s96, %s98
      %p105 = scmp.eq.s32.totalorder %s25, 1
      %p106 = por %p104, %p105
      %p107 = scmp.ne.s32.totalorder %s98, %s99
      %p108 = scmp.eq.s32.totalorder %s25, 0
      %p109 = por %p107, %p108
      %p110 = scmp.ne.s32.totalorder %s98, %s99
      %p111 = scmp.eq.s32.totalorder %s26, 1
      %p112 = por %p110, %p111
      %p114 = scmp.ne.s32.totalorder %s99, %s113
      %p115 = scmp.eq.s32.totalorder %s26, 0
      %p116 = por %p114, %p115
      %s118 = sadd.s32 %s117, 1
      %p121 = scmp.eq.s32.totalorder %s20, 1
      %p122 = scmp.ne.s32.totalorder %s117, %s119
      %p123 = scmp.eq.s32.totalorder %s20, 0
      %p124 = por %p122, %p123
      %p125 = scmp.ne.s32.totalorder %s117, %s119
      %p126 = scmp.eq.s32.totalorder %s25, 1
      %p127 = por %p125, %p126
      %p128 = scmp.ne.s32.totalorder %s119, %s120
      %p129 = scmp.eq.s32.totalorder %s25, 0
      %p130 = por %p128, %p129
      %p131 = scmp.ne.s32.totalorder %s119, %s120
      %p132 = scmp.eq.s32.totalorder %s26, 1
      %p133 = por %p131, %p132
      %p135 = scmp.ne.s32.totalorder %s120, %s134
      %p136 = scmp.eq.s32.totalorder %s26, 0
      %p137 = por %p135, %p136
      %s139 = sadd.s32 %s138, 1
      %p142 = scmp.eq.s32.totalorder %s20, 1
      %p143 = scmp.ne.s32.totalorder %s138, %s140
      %p144 = scmp.eq.s32.totalorder %s20, 0
      %p145 = por %p143, %p144
      %p146 = scmp.ne.s32.totalorder %s138, %s140
      %p147 = scmp.eq.s32.totalorder %s25, 1
      %p148 = por %p146, %p147
      %p149 = scmp.ne.s32.totalorder %s140, %s141
      %p150 = scmp.eq.s32.totalorder %s25, 0
      %p151 = por %p149, %p150
      %p152 = scmp.ne.s32.totalorder %s140, %s141
      %p153 = scmp.eq.s32.totalorder %s26, 1
      %p154 = por %p152, %p153
      %p156 = scmp.ne.s32.totalorder %s141, %s155
      %p157 = scmp.eq.s32.totalorder %s26, 0
      %p158 = por %p156, %p157
      %s160 = sadd.s32 %s159, 1
      %p163 = scmp.eq.s32.totalorder %s20, 1
      %p164 = scmp.ne.s32.totalorder %s159, %s161
      %p165 = scmp.eq.s32.totalorder %s20, 0
      %p166 = por %p164, %p165
      %p167 = scmp.ne.s32.totalorder %s159, %s161
      %p168 = scmp.eq.s32.totalorder %s25, 1
      %p169 = por %p167, %p168
      %p170 = scmp.ne.s32.totalorder %s161, %s162
      %p171 = scmp.eq.s32.totalorder %s25, 0
      %p172 = por %p170, %p171
      %p173 = scmp.ne.s32.totalorder %s161, %s162
      %p174 = scmp.eq.s32.totalorder %s26, 1
      %p175 = por %p173, %p174
      %p177 = scmp.ne.s32.totalorder %s162, %s176
      %p178 = scmp.eq.s32.totalorder %s26, 0
      %p179 = por %p177, %p178
      %s181 = sadd.s32 %s180, 1
      %p184 = scmp.eq.s32.totalorder %s20, 1
      %p185 = scmp.ne.s32.totalorder %s180, %s182
      %p186 = scmp.eq.s32.totalorder %s20, 0
      %p187 = por %p185, %p186
      %p188 = scmp.ne.s32.totalorder %s180, %s182
      %p189 = scmp.eq.s32.totalorder %s25, 1
      %p190 = por %p188, %p189
      %p191 = scmp.ne.s32.totalorder %s182, %s183
      %p192 = scmp.eq.s32.totalorder %s25, 0
      %p193 = por %p191, %p192
      %p194 = scmp.ne.s32.totalorder %s182, %s183
      %p195 = scmp.eq.s32.totalorder %s26, 1
      %p196 = por %p194, %p195
      %p198 = scmp.ne.s32.totalorder %s183, %s197
      %p199 = scmp.eq.s32.totalorder %s26, 0
      %p200 = por %p198, %p199
      %s201 = ssub.s32 %s20, %s27
      %p202 = scmp.eq.s32.totalorder %s201, 0
      %s204 = sadd.s32 %s203, 1
      %s205 = scalar_select %p202, %s203, %s204
      %p208 = pneg %p202
      %p209 = scmp.eq.s32.totalorder %s20, 1
      %p210 = por %p208, %p209
      %p211 = scmp.ne.s32.totalorder %s203, %s206
      %p212 = scmp.eq.s32.totalorder %s20, 0
      %p213 = por %p211, %p212
      %p214 = scmp.ne.s32.totalorder %s203, %s206
      %p215 = scmp.eq.s32.totalorder %s25, 1
      %p216 = por %p214, %p215
      %p217 = scmp.ne.s32.totalorder %s206, %s207
      %p218 = scmp.eq.s32.totalorder %s25, 0
      %p219 = por %p217, %p218
      %p220 = scmp.ne.s32.totalorder %s206, %s207
      %p221 = scmp.eq.s32.totalorder %s26, 1
      %p222 = por %p220, %p221
      %p224 = scmp.ne.s32.totalorder %s207, %s223
      %p225 = scmp.eq.s32.totalorder %s26, 0
      %p226 = por %p224, %p225
      %p227 = scmp.le.s32.totalorder 1, %s20
      %p228 = scmp.lt.s32.totalorder %s20, 3
      %p229 = pnand %p227, %p228
      %p230 = pneg %p229
      // Predicated region
      $region9: #{tpu_custom_call.1} parent=5 // pred_check
        _
      $region10: #{tpu_custom_call.1} parent=5 // pred_check_branch
        %232 = sbr.rel (%p229) target = $region12
      $region11: #{tpu_custom_call.1} parent=5 // pred_region
        %s233 = ssub.s32 %s20, 1
        // Predicated region
        $region13: #{tpu_custom_call.1} parent=11 // pred_check
          %p234 = pneg %p67
        $region14: #{tpu_custom_call.1} parent=11 // pred_check_branch
          %236 = sbr.rel (%p234) target = $region16
        $region15: #{tpu_custom_call.1} parent=11 // pred_region
          _
        $region16: #{tpu_custom_call.1} parent=11 // pred_fallthru
          _
        // Predicated region
        $region17: #{tpu_custom_call.1} parent=11 // pred_check
          %p237 = pneg %p88
        $region18: #{tpu_custom_call.1} parent=11 // pred_check_branch
          %239 = sbr.rel (%p237) target = $region20
        $region19: #{tpu_custom_call.1} parent=11 // pred_region
          _
        $region20: #{tpu_custom_call.1} parent=11 // pred_fallthru
          _
        // Predicated region
        $region21: #{tpu_custom_call.1} parent=11 // pred_check
          %p240 = pneg %p109
        $region22: #{tpu_custom_call.1} parent=11 // pred_check_branch
          %242 = sbr.rel (%p240) target = $region24
        $region23: #{tpu_custom_call.1} parent=11 // pred_region
          _
        $region24: #{tpu_custom_call.1} parent=11 // pred_fallthru
          _
        // Predicated region
        $region25: #{tpu_custom_call.1} parent=11 // pred_check
          %p243 = pneg %p130
        $region26: #{tpu_custom_call.1} parent=11 // pred_check_branch
          %245 = sbr.rel (%p243) target = $region28
        $region27: #{tpu_custom_call.1} parent=11 // pred_region
          _
        $region28: #{tpu_custom_call.1} parent=11 // pred_fallthru
          _
        // Predicated region
        $region29: #{tpu_custom_call.1} parent=11 // pred_check
          %p246 = pneg %p151
        $region30: #{tpu_custom_call.1} parent=11 // pred_check_branch
          %248 = sbr.rel (%p246) target = $region32
        $region31: #{tpu_custom_call.1} parent=11 // pred_region
          _
        $region32: #{tpu_custom_call.1} parent=11 // pred_fallthru
          _
        // Predicated region
        $region33: #{tpu_custom_call.1} parent=11 // pred_check
          %p249 = pneg %p172
        $region34: #{tpu_custom_call.1} parent=11 // pred_check_branch
          %251 = sbr.rel (%p249) target = $region36
        $region35: #{tpu_custom_call.1} parent=11 // pred_region
          _
        $region36: #{tpu_custom_call.1} parent=11 // pred_fallthru
          _
        // Predicated region
        $region37: #{tpu_custom_call.1} parent=11 // pred_check
          %p252 = pneg %p193
        $region38: #{tpu_custom_call.1} parent=11 // pred_check_branch
          %254 = sbr.rel (%p252) target = $region40
        $region39: #{tpu_custom_call.1} parent=11 // pred_region
          _
        $region40: #{tpu_custom_call.1} parent=11 // pred_fallthru
          _
      $region12: #{tpu_custom_call.1} parent=5 // pred_fallthru
        _
      %p255 = scmp.lt.s32.totalorder %s20, 2
      // Predicated region
      $region41: #{tpu_custom_call.1} parent=5 // pred_check
        %p256 = pneg %p255
      $region42: #{tpu_custom_call.1} parent=5 // pred_check_branch
        %258 = sbr.rel (%p256) target = $region44
      $region43: #{tpu_custom_call.1} parent=5 // pred_region
        // Predicated region
        $region45: #{tpu_custom_call.1} parent=43 // pred_check
          %p259 = pneg %p40
        $region46: #{tpu_custom_call.1} parent=43 // pred_check_branch
          %261 = sbr.rel (%p259) target = $region48
        $region47: #{tpu_custom_call.1} parent=43 // pred_region
          %s262 = sand.u32 %s30, 1
          %s263 = scalar_lea.sflag [#allocation3], %s262
          %s264 = sand.u32 %s30, 1
          %s265 = smul.addr %s264, 16
          %s266 = scalar_lea.vmem [#allocation2], %s265
          %s268 = ssub.s32 256, 256
          %269 = vsyncadd %s263, %s268
          %s270 = smul.addr %s20, 2
          %s271 = smul.addr %s270, 128
          %s272 = scalar_lea.hbm %s0, %s271
          %s273 = sshll.u32 %s266, 4
          %s274 = int_to_ptr.vmem [resolvable:$true] %s273
          %279 = dma.hbm_to_vmem [thread:$0]  %s272, 256, %s274, %s263, 128, 128, 8
        $region48: #{tpu_custom_call.1} parent=43 // pred_fallthru
          _
      $region44: #{tpu_custom_call.1} parent=5 // pred_fallthru
        _
      %p280 = scmp.le.s32.totalorder 1, %s20
      %p281 = scmp.lt.s32.totalorder %s20, 3
      %p282 = pnand %p280, %p281
      %p283 = pneg %p282
      // Predicated region
      $region49: #{tpu_custom_call.1} parent=5 // pred_check
        _
      $region50: #{tpu_custom_call.1} parent=5 // pred_check_branch
        %285 = sbr.rel (%p282) target = $region52
      $region51: #{tpu_custom_call.1} parent=5 // pred_region
        %s286 = ssub.s32 %s20, 1
        %s287 = sand.u32 %s33, 1
        %s288 = scalar_lea.sflag [#allocation3], %s287
        %s289 = sand.u32 %s33, 1
        %s290 = smul.addr %s289, 16
        %s291 = scalar_lea.vmem [#allocation2], %s290
        // Predicated region
        $region53: #{tpu_custom_call.1} parent=51 // pred_check
          %p292 = pneg %p46
        $region54: #{tpu_custom_call.1} parent=51 // pred_check_branch
          %294 = sbr.rel (%p292) target = $region56
        $region55: #{tpu_custom_call.1} parent=51 // pred_region
          %295 = dma.done %s288, 256
        $region56: #{tpu_custom_call.1} parent=51 // pred_fallthru
          _
        %s296 = sand.u32 %s33, 1
        %s297 = scalar_lea.sflag [#allocation3], %s296
        %s298 = sand.u32 %s33, 1
        %s299 = smul.addr %s298, 16
        %s300 = scalar_lea.vmem [#allocation2], %s299
        %p301 = pneg %p46
        %p302 = pneg %p43
        %p303 = pneg %p67
        %p304 = pneg %p64
        %p305 = pneg %p88
        %p306 = pneg %p85
        %p307 = pneg %p109
        %p308 = pneg %p106
        %p309 = pneg %p130
        %p310 = pneg %p127
        %p311 = pneg %p151
        %p312 = pneg %p148
        %p313 = pneg %p172
        %p314 = pneg %p169
        %p315 = pneg %p193
        %p316 = pneg %p190
        %p317 = pneg %p219
        %p318 = pneg %p216
        %s319 = sand.u32 %s206, 1
        %s320 = scalar_lea.sflag [#allocation4], %s319
        %s321 = sand.u32 %s206, 1
        %s322 = smul.addr %s321, 32
        %s323 = scalar_lea.vmem [#allocation5], %s322
        %v324 = vld [vmem:[%s291] sm:$0xff]
        %v325 = vld [vmem:[%s291 + $0x8] sm:$0xff]
        %v326 = vld [vmem:[%s7] sm:$0x3f]
        %v327 = vld [vmem:[%s1] sm:$0xff]
        %v328 = vld [vmem:[%s1 + $0x8] sm:$0xff]
        %v329 = vld [vmem:[%s1 + $0x10] sm:$0xff]
        %v330 = vld [vmem:[%s1 + $0x18] sm:$0xff]
        %v331 = vld [vmem:[%s2] sm:$0x1]
        %v333 = vlaneseq
        %v334 = vshrl.u32 %v333, 7
        %v335 = vsub.s32 0, %v334
        %v336 = vrot.slane %v331, %v335
        %vm338 = vcmask 261120
        %v340 = vsel %vm338, %v324, 0
        %v343 = vsel %vm338, %v325, 0
        %345 = vmatprep.subr.mxu0 0.0
        %346 = vmatpush1.msra.mxu0 %v327
        %347 = vmatprep.subr.mxu0 0.0
        %348 = vmatpush1.msra.mxu0 %v328
        %349 = vmatprep.subr.mxu0 0.0
        %350 = vmatpush1.msra.mxu0 %v329
        %351 = vmatprep.subr.mxu0 0.0
        %352 = vmatpush1.msra.mxu0 %v330
        %353 = vmatprep.subr.mxu0 0.0
        %354 = vmatpush1.msra.mxu0 0.0
        %355 = vmatprep.subr.mxu0 0.0
        %356 = vmatpush1.msra.mxu0 0.0
        %357 = vmatprep.subr.mxu0 0.0
        %358 = vmatpush1.msra.mxu0 0.0
        %359 = vmatprep.subr.mxu0 0.0
        %360 = vmatpush1.msra.mxu0 0.0
        %361 = vmatprep.subr.mxu0 0.0
        %362 = vmatpush1.msra.mxu0 0.0
        %363 = vmatprep.subr.mxu0 0.0
        %364 = vmatpush1.msra.mxu0 0.0
        %365 = vmatprep.subr.mxu0 0.0
        %366 = vmatpush1.msra.mxu0 0.0
        %367 = vmatprep.subr.mxu0 0.0
        %368 = vmatpush1.msra.mxu0 0.0
        %369 = vmatprep.subr.mxu0 0.0
        %370 = vmatpush1.msra.mxu0 0.0
        %371 = vmatprep.subr.mxu0 0.0
        %372 = vmatpush1.msra.mxu0 0.0
        %373 = vmatprep.subr.mxu0 0.0
        %374 = vmatpush1.msra.mxu0 0.0
        %375 = vmatprep.subr.mxu0 0.0
        %376 = vmatpush1.msra.mxu0 0.0
        %377 = vmatprep.subr.mxu0 0.0
        %378 = vmatpush1.msra.mxu0 0.0
        %379 = vmatprep.subr.mxu0 0.0
        %380 = vmatpush1.msra.mxu0 0.0
        %381 = vmatprep.subr.mxu0 0.0
        %382 = vmatpush1.msra.mxu0 0.0
        %383 = vmatprep.subr.mxu0 0.0
        %384 = vmatpush1.msra.mxu0 0.0
        %385 = vmatprep.subr.mxu0 0.0
        %386 = vmatpush1.msra.mxu0 0.0
        %387 = vmatprep.subr.mxu0 0.0
        %388 = vmatpush1.msra.mxu0 0.0
        %389 = vmatprep.subr.mxu0 0.0
        %390 = vmatpush1.msra.mxu0 0.0
        %391 = vmatprep.subr.mxu0 0.0
        %392 = vmatpush1.msra.mxu0 0.0
        %393 = vmatprep.subr.mxu0 0.0
        %394 = vmatpush1.msra.mxu0 0.0
        %395 = vmatprep.subr.mxu0 0.0
        %396 = vmatpush1.msra.mxu0 0.0
        %397 = vmatprep.subr.mxu0 0.0
        %398 = vmatpush1.msra.mxu0 0.0
        %399 = vmatprep.subr.mxu0 0.0
        %400 = vmatpush1.msra.mxu0 0.0
        %401 = vmatprep.subr.mxu0 0.0
        %402 = vmatpush1.msra.mxu0 0.0
        %403 = vmatprep.subr.mxu0 0.0
        %404 = vmatpush1.msra.mxu0 0.0
        %405 = vmatprep.subr.mxu0 0.0
        %406 = vmatpush1.msra.mxu0 0.0
        %407 = vmatprep.subr.mxu0 0.0
        %408 = vmatpush1.msra.mxu0 0.0
        %409 = vmatprep.mubr.f32.mxu0 0.0
        %410 = vmatmul.mubr.f32.gmra.mrb[0].mxu0 %v340
        %v411 = vpop.f32.mrb[0].mxu0
        %v412 = vadd.f32 %v336, %v411
        %v413 = vpop.f32.mrb[0].mxu0
        %414 = vmatprep.mubr.f32.mxu0 0.0
        %415 = vmatmul.mubr.f32.gmra.mrb[0].mxu0 %v343
        %v416 = vpop.f32.mrb[0].mxu0
        %v417 = vadd.f32 %v336, %v416
        %v418 = vpop.f32.mrb[0].mxu0
        %419 = vdwg.mxu0
        %v420 = vld [vmem:[%s3] sm:$0xff]
        %v421 = vld [vmem:[%s3 + $0x8] sm:$0xff]
        %v422 = vld [vmem:[%s3 + $0x10] sm:$0xff]
        %v423 = vld [vmem:[%s3 + $0x18] sm:$0xff]
        %425 = vrot.lane.b32.xlu0 %v412, 96
        %v426 = vpop.permute.xlu0 %425
        %vm427 = vcmask 130048
        %v428 = vsel %vm427, %v412, 0
        %v430 = vsel %vm427, %v426, 0
        %432 = vmatprep.subr.mxu0 0.0
        %433 = vmatpush1.xpose.msra.mxu0 %v430
        %434 = vmatprep.subr.mxu0 0.0
        %435 = vmatpush1.xpose.msra.mxu0 0.0
        %436 = vmatprep.subr.mxu0 0.0
        %437 = vmatpush1.xpose.msra.mxu0 0.0
        %438 = vmatprep.subr.mxu0 0.0
        %439 = vmatpush1.xpose.msra.mxu0 0.0
        %440 = vmatprep.subr.mxu0 0.0
        %441 = vmatpush1.xpose.msra.mxu0 0.0
        %442 = vmatprep.subr.mxu0 0.0
        %443 = vmatpush1.xpose.msra.mxu0 0.0
        %444 = vmatprep.subr.mxu0 0.0
        %445 = vmatpush1.xpose.msra.mxu0 0.0
        %446 = vmatprep.subr.mxu0 0.0
        %447 = vmatpush1.xpose.msra.mxu0 0.0
        %448 = vmatprep.subr.mxu0 0.0
        %449 = vmatpush1.xpose.msra.mxu0 0.0
        %450 = vmatprep.subr.mxu0 0.0
        %451 = vmatpush1.xpose.msra.mxu0 0.0
        %452 = vmatprep.subr.mxu0 0.0
        %453 = vmatpush1.xpose.msra.mxu0 0.0
        %454 = vmatprep.subr.mxu0 0.0
        %455 = vmatpush1.xpose.msra.mxu0 0.0
        %456 = vmatprep.subr.mxu0 0.0
        %457 = vmatpush1.xpose.msra.mxu0 0.0
        %458 = vmatprep.subr.mxu0 0.0
        %459 = vmatpush1.xpose.msra.mxu0 0.0
        %460 = vmatprep.subr.mxu0 0.0
        %461 = vmatpush1.xpose.msra.mxu0 0.0
        %462 = vmatprep.subr.mxu0 0.0
        %463 = vmatpush1.xpose.msra.mxu0 0.0
        %464 = vmatprep.subr.mxu0 0.0
        %465 = vmatpush1.xpose.msra.mxu0 0.0
        %466 = vmatprep.subr.mxu0 0.0
        %467 = vmatpush1.xpose.msra.mxu0 0.0
        %468 = vmatprep.subr.mxu0 0.0
        %469 = vmatpush1.xpose.msra.mxu0 0.0
        %470 = vmatprep.subr.mxu0 0.0
        %471 = vmatpush1.xpose.msra.mxu0 0.0
        %472 = vmatprep.subr.mxu0 0.0
        %473 = vmatpush1.xpose.msra.mxu0 0.0
        %474 = vmatprep.subr.mxu0 0.0
        %475 = vmatpush1.xpose.msra.mxu0 0.0
        %476 = vmatprep.subr.mxu0 0.0
        %477 = vmatpush1.xpose.msra.mxu0 0.0
        %478 = vmatprep.subr.mxu0 0.0
        %479 = vmatpush1.xpose.msra.mxu0 0.0
        %480 = vmatprep.subr.mxu0 0.0
        %481 = vmatpush1.xpose.msra.mxu0 0.0
        %482 = vmatprep.subr.mxu0 0.0
        %483 = vmatpush1.xpose.msra.mxu0 0.0
        %484 = vmatprep.subr.mxu0 0.0
        %485 = vmatpush1.xpose.msra.mxu0 0.0
        %486 = vmatprep.subr.mxu0 0.0
        %487 = vmatpush1.xpose.msra.mxu0 0.0
        %488 = vmatprep.subr.mxu0 0.0
        %489 = vmatpush1.xpose.msra.mxu0 0.0
        %490 = vmatprep.subr.mxu0 0.0
        %491 = vmatpush1.xpose.msra.mxu0 0.0
        %492 = vmatprep.subr.mxu0 0.0
        %493 = vmatpush1.xpose.msra.mxu0 0.0
        %494 = vmatprep.subr.mxu0 0.0
        %495 = vmatpush1.xpose.msra.mxu0 0.0
        %496 = vmatprep.mubr.f32.mxu0 0.0
        %497 = vmatmul.mubr.f32.gmra.mrb[0].mxu0 %v428
        %v498 = vpop.f32.mrb[0].mxu0
        %v499 = vadd.f32 0.0, %v498
        %v500 = vpop.f32.mrb[0].mxu0
        %501 = vdwg.mxu0
        %vm502 = vcmask 44032
        %v503 = vsel %vm502, %v499, -inf
        %504 = vmax.xlane.f32.xlu0 %v503
        %v505 = vpop.xlane.xlu0 %504
        %v506 = vsub.f32 %v499, %v505
        %v507 = vmul.f32 %v506, 1.442695
        %v508 = vpow.pop %v507
        %v509 = vsel %vm502, %v508, 0.0
        %510 = vadd.xlane.f32.xlu0 %v509
        %v511 = vpop.xlane.xlu0 %510
        %v512 = vrcp.pop %v511
        %v513 = vmul.f32 %v508, %v512
        %514 = vrot.lane.b32.xlu0 %v412, 64
        %v515 = vpop.permute.xlu0 %514
        %vm516 = vcmask 48128
        %v518 = vsel %vm516, %v513, 0
        %vm520 = vcmask 1045504
        %v521 = vsel %vm520, %v515, 0
        %523 = vmatprep.subr.mxu0 0.0
        %524 = vmatpush1.msra.mxu0 %v521
        %525 = vmatprep.subr.mxu0 0.0
        %526 = vmatpush1.msra.mxu0 0.0
        %527 = vmatprep.subr.mxu0 0.0
        %528 = vmatpush1.msra.mxu0 0.0
        %529 = vmatprep.subr.mxu0 0.0
        %530 = vmatpush1.msra.mxu0 0.0
        %531 = vmatprep.subr.mxu0 0.0
        %532 = vmatpush1.msra.mxu0 0.0
        %533 = vmatprep.subr.mxu0 0.0
        %534 = vmatpush1.msra.mxu0 0.0
        %535 = vmatprep.subr.mxu0 0.0
        %536 = vmatpush1.msra.mxu0 0.0
        %537 = vmatprep.subr.mxu0 0.0
        %538 = vmatpush1.msra.mxu0 0.0
        %539 = vmatprep.subr.mxu0 0.0
        %540 = vmatpush1.msra.mxu0 0.0
        %541 = vmatprep.subr.mxu0 0.0
        %542 = vmatpush1.msra.mxu0 0.0
        %543 = vmatprep.subr.mxu0 0.0
        %544 = vmatpush1.msra.mxu0 0.0
        %545 = vmatprep.subr.mxu0 0.0
        %546 = vmatpush1.msra.mxu0 0.0
        %547 = vmatprep.subr.mxu0 0.0
        %548 = vmatpush1.msra.mxu0 0.0
        %549 = vmatprep.subr.mxu0 0.0
        %550 = vmatpush1.msra.mxu0 0.0
        %551 = vmatprep.subr.mxu0 0.0
        %552 = vmatpush1.msra.mxu0 0.0
        %553 = vmatprep.subr.mxu0 0.0
        %554 = vmatpush1.msra.mxu0 0.0
        %555 = vmatprep.subr.mxu0 0.0
        %556 = vmatpush1.msra.mxu0 0.0
        %557 = vmatprep.subr.mxu0 0.0
        %558 = vmatpush1.msra.mxu0 0.0
        %559 = vmatprep.subr.mxu0 0.0
        %560 = vmatpush1.msra.mxu0 0.0
        %561 = vmatprep.subr.mxu0 0.0
        %562 = vmatpush1.msra.mxu0 0.0
        %563 = vmatprep.subr.mxu0 0.0
        %564 = vmatpush1.msra.mxu0 0.0
        %565 = vmatprep.subr.mxu0 0.0
        %566 = vmatpush1.msra.mxu0 0.0
        %567 = vmatprep.subr.mxu0 0.0
        %568 = vmatpush1.msra.mxu0 0.0
        %569 = vmatprep.subr.mxu0 0.0
        %570 = vmatpush1.msra.mxu0 0.0
        %571 = vmatprep.subr.mxu0 0.0
        %572 = vmatpush1.msra.mxu0 0.0
        %573 = vmatprep.subr.mxu0 0.0
        %574 = vmatpush1.msra.mxu0 0.0
        %575 = vmatprep.subr.mxu0 0.0
        %576 = vmatpush1.msra.mxu0 0.0
        %577 = vmatprep.subr.mxu0 0.0
        %578 = vmatpush1.msra.mxu0 0.0
        %579 = vmatprep.subr.mxu0 0.0
        %580 = vmatpush1.msra.mxu0 0.0
        %581 = vmatprep.subr.mxu0 0.0
        %582 = vmatpush1.msra.mxu0 0.0
        %583 = vmatprep.subr.mxu0 0.0
        %584 = vmatpush1.msra.mxu0 0.0
        %585 = vmatprep.subr.mxu0 0.0
        %586 = vmatpush1.msra.mxu0 0.0
        %587 = vmatprep.mubr.f32.mxu0 0.0
        %588 = vmatmul.mubr.f32.gmra.mrb[0].mxu0 %v518
        %v589 = vpop.f32.mrb[0].mxu0
        %v590 = vadd.f32 0.0, %v589
        %v591 = vpop.f32.mrb[0].mxu0
        %592 = vdwg.mxu0
        %593 = vrot.lane.b32.xlu0 %v412, 112
        %v594 = vpop.permute.xlu0 %593
        %595 = vrot.lane.b32.xlu0 %v412, 80
        %v596 = vpop.permute.xlu0 %595
        %v597 = vsel %vm427, %v594, 0
        %v599 = vsel %vm427, %v596, 0
        %601 = vmatprep.subr.mxu0 0.0
        %602 = vmatpush1.xpose.msra.mxu0 %v599
        %603 = vmatprep.subr.mxu0 0.0
        %604 = vmatpush1.xpose.msra.mxu0 0.0
        %605 = vmatprep.subr.mxu0 0.0
        %606 = vmatpush1.xpose.msra.mxu0 0.0
        %607 = vmatprep.subr.mxu0 0.0
        %608 = vmatpush1.xpose.msra.mxu0 0.0
        %609 = vmatprep.subr.mxu0 0.0
        %610 = vmatpush1.xpose.msra.mxu0 0.0
        %611 = vmatprep.subr.mxu0 0.0
        %612 = vmatpush1.xpose.msra.mxu0 0.0
        %613 = vmatprep.subr.mxu0 0.0
        %614 = vmatpush1.xpose.msra.mxu0 0.0
        %615 = vmatprep.subr.mxu0 0.0
        %616 = vmatpush1.xpose.msra.mxu0 0.0
        %617 = vmatprep.subr.mxu0 0.0
        %618 = vmatpush1.xpose.msra.mxu0 0.0
        %619 = vmatprep.subr.mxu0 0.0
        %620 = vmatpush1.xpose.msra.mxu0 0.0
        %621 = vmatprep.subr.mxu0 0.0
        %622 = vmatpush1.xpose.msra.mxu0 0.0
        %623 = vmatprep.subr.mxu0 0.0
        %624 = vmatpush1.xpose.msra.mxu0 0.0
        %625 = vmatprep.subr.mxu0 0.0
        %626 = vmatpush1.xpose.msra.mxu0 0.0
        %627 = vmatprep.subr.mxu0 0.0
        %628 = vmatpush1.xpose.msra.mxu0 0.0
        %629 = vmatprep.subr.mxu0 0.0
        %630 = vmatpush1.xpose.msra.mxu0 0.0
        %631 = vmatprep.subr.mxu0 0.0
        %632 = vmatpush1.xpose.msra.mxu0 0.0
        %633 = vmatprep.subr.mxu0 0.0
        %634 = vmatpush1.xpose.msra.mxu0 0.0
        %635 = vmatprep.subr.mxu0 0.0
        %636 = vmatpush1.xpose.msra.mxu0 0.0
        %637 = vmatprep.subr.mxu0 0.0
        %638 = vmatpush1.xpose.msra.mxu0 0.0
        %639 = vmatprep.subr.mxu0 0.0
        %640 = vmatpush1.xpose.msra.mxu0 0.0
        %641 = vmatprep.subr.mxu0 0.0
        %642 = vmatpush1.xpose.msra.mxu0 0.0
        %643 = vmatprep.subr.mxu0 0.0
        %644 = vmatpush1.xpose.msra.mxu0 0.0
        %645 = vmatprep.subr.mxu0 0.0
        %646 = vmatpush1.xpose.msra.mxu0 0.0
        %647 = vmatprep.subr.mxu0 0.0
        %648 = vmatpush1.xpose.msra.mxu0 0.0
        %649 = vmatprep.subr.mxu0 0.0
        %650 = vmatpush1.xpose.msra.mxu0 0.0
        %651 = vmatprep.subr.mxu0 0.0
        %652 = vmatpush1.xpose.msra.mxu0 0.0
        %653 = vmatprep.subr.mxu0 0.0
        %654 = vmatpush1.xpose.msra.mxu0 0.0
        %655 = vmatprep.subr.mxu0 0.0
        %656 = vmatpush1.xpose.msra.mxu0 0.0
        %657 = vmatprep.subr.mxu0 0.0
        %658 = vmatpush1.xpose.msra.mxu0 0.0
        %659 = vmatprep.subr.mxu0 0.0
        %660 = vmatpush1.xpose.msra.mxu0 0.0
        %661 = vmatprep.subr.mxu0 0.0
        %662 = vmatpush1.xpose.msra.mxu0 0.0
        %663 = vmatprep.subr.mxu0 0.0
        %664 = vmatpush1.xpose.msra.mxu0 0.0
        %665 = vmatprep.mubr.f32.mxu0 0.0
        %666 = vmatmul.mubr.f32.gmra.mrb[0].mxu0 %v597
        %v667 = vpop.f32.mrb[0].mxu0
        %v668 = vadd.f32 0.0, %v667
        %v669 = vpop.f32.mrb[0].mxu0
        %670 = vdwg.mxu0
        %v671 = vsel %vm502, %v668, -inf
        %672 = vmax.xlane.f32.xlu0 %v671
        %v673 = vpop.xlane.xlu0 %672
        %v674 = vsub.f32 %v668, %v673
        %v675 = vmul.f32 %v674, 1.442695
        %v676 = vpow.pop %v675
        %v677 = vsel %vm502, %v676, 0.0
        %678 = vadd.xlane.f32.xlu0 %v677
        %v679 = vpop.xlane.xlu0 %678
        %v680 = vrcp.pop %v679
        %v681 = vmul.f32 %v676, %v680
        %682 = vrot.lane.b32.xlu0 %v412, 48
        %v683 = vpop.permute.xlu0 %682
        %v685 = vsel %vm516, %v681, 0
        %v687 = vsel %vm520, %v683, 0
        %689 = vmatprep.subr.mxu0 0.0
        %690 = vmatpush1.msra.mxu0 %v687
        %691 = vmatprep.subr.mxu0 0.0
        %692 = vmatpush1.msra.mxu0 0.0
        %693 = vmatprep.subr.mxu0 0.0
        %694 = vmatpush1.msra.mxu0 0.0
        %695 = vmatprep.subr.mxu0 0.0
        %696 = vmatpush1.msra.mxu0 0.0
        %697 = vmatprep.subr.mxu0 0.0
        %698 = vmatpush1.msra.mxu0 0.0
        %699 = vmatprep.subr.mxu0 0.0
        %700 = vmatpush1.msra.mxu0 0.0
        %701 = vmatprep.subr.mxu0 0.0
        %702 = vmatpush1.msra.mxu0 0.0
        %703 = vmatprep.subr.mxu0 0.0
        %704 = vmatpush1.msra.mxu0 0.0
        %705 = vmatprep.subr.mxu0 0.0
        %706 = vmatpush1.msra.mxu0 0.0
        %707 = vmatprep.subr.mxu0 0.0
        %708 = vmatpush1.msra.mxu0 0.0
        %709 = vmatprep.subr.mxu0 0.0
        %710 = vmatpush1.msra.mxu0 0.0
        %711 = vmatprep.subr.mxu0 0.0
        %712 = vmatpush1.msra.mxu0 0.0
        %713 = vmatprep.subr.mxu0 0.0
        %714 = vmatpush1.msra.mxu0 0.0
        %715 = vmatprep.subr.mxu0 0.0
        %716 = vmatpush1.msra.mxu0 0.0
        %717 = vmatprep.subr.mxu0 0.0
        %718 = vmatpush1.msra.mxu0 0.0
        %719 = vmatprep.subr.mxu0 0.0
        %720 = vmatpush1.msra.mxu0 0.0
        %721 = vmatprep.subr.mxu0 0.0
        %722 = vmatpush1.msra.mxu0 0.0
        %723 = vmatprep.subr.mxu0 0.0
        %724 = vmatpush1.msra.mxu0 0.0
        %725 = vmatprep.subr.mxu0 0.0
        %726 = vmatpush1.msra.mxu0 0.0
        %727 = vmatprep.subr.mxu0 0.0
        %728 = vmatpush1.msra.mxu0 0.0
        %729 = vmatprep.subr.mxu0 0.0
        %730 = vmatpush1.msra.mxu0 0.0
        %731 = vmatprep.subr.mxu0 0.0
        %732 = vmatpush1.msra.mxu0 0.0
        %733 = vmatprep.subr.mxu0 0.0
        %734 = vmatpush1.msra.mxu0 0.0
        %735 = vmatprep.subr.mxu0 0.0
        %736 = vmatpush1.msra.mxu0 0.0
        %737 = vmatprep.subr.mxu0 0.0
        %738 = vmatpush1.msra.mxu0 0.0
        %739 = vmatprep.subr.mxu0 0.0
        %740 = vmatpush1.msra.mxu0 0.0
        %741 = vmatprep.subr.mxu0 0.0
        %742 = vmatpush1.msra.mxu0 0.0
        %743 = vmatprep.subr.mxu0 0.0
        %744 = vmatpush1.msra.mxu0 0.0
        %745 = vmatprep.subr.mxu0 0.0
        %746 = vmatpush1.msra.mxu0 0.0
        %747 = vmatprep.subr.mxu0 0.0
        %748 = vmatpush1.msra.mxu0 0.0
        %749 = vmatprep.subr.mxu0 0.0
        %750 = vmatpush1.msra.mxu0 0.0
        %751 = vmatprep.subr.mxu0 0.0
        %752 = vmatpush1.msra.mxu0 0.0
        %753 = vmatprep.mubr.f32.mxu0 0.0
        %754 = vmatmul.mubr.f32.gmra.mrb[0].mxu0 %v685
        %v755 = vpop.f32.mrb[0].mxu0
        %v756 = vadd.f32 0.0, %v755
        %v757 = vpop.f32.mrb[0].mxu0
        %758 = vdwg.mxu0
        %v760 = vsel %vm427, %v756, 0
        %762 = vmatprep.subr.mxu0 0.0
        %763 = vmatpush1.msra.mxu0 %v422
        %764 = vmatprep.subr.mxu0 0.0
        %765 = vmatpush1.msra.mxu0 %v423
        %766 = vmatprep.subr.mxu0 0.0
        %767 = vmatpush1.msra.mxu0 0.0
        %768 = vmatprep.subr.mxu0 0.0
        %769 = vmatpush1.msra.mxu0 0.0
        %770 = vmatprep.subr.mxu0 0.0
        %771 = vmatpush1.msra.mxu0 0.0
        %772 = vmatprep.subr.mxu0 0.0
        %773 = vmatpush1.msra.mxu0 0.0
        %774 = vmatprep.subr.mxu0 0.0
        %775 = vmatpush1.msra.mxu0 0.0
        %776 = vmatprep.subr.mxu0 0.0
        %777 = vmatpush1.msra.mxu0 0.0
        %778 = vmatprep.subr.mxu0 0.0
        %779 = vmatpush1.msra.mxu0 0.0
        %780 = vmatprep.subr.mxu0 0.0
        %781 = vmatpush1.msra.mxu0 0.0
        %782 = vmatprep.subr.mxu0 0.0
        %783 = vmatpush1.msra.mxu0 0.0
        %784 = vmatprep.subr.mxu0 0.0
        %785 = vmatpush1.msra.mxu0 0.0
        %786 = vmatprep.subr.mxu0 0.0
        %787 = vmatpush1.msra.mxu0 0.0
        %788 = vmatprep.subr.mxu0 0.0
        %789 = vmatpush1.msra.mxu0 0.0
        %790 = vmatprep.subr.mxu0 0.0
        %791 = vmatpush1.msra.mxu0 0.0
        %792 = vmatprep.subr.mxu0 0.0
        %793 = vmatpush1.msra.mxu0 0.0
        %794 = vmatprep.subr.mxu0 0.0
        %795 = vmatpush1.msra.mxu0 0.0
        %796 = vmatprep.subr.mxu0 0.0
        %797 = vmatpush1.msra.mxu0 0.0
        %798 = vmatprep.subr.mxu0 0.0
        %799 = vmatpush1.msra.mxu0 0.0
        %800 = vmatprep.subr.mxu0 0.0
        %801 = vmatpush1.msra.mxu0 0.0
        %802 = vmatprep.subr.mxu0 0.0
        %803 = vmatpush1.msra.mxu0 0.0
        %804 = vmatprep.subr.mxu0 0.0
        %805 = vmatpush1.msra.mxu0 0.0
        %806 = vmatprep.subr.mxu0 0.0
        %807 = vmatpush1.msra.mxu0 0.0
        %808 = vmatprep.subr.mxu0 0.0
        %809 = vmatpush1.msra.mxu0 0.0
        %810 = vmatprep.subr.mxu0 0.0
        %811 = vmatpush1.msra.mxu0 0.0
        %812 = vmatprep.subr.mxu0 0.0
        %813 = vmatpush1.msra.mxu0 0.0
        %814 = vmatprep.subr.mxu0 0.0
        %815 = vmatpush1.msra.mxu0 0.0
        %816 = vmatprep.subr.mxu0 0.0
        %817 = vmatpush1.msra.mxu0 0.0
        %818 = vmatprep.subr.mxu0 0.0
        %819 = vmatpush1.msra.mxu0 0.0
        %820 = vmatprep.subr.mxu0 0.0
        %821 = vmatpush1.msra.mxu0 0.0
        %822 = vmatprep.subr.mxu0 0.0
        %823 = vmatpush1.msra.mxu0 0.0
        %824 = vmatprep.subr.mxu0 0.0
        %825 = vmatpush1.msra.mxu0 0.0
        %826 = vmatprep.mubr.f32.mxu0 0.0
        %827 = vmatmul.mubr.f32.gmra.mrb[0].mxu0 %v760
        %v828 = vpop.f32.mrb[0].mxu0
        %v829 = vadd.f32 0.0, %v828
        %v830 = vpop.f32.mrb[0].mxu0
        %831 = vdwg.mxu0
        %v833 = vsel %vm427, %v590, 0
        %835 = vmatprep.subr.mxu0 0.0
        %836 = vmatpush1.msra.mxu0 %v420
        %837 = vmatprep.subr.mxu0 0.0
        %838 = vmatpush1.msra.mxu0 %v421
        %839 = vmatprep.subr.mxu0 0.0
        %840 = vmatpush1.msra.mxu0 0.0
        %841 = vmatprep.subr.mxu0 0.0
        %842 = vmatpush1.msra.mxu0 0.0
        %843 = vmatprep.subr.mxu0 0.0
        %844 = vmatpush1.msra.mxu0 0.0
        %845 = vmatprep.subr.mxu0 0.0
        %846 = vmatpush1.msra.mxu0 0.0
        %847 = vmatprep.subr.mxu0 0.0
        %848 = vmatpush1.msra.mxu0 0.0
        %849 = vmatprep.subr.mxu0 0.0
        %850 = vmatpush1.msra.mxu0 0.0
        %851 = vmatprep.subr.mxu0 0.0
        %852 = vmatpush1.msra.mxu0 0.0
        %853 = vmatprep.subr.mxu0 0.0
        %854 = vmatpush1.msra.mxu0 0.0
        %855 = vmatprep.subr.mxu0 0.0
        %856 = vmatpush1.msra.mxu0 0.0
        %857 = vmatprep.subr.mxu0 0.0
        %858 = vmatpush1.msra.mxu0 0.0
        %859 = vmatprep.subr.mxu0 0.0
        %860 = vmatpush1.msra.mxu0 0.0
        %861 = vmatprep.subr.mxu0 0.0
        %862 = vmatpush1.msra.mxu0 0.0
        %863 = vmatprep.subr.mxu0 0.0
        %864 = vmatpush1.msra.mxu0 0.0
        %865 = vmatprep.subr.mxu0 0.0
        %866 = vmatpush1.msra.mxu0 0.0
        %867 = vmatprep.subr.mxu0 0.0
        %868 = vmatpush1.msra.mxu0 0.0
        %869 = vmatprep.subr.mxu0 0.0
        %870 = vmatpush1.msra.mxu0 0.0
        %871 = vmatprep.subr.mxu0 0.0
        %872 = vmatpush1.msra.mxu0 0.0
        %873 = vmatprep.subr.mxu0 0.0
        %874 = vmatpush1.msra.mxu0 0.0
        %875 = vmatprep.subr.mxu0 0.0
        %876 = vmatpush1.msra.mxu0 0.0
        %877 = vmatprep.subr.mxu0 0.0
        %878 = vmatpush1.msra.mxu0 0.0
        %879 = vmatprep.subr.mxu0 0.0
        %880 = vmatpush1.msra.mxu0 0.0
        %881 = vmatprep.subr.mxu0 0.0
        %882 = vmatpush1.msra.mxu0 0.0
        %883 = vmatprep.subr.mxu0 0.0
        %884 = vmatpush1.msra.mxu0 0.0
        %885 = vmatprep.subr.mxu0 0.0
        %886 = vmatpush1.msra.mxu0 0.0
        %887 = vmatprep.subr.mxu0 0.0
        %888 = vmatpush1.msra.mxu0 0.0
        %889 = vmatprep.subr.mxu0 0.0
        %890 = vmatpush1.msra.mxu0 0.0
        %891 = vmatprep.subr.mxu0 0.0
        %892 = vmatpush1.msra.mxu0 0.0
        %893 = vmatprep.subr.mxu0 0.0
        %894 = vmatpush1.msra.mxu0 0.0
        %895 = vmatprep.subr.mxu0 0.0
        %896 = vmatpush1.msra.mxu0 0.0
        %897 = vmatprep.subr.mxu0 0.0
        %898 = vmatpush1.msra.mxu0 0.0
        %899 = vmatprep.mubr.f32.mxu0 0.0
        %900 = vmatmul.mubr.f32.gmra.mrb[0].mxu0 %v833
        %v901 = vpop.f32.mrb[0].mxu0
        %v902 = vadd.f32 %v829, %v901
        %v903 = vpop.f32.mrb[0].mxu0
        %904 = vdwg.mxu0
        %v905 = vrot.slane %v412, 4
        %v907 = vrot.slane %v412, 2
        %v908 = vrot.slane %v417, 2
        %v909 = vsel %vm520, %v907, %v908
        %910 = vrot.lane.b32.xlu0 %v909, 96
        %v911 = vpop.permute.xlu0 %910
        %v912 = vsel %vm427, %v905, 0
        %v914 = vsel %vm427, %v911, 0
        %916 = vmatprep.subr.mxu0 0.0
        %917 = vmatpush1.xpose.msra.mxu0 %v914
        %918 = vmatprep.subr.mxu0 0.0
        %919 = vmatpush1.xpose.msra.mxu0 0.0
        %920 = vmatprep.subr.mxu0 0.0
        %921 = vmatpush1.xpose.msra.mxu0 0.0
        %922 = vmatprep.subr.mxu0 0.0
        %923 = vmatpush1.xpose.msra.mxu0 0.0
        %924 = vmatprep.subr.mxu0 0.0
        %925 = vmatpush1.xpose.msra.mxu0 0.0
        %926 = vmatprep.subr.mxu0 0.0
        %927 = vmatpush1.xpose.msra.mxu0 0.0
        %928 = vmatprep.subr.mxu0 0.0
        %929 = vmatpush1.xpose.msra.mxu0 0.0
        %930 = vmatprep.subr.mxu0 0.0
        %931 = vmatpush1.xpose.msra.mxu0 0.0
        %932 = vmatprep.subr.mxu0 0.0
        %933 = vmatpush1.xpose.msra.mxu0 0.0
        %934 = vmatprep.subr.mxu0 0.0
        %935 = vmatpush1.xpose.msra.mxu0 0.0
        %936 = vmatprep.subr.mxu0 0.0
        %937 = vmatpush1.xpose.msra.mxu0 0.0
        %938 = vmatprep.subr.mxu0 0.0
        %939 = vmatpush1.xpose.msra.mxu0 0.0
        %940 = vmatprep.subr.mxu0 0.0
        %941 = vmatpush1.xpose.msra.mxu0 0.0
        %942 = vmatprep.subr.mxu0 0.0
        %943 = vmatpush1.xpose.msra.mxu0 0.0
        %944 = vmatprep.subr.mxu0 0.0
        %945 = vmatpush1.xpose.msra.mxu0 0.0
        %946 = vmatprep.subr.mxu0 0.0
        %947 = vmatpush1.xpose.msra.mxu0 0.0
        %948 = vmatprep.subr.mxu0 0.0
        %949 = vmatpush1.xpose.msra.mxu0 0.0
        %950 = vmatprep.subr.mxu0 0.0
        %951 = vmatpush1.xpose.msra.mxu0 0.0
        %952 = vmatprep.subr.mxu0 0.0
        %953 = vmatpush1.xpose.msra.mxu0 0.0
        %954 = vmatprep.subr.mxu0 0.0
        %955 = vmatpush1.xpose.msra.mxu0 0.0
        %956 = vmatprep.subr.mxu0 0.0
        %957 = vmatpush1.xpose.msra.mxu0 0.0
        %958 = vmatprep.subr.mxu0 0.0
        %959 = vmatpush1.xpose.msra.mxu0 0.0
        %960 = vmatprep.subr.mxu0 0.0
        %961 = vmatpush1.xpose.msra.mxu0 0.0
        %962 = vmatprep.subr.mxu0 0.0
        %963 = vmatpush1.xpose.msra.mxu0 0.0
        %964 = vmatprep.subr.mxu0 0.0
        %965 = vmatpush1.xpose.msra.mxu0 0.0
        %966 = vmatprep.subr.mxu0 0.0
        %967 = vmatpush1.xpose.msra.mxu0 0.0
        %968 = vmatprep.subr.mxu0 0.0
        %969 = vmatpush1.xpose.msra.mxu0 0.0
        %970 = vmatprep.subr.mxu0 0.0
        %971 = vmatpush1.xpose.msra.mxu0 0.0
        %972 = vmatprep.subr.mxu0 0.0
        %973 = vmatpush1.xpose.msra.mxu0 0.0
        %974 = vmatprep.subr.mxu0 0.0
        %975 = vmatpush1.xpose.msra.mxu0 0.0
        %976 = vmatprep.subr.mxu0 0.0
        %977 = vmatpush1.xpose.msra.mxu0 0.0
        %978 = vmatprep.subr.mxu0 0.0
        %979 = vmatpush1.xpose.msra.mxu0 0.0
        %980 = vmatprep.mubr.f32.mxu0 0.0
        %981 = vmatmul.mubr.f32.gmra.mrb[0].mxu0 %v912
        %v982 = vpop.f32.mrb[0].mxu0
        %v983 = vadd.f32 0.0, %v982
        %v984 = vpop.f32.mrb[0].mxu0
        %985 = vdwg.mxu0
        %vm986 = vcmask 60416
        %v987 = vsel %vm986, %v983, -inf
        %988 = vmax.xlane.f32.xlu0 %v987
        %v989 = vpop.xlane.xlu0 %988
        %v990 = vsub.f32 %v983, %v989
        %v991 = vmul.f32 %v990, 1.442695
        %v992 = vpow.pop %v991
        %v993 = vsel %vm986, %v992, 0.0
        %994 = vadd.xlane.f32.xlu0 %v993
        %v995 = vpop.xlane.xlu0 %994
        %v996 = vrcp.pop %v995
        %v997 = vmul.f32 %v992, %v996
        %998 = vrot.lane.b32.xlu0 %v909, 64
        %v999 = vpop.permute.xlu0 %998
        %vm1001 = vcmask 64512
        %v1003 = vsel %vm1001, %v997, 0
        %1005 = vmatprep.subr.mxu0 0.0
        %1006 = vmatpush1.msra.mxu0 %v999
        %1007 = vmatprep.subr.mxu0 0.0
        %1008 = vmatpush1.msra.mxu0 0.0
        %1009 = vmatprep.subr.mxu0 0.0
        %1010 = vmatpush1.msra.mxu0 0.0
        %1011 = vmatprep.subr.mxu0 0.0
        %1012 = vmatpush1.msra.mxu0 0.0
        %1013 = vmatprep.subr.mxu0 0.0
        %1014 = vmatpush1.msra.mxu0 0.0
        %1015 = vmatprep.subr.mxu0 0.0
        %1016 = vmatpush1.msra.mxu0 0.0
        %1017 = vmatprep.subr.mxu0 0.0
        %1018 = vmatpush1.msra.mxu0 0.0
        %1019 = vmatprep.subr.mxu0 0.0
        %1020 = vmatpush1.msra.mxu0 0.0
        %1021 = vmatprep.subr.mxu0 0.0
        %1022 = vmatpush1.msra.mxu0 0.0
        %1023 = vmatprep.subr.mxu0 0.0
        %1024 = vmatpush1.msra.mxu0 0.0
        %1025 = vmatprep.subr.mxu0 0.0
        %1026 = vmatpush1.msra.mxu0 0.0
        %1027 = vmatprep.subr.mxu0 0.0
        %1028 = vmatpush1.msra.mxu0 0.0
        %1029 = vmatprep.subr.mxu0 0.0
        %1030 = vmatpush1.msra.mxu0 0.0
        %1031 = vmatprep.subr.mxu0 0.0
        %1032 = vmatpush1.msra.mxu0 0.0
        %1033 = vmatprep.subr.mxu0 0.0
        %1034 = vmatpush1.msra.mxu0 0.0
        %1035 = vmatprep.subr.mxu0 0.0
        %1036 = vmatpush1.msra.mxu0 0.0
        %1037 = vmatprep.subr.mxu0 0.0
        %1038 = vmatpush1.msra.mxu0 0.0
        %1039 = vmatprep.subr.mxu0 0.0
        %1040 = vmatpush1.msra.mxu0 0.0
        %1041 = vmatprep.subr.mxu0 0.0
        %1042 = vmatpush1.msra.mxu0 0.0
        %1043 = vmatprep.subr.mxu0 0.0
        %1044 = vmatpush1.msra.mxu0 0.0
        %1045 = vmatprep.subr.mxu0 0.0
        %1046 = vmatpush1.msra.mxu0 0.0
        %1047 = vmatprep.subr.mxu0 0.0
        %1048 = vmatpush1.msra.mxu0 0.0
        %1049 = vmatprep.subr.mxu0 0.0
        %1050 = vmatpush1.msra.mxu0 0.0
        %1051 = vmatprep.subr.mxu0 0.0
        %1052 = vmatpush1.msra.mxu0 0.0
        %1053 = vmatprep.subr.mxu0 0.0
        %1054 = vmatpush1.msra.mxu0 0.0
        %1055 = vmatprep.subr.mxu0 0.0
        %1056 = vmatpush1.msra.mxu0 0.0
        %1057 = vmatprep.subr.mxu0 0.0
        %1058 = vmatpush1.msra.mxu0 0.0
        %1059 = vmatprep.subr.mxu0 0.0
        %1060 = vmatpush1.msra.mxu0 0.0
        %1061 = vmatprep.subr.mxu0 0.0
        %1062 = vmatpush1.msra.mxu0 0.0
        %1063 = vmatprep.subr.mxu0 0.0
        %1064 = vmatpush1.msra.mxu0 0.0
        %1065 = vmatprep.subr.mxu0 0.0
        %1066 = vmatpush1.msra.mxu0 0.0
        %1067 = vmatprep.subr.mxu0 0.0
        %1068 = vmatpush1.msra.mxu0 0.0
        %1069 = vmatprep.mubr.f32.mxu0 0.0
        %1070 = vmatmul.mubr.f32.gmra.mrb[0].mxu0 %v1003
        %v1071 = vpop.f32.mrb[0].mxu0
        %v1072 = vadd.f32 0.0, %v1071
        %v1073 = vpop.f32.mrb[0].mxu0
        %1074 = vdwg.mxu0
        %1075 = vrot.lane.b32.xlu0 %v905, 112
        %v1076 = vpop.permute.xlu0 %1075
        %1077 = vrot.lane.b32.xlu0 %v909, 80
        %v1078 = vpop.permute.xlu0 %1077
        %v1079 = vsel %vm427, %v1076, 0
        %v1081 = vsel %vm427, %v1078, 0
        %1083 = vmatprep.subr.mxu0 0.0
        %1084 = vmatpush1.xpose.msra.mxu0 %v1081
        %1085 = vmatprep.subr.mxu0 0.0
        %1086 = vmatpush1.xpose.msra.mxu0 0.0
        %1087 = vmatprep.subr.mxu0 0.0
        %1088 = vmatpush1.xpose.msra.mxu0 0.0
        %1089 = vmatprep.subr.mxu0 0.0
        %1090 = vmatpush1.xpose.msra.mxu0 0.0
        %1091 = vmatprep.subr.mxu0 0.0
        %1092 = vmatpush1.xpose.msra.mxu0 0.0
        %1093 = vmatprep.subr.mxu0 0.0
        %1094 = vmatpush1.xpose.msra.mxu0 0.0
        %1095 = vmatprep.subr.mxu0 0.0
        %1096 = vmatpush1.xpose.msra.mxu0 0.0
        %1097 = vmatprep.subr.mxu0 0.0
        %1098 = vmatpush1.xpose.msra.mxu0 0.0
        %1099 = vmatprep.subr.mxu0 0.0
        %1100 = vmatpush1.xpose.msra.mxu0 0.0
        %1101 = vmatprep.subr.mxu0 0.0
        %1102 = vmatpush1.xpose.msra.mxu0 0.0
        %1103 = vmatprep.subr.mxu0 0.0
        %1104 = vmatpush1.xpose.msra.mxu0 0.0
        %1105 = vmatprep.subr.mxu0 0.0
        %1106 = vmatpush1.xpose.msra.mxu0 0.0
        %1107 = vmatprep.subr.mxu0 0.0
        %1108 = vmatpush1.xpose.msra.mxu0 0.0
        %1109 = vmatprep.subr.mxu0 0.0
        %1110 = vmatpush1.xpose.msra.mxu0 0.0
        %1111 = vmatprep.subr.mxu0 0.0
        %1112 = vmatpush1.xpose.msra.mxu0 0.0
        %1113 = vmatprep.subr.mxu0 0.0
        %1114 = vmatpush1.xpose.msra.mxu0 0.0
        %1115 = vmatprep.subr.mxu0 0.0
        %1116 = vmatpush1.xpose.msra.mxu0 0.0
        %1117 = vmatprep.subr.mxu0 0.0
        %1118 = vmatpush1.xpose.msra.mxu0 0.0
        %1119 = vmatprep.subr.mxu0 0.0
        %1120 = vmatpush1.xpose.msra.mxu0 0.0
        %1121 = vmatprep.subr.mxu0 0.0
        %1122 = vmatpush1.xpose.msra.mxu0 0.0
        %1123 = vmatprep.subr.mxu0 0.0
        %1124 = vmatpush1.xpose.msra.mxu0 0.0
        %1125 = vmatprep.subr.mxu0 0.0
        %1126 = vmatpush1.xpose.msra.mxu0 0.0
        %1127 = vmatprep.subr.mxu0 0.0
        %1128 = vmatpush1.xpose.msra.mxu0 0.0
        %1129 = vmatprep.subr.mxu0 0.0
        %1130 = vmatpush1.xpose.msra.mxu0 0.0
        %1131 = vmatprep.subr.mxu0 0.0
        %1132 = vmatpush1.xpose.msra.mxu0 0.0
        %1133 = vmatprep.subr.mxu0 0.0
        %1134 = vmatpush1.xpose.msra.mxu0 0.0
        %1135 = vmatprep.subr.mxu0 0.0
        %1136 = vmatpush1.xpose.msra.mxu0 0.0
        %1137 = vmatprep.subr.mxu0 0.0
        %1138 = vmatpush1.xpose.msra.mxu0 0.0
        %1139 = vmatprep.subr.mxu0 0.0
        %1140 = vmatpush1.xpose.msra.mxu0 0.0
        %1141 = vmatprep.subr.mxu0 0.0
        %1142 = vmatpush1.xpose.msra.mxu0 0.0
        %1143 = vmatprep.subr.mxu0 0.0
        %1144 = vmatpush1.xpose.msra.mxu0 0.0
        %1145 = vmatprep.subr.mxu0 0.0
        %1146 = vmatpush1.xpose.msra.mxu0 0.0
        %1147 = vmatprep.mubr.f32.mxu0 0.0
        %1148 = vmatmul.mubr.f32.gmra.mrb[0].mxu0 %v1079
        %v1149 = vpop.f32.mrb[0].mxu0
        %v1150 = vadd.f32 0.0, %v1149
        %v1151 = vpop.f32.mrb[0].mxu0
        %1152 = vdwg.mxu0
        %v1153 = vsel %vm986, %v1150, -inf
        %1154 = vmax.xlane.f32.xlu0 %v1153
        %v1155 = vpop.xlane.xlu0 %1154
        %v1156 = vsub.f32 %v1150, %v1155
        %v1157 = vmul.f32 %v1156, 1.442695
        %v1158 = vpow.pop %v1157
        %v1159 = vsel %vm986, %v1158, 0.0
        %1160 = vadd.xlane.f32.xlu0 %v1159
        %v1161 = vpop.xlane.xlu0 %1160
        %v1162 = vrcp.pop %v1161
        %v1163 = vmul.f32 %v1158, %v1162
        %1164 = vrot.lane.b32.xlu0 %v909, 48
        %v1165 = vpop.permute.xlu0 %1164
        %v1168 = vsel %vm1001, %v1163, 0
        %1170 = vmatprep.subr.mxu0 0.0
        %1171 = vmatpush1.msra.mxu0 %v1165
        %1172 = vmatprep.subr.mxu0 0.0
        %1173 = vmatpush1.msra.mxu0 0.0
        %1174 = vmatprep.subr.mxu0 0.0
        %1175 = vmatpush1.msra.mxu0 0.0
        %1176 = vmatprep.subr.mxu0 0.0
        %1177 = vmatpush1.msra.mxu0 0.0
        %1178 = vmatprep.subr.mxu0 0.0
        %1179 = vmatpush1.msra.mxu0 0.0
        %1180 = vmatprep.subr.mxu0 0.0
        %1181 = vmatpush1.msra.mxu0 0.0
        %1182 = vmatprep.subr.mxu0 0.0
        %1183 = vmatpush1.msra.mxu0 0.0
        %1184 = vmatprep.subr.mxu0 0.0
        %1185 = vmatpush1.msra.mxu0 0.0
        %1186 = vmatprep.subr.mxu0 0.0
        %1187 = vmatpush1.msra.mxu0 0.0
        %1188 = vmatprep.subr.mxu0 0.0
        %1189 = vmatpush1.msra.mxu0 0.0
        %1190 = vmatprep.subr.mxu0 0.0
        %1191 = vmatpush1.msra.mxu0 0.0
        %1192 = vmatprep.subr.mxu0 0.0
        %1193 = vmatpush1.msra.mxu0 0.0
        %1194 = vmatprep.subr.mxu0 0.0
        %1195 = vmatpush1.msra.mxu0 0.0
        %1196 = vmatprep.subr.mxu0 0.0
        %1197 = vmatpush1.msra.mxu0 0.0
        %1198 = vmatprep.subr.mxu0 0.0
        %1199 = vmatpush1.msra.mxu0 0.0
        %1200 = vmatprep.subr.mxu0 0.0
        %1201 = vmatpush1.msra.mxu0 0.0
        %1202 = vmatprep.subr.mxu0 0.0
        %1203 = vmatpush1.msra.mxu0 0.0
        %1204 = vmatprep.subr.mxu0 0.0
        %1205 = vmatpush1.msra.mxu0 0.0
        %1206 = vmatprep.subr.mxu0 0.0
        %1207 = vmatpush1.msra.mxu0 0.0
        %1208 = vmatprep.subr.mxu0 0.0
        %1209 = vmatpush1.msra.mxu0 0.0
        %1210 = vmatprep.subr.mxu0 0.0
        %1211 = vmatpush1.msra.mxu0 0.0
        %1212 = vmatprep.subr.mxu0 0.0
        %1213 = vmatpush1.msra.mxu0 0.0
        %1214 = vmatprep.subr.mxu0 0.0
        %1215 = vmatpush1.msra.mxu0 0.0
        %1216 = vmatprep.subr.mxu0 0.0
        %1217 = vmatpush1.msra.mxu0 0.0
        %1218 = vmatprep.subr.mxu0 0.0
        %1219 = vmatpush1.msra.mxu0 0.0
        %1220 = vmatprep.subr.mxu0 0.0
        %1221 = vmatpush1.msra.mxu0 0.0
        %1222 = vmatprep.subr.mxu0 0.0
        %1223 = vmatpush1.msra.mxu0 0.0
        %1224 = vmatprep.subr.mxu0 0.0
        %1225 = vmatpush1.msra.mxu0 0.0
        %1226 = vmatprep.subr.mxu0 0.0
        %1227 = vmatpush1.msra.mxu0 0.0
        %1228 = vmatprep.subr.mxu0 0.0
        %1229 = vmatpush1.msra.mxu0 0.0
        %1230 = vmatprep.subr.mxu0 0.0
        %1231 = vmatpush1.msra.mxu0 0.0
        %1232 = vmatprep.subr.mxu0 0.0
        %1233 = vmatpush1.msra.mxu0 0.0
        %1234 = vmatprep.mubr.f32.mxu0 0.0
        %1235 = vmatmul.mubr.f32.gmra.mrb[0].mxu0 %v1168
        %v1236 = vpop.f32.mrb[0].mxu0
        %v1237 = vadd.f32 0.0, %v1236
        %v1238 = vpop.f32.mrb[0].mxu0
        %1239 = vdwg.mxu0
        %v1241 = vsel %vm427, %v1237, 0
        %1243 = vmatprep.subr.mxu0 0.0
        %1244 = vmatpush1.msra.mxu0 %v422
        %1245 = vmatprep.subr.mxu0 0.0
        %1246 = vmatpush1.msra.mxu0 %v423
        %1247 = vmatprep.subr.mxu0 0.0
        %1248 = vmatpush1.msra.mxu0 0.0
        %1249 = vmatprep.subr.mxu0 0.0
        %1250 = vmatpush1.msra.mxu0 0.0
        %1251 = vmatprep.subr.mxu0 0.0
        %1252 = vmatpush1.msra.mxu0 0.0
        %1253 = vmatprep.subr.mxu0 0.0
        %1254 = vmatpush1.msra.mxu0 0.0
        %1255 = vmatprep.subr.mxu0 0.0
        %1256 = vmatpush1.msra.mxu0 0.0
        %1257 = vmatprep.subr.mxu0 0.0
        %1258 = vmatpush1.msra.mxu0 0.0
        %1259 = vmatprep.subr.mxu0 0.0
        %1260 = vmatpush1.msra.mxu0 0.0
        %1261 = vmatprep.subr.mxu0 0.0
        %1262 = vmatpush1.msra.mxu0 0.0
        %1263 = vmatprep.subr.mxu0 0.0
        %1264 = vmatpush1.msra.mxu0 0.0
        %1265 = vmatprep.subr.mxu0 0.0
        %1266 = vmatpush1.msra.mxu0 0.0
        %1267 = vmatprep.subr.mxu0 0.0
        %1268 = vmatpush1.msra.mxu0 0.0
        %1269 = vmatprep.subr.mxu0 0.0
        %1270 = vmatpush1.msra.mxu0 0.0
        %1271 = vmatprep.subr.mxu0 0.0
        %1272 = vmatpush1.msra.mxu0 0.0
        %1273 = vmatprep.subr.mxu0 0.0
        %1274 = vmatpush1.msra.mxu0 0.0
        %1275 = vmatprep.subr.mxu0 0.0
        %1276 = vmatpush1.msra.mxu0 0.0
        %1277 = vmatprep.subr.mxu0 0.0
        %1278 = vmatpush1.msra.mxu0 0.0
        %1279 = vmatprep.subr.mxu0 0.0
        %1280 = vmatpush1.msra.mxu0 0.0
        %1281 = vmatprep.subr.mxu0 0.0
        %1282 = vmatpush1.msra.mxu0 0.0
        %1283 = vmatprep.subr.mxu0 0.0
        %1284 = vmatpush1.msra.mxu0 0.0
        %1285 = vmatprep.subr.mxu0 0.0
        %1286 = vmatpush1.msra.mxu0 0.0
        %1287 = vmatprep.subr.mxu0 0.0
        %1288 = vmatpush1.msra.mxu0 0.0
        %1289 = vmatprep.subr.mxu0 0.0
        %1290 = vmatpush1.msra.mxu0 0.0
        %1291 = vmatprep.subr.mxu0 0.0
        %1292 = vmatpush1.msra.mxu0 0.0
        %1293 = vmatprep.subr.mxu0 0.0
        %1294 = vmatpush1.msra.mxu0 0.0
        %1295 = vmatprep.subr.mxu0 0.0
        %1296 = vmatpush1.msra.mxu0 0.0
        %1297 = vmatprep.subr.mxu0 0.0
        %1298 = vmatpush1.msra.mxu0 0.0
        %1299 = vmatprep.subr.mxu0 0.0
        %1300 = vmatpush1.msra.mxu0 0.0
        %1301 = vmatprep.subr.mxu0 0.0
        %1302 = vmatpush1.msra.mxu0 0.0
        %1303 = vmatprep.subr.mxu0 0.0
        %1304 = vmatpush1.msra.mxu0 0.0
        %1305 = vmatprep.subr.mxu0 0.0
        %1306 = vmatpush1.msra.mxu0 0.0
        %1307 = vmatprep.mubr.f32.mxu0 0.0
        %1308 = vmatmul.mubr.f32.gmra.mrb[0].mxu0 %v1241
        %v1309 = vpop.f32.mrb[0].mxu0
        %v1310 = vadd.f32 0.0, %v1309
        %v1311 = vpop.f32.mrb[0].mxu0
        %1312 = vdwg.mxu0
        %v1314 = vsel %vm427, %v1072, 0
        %1316 = vmatprep.subr.mxu0 0.0
        %1317 = vmatpush1.msra.mxu0 %v420
        %1318 = vmatprep.subr.mxu0 0.0
        %1319 = vmatpush1.msra.mxu0 %v421
        %1320 = vmatprep.subr.mxu0 0.0
        %1321 = vmatpush1.msra.mxu0 0.0
        %1322 = vmatprep.subr.mxu0 0.0
        %1323 = vmatpush1.msra.mxu0 0.0
        %1324 = vmatprep.subr.mxu0 0.0
        %1325 = vmatpush1.msra.mxu0 0.0
        %1326 = vmatprep.subr.mxu0 0.0
        %1327 = vmatpush1.msra.mxu0 0.0
        %1328 = vmatprep.subr.mxu0 0.0
        %1329 = vmatpush1.msra.mxu0 0.0
        %1330 = vmatprep.subr.mxu0 0.0
        %1331 = vmatpush1.msra.mxu0 0.0
        %1332 = vmatprep.subr.mxu0 0.0
        %1333 = vmatpush1.msra.mxu0 0.0
        %1334 = vmatprep.subr.mxu0 0.0
        %1335 = vmatpush1.msra.mxu0 0.0
        %1336 = vmatprep.subr.mxu0 0.0
        %1337 = vmatpush1.msra.mxu0 0.0
        %1338 = vmatprep.subr.mxu0 0.0
        %1339 = vmatpush1.msra.mxu0 0.0
        %1340 = vmatprep.subr.mxu0 0.0
        %1341 = vmatpush1.msra.mxu0 0.0
        %1342 = vmatprep.subr.mxu0 0.0
        %1343 = vmatpush1.msra.mxu0 0.0
        %1344 = vmatprep.subr.mxu0 0.0
        %1345 = vmatpush1.msra.mxu0 0.0
        %1346 = vmatprep.subr.mxu0 0.0
        %1347 = vmatpush1.msra.mxu0 0.0
        %1348 = vmatprep.subr.mxu0 0.0
        %1349 = vmatpush1.msra.mxu0 0.0
        %1350 = vmatprep.subr.mxu0 0.0
        %1351 = vmatpush1.msra.mxu0 0.0
        %1352 = vmatprep.subr.mxu0 0.0
        %1353 = vmatpush1.msra.mxu0 0.0
        %1354 = vmatprep.subr.mxu0 0.0
        %1355 = vmatpush1.msra.mxu0 0.0
        %1356 = vmatprep.subr.mxu0 0.0
        %1357 = vmatpush1.msra.mxu0 0.0
        %1358 = vmatprep.subr.mxu0 0.0
        %1359 = vmatpush1.msra.mxu0 0.0
        %1360 = vmatprep.subr.mxu0 0.0
        %1361 = vmatpush1.msra.mxu0 0.0
        %1362 = vmatprep.subr.mxu0 0.0
        %1363 = vmatpush1.msra.mxu0 0.0
        %1364 = vmatprep.subr.mxu0 0.0
        %1365 = vmatpush1.msra.mxu0 0.0
        %1366 = vmatprep.subr.mxu0 0.0
        %1367 = vmatpush1.msra.mxu0 0.0
        %1368 = vmatprep.subr.mxu0 0.0
        %1369 = vmatpush1.msra.mxu0 0.0
        %1370 = vmatprep.subr.mxu0 0.0
        %1371 = vmatpush1.msra.mxu0 0.0
        %1372 = vmatprep.subr.mxu0 0.0
        %1373 = vmatpush1.msra.mxu0 0.0
        %1374 = vmatprep.subr.mxu0 0.0
        %1375 = vmatpush1.msra.mxu0 0.0
        %1376 = vmatprep.subr.mxu0 0.0
        %1377 = vmatpush1.msra.mxu0 0.0
        %1378 = vmatprep.subr.mxu0 0.0
        %1379 = vmatpush1.msra.mxu0 0.0
        %1380 = vmatprep.mubr.f32.mxu0 0.0
        %1381 = vmatmul.mubr.f32.gmra.mrb[0].mxu0 %v1314
        %v1382 = vpop.f32.mrb[0].mxu0
        %v1383 = vadd.f32 %v1310, %v1382
        %v1384 = vpop.f32.mrb[0].mxu0
        %1385 = vdwg.mxu0
        %vm1386 = vcmask 1041408
        %v1387 = vrot.slane %v412, 6
        %v1388 = vrot.slane %v417, 6
        %v1389 = vsel %vm1386, %v1387, %v1388
        %1390 = vrot.lane.b32.xlu0 %v1389, 96
        %v1391 = vpop.permute.xlu0 %1390
        %v1392 = vsel %vm427, %v417, 0
        %v1394 = vsel %vm427, %v1391, 0
        %1396 = vmatprep.subr.mxu0 0.0
        %1397 = vmatpush1.xpose.msra.mxu0 %v1394
        %1398 = vmatprep.subr.mxu0 0.0
        %1399 = vmatpush1.xpose.msra.mxu0 0.0
        %1400 = vmatprep.subr.mxu0 0.0
        %1401 = vmatpush1.xpose.msra.mxu0 0.0
        %1402 = vmatprep.subr.mxu0 0.0
        %1403 = vmatpush1.xpose.msra.mxu0 0.0
        %1404 = vmatprep.subr.mxu0 0.0
        %1405 = vmatpush1.xpose.msra.mxu0 0.0
        %1406 = vmatprep.subr.mxu0 0.0
        %1407 = vmatpush1.xpose.msra.mxu0 0.0
        %1408 = vmatprep.subr.mxu0 0.0
        %1409 = vmatpush1.xpose.msra.mxu0 0.0
        %1410 = vmatprep.subr.mxu0 0.0
        %1411 = vmatpush1.xpose.msra.mxu0 0.0
        %1412 = vmatprep.subr.mxu0 0.0
        %1413 = vmatpush1.xpose.msra.mxu0 0.0
        %1414 = vmatprep.subr.mxu0 0.0
        %1415 = vmatpush1.xpose.msra.mxu0 0.0
        %1416 = vmatprep.subr.mxu0 0.0
        %1417 = vmatpush1.xpose.msra.mxu0 0.0
        %1418 = vmatprep.subr.mxu0 0.0
        %1419 = vmatpush1.xpose.msra.mxu0 0.0
        %1420 = vmatprep.subr.mxu0 0.0
        %1421 = vmatpush1.xpose.msra.mxu0 0.0
        %1422 = vmatprep.subr.mxu0 0.0
        %1423 = vmatpush1.xpose.msra.mxu0 0.0
        %1424 = vmatprep.subr.mxu0 0.0
        %1425 = vmatpush1.xpose.msra.mxu0 0.0
        %1426 = vmatprep.subr.mxu0 0.0
        %1427 = vmatpush1.xpose.msra.mxu0 0.0
        %1428 = vmatprep.subr.mxu0 0.0
        %1429 = vmatpush1.xpose.msra.mxu0 0.0
        %1430 = vmatprep.subr.mxu0 0.0
        %1431 = vmatpush1.xpose.msra.mxu0 0.0
        %1432 = vmatprep.subr.mxu0 0.0
        %1433 = vmatpush1.xpose.msra.mxu0 0.0
        %1434 = vmatprep.subr.mxu0 0.0
        %1435 = vmatpush1.xpose.msra.mxu0 0.0
        %1436 = vmatprep.subr.mxu0 0.0
        %1437 = vmatpush1.xpose.msra.mxu0 0.0
        %1438 = vmatprep.subr.mxu0 0.0
        %1439 = vmatpush1.xpose.msra.mxu0 0.0
        %1440 = vmatprep.subr.mxu0 0.0
        %1441 = vmatpush1.xpose.msra.mxu0 0.0
        %1442 = vmatprep.subr.mxu0 0.0
        %1443 = vmatpush1.xpose.msra.mxu0 0.0
        %1444 = vmatprep.subr.mxu0 0.0
        %1445 = vmatpush1.xpose.msra.mxu0 0.0
        %1446 = vmatprep.subr.mxu0 0.0
        %1447 = vmatpush1.xpose.msra.mxu0 0.0
        %1448 = vmatprep.subr.mxu0 0.0
        %1449 = vmatpush1.xpose.msra.mxu0 0.0
        %1450 = vmatprep.subr.mxu0 0.0
        %1451 = vmatpush1.xpose.msra.mxu0 0.0
        %1452 = vmatprep.subr.mxu0 0.0
        %1453 = vmatpush1.xpose.msra.mxu0 0.0
        %1454 = vmatprep.subr.mxu0 0.0
        %1455 = vmatpush1.xpose.msra.mxu0 0.0
        %1456 = vmatprep.subr.mxu0 0.0
        %1457 = vmatpush1.xpose.msra.mxu0 0.0
        %1458 = vmatprep.subr.mxu0 0.0
        %1459 = vmatpush1.xpose.msra.mxu0 0.0
        %1460 = vmatprep.mubr.f32.mxu0 0.0
        %1461 = vmatmul.mubr.f32.gmra.mrb[0].mxu0 %v1392
        %v1462 = vpop.f32.mrb[0].mxu0
        %v1463 = vadd.f32 0.0, %v1462
        %v1464 = vpop.f32.mrb[0].mxu0
        %1465 = vdwg.mxu0
        %v1466 = vsel %vm986, %v1463, -inf
        %1467 = vmax.xlane.f32.xlu0 %v1466
        %v1468 = vpop.xlane.xlu0 %1467
        %v1469 = vsub.f32 %v1463, %v1468
        %v1470 = vmul.f32 %v1469, 1.442695
        %v1471 = vpow.pop %v1470
        %v1472 = vsel %vm986, %v1471, 0.0
        %1473 = vadd.xlane.f32.xlu0 %v1472
        %v1474 = vpop.xlane.xlu0 %1473
        %v1475 = vrcp.pop %v1474
        %v1476 = vmul.f32 %v1471, %v1475
        %1477 = vrot.lane.b32.xlu0 %v1389, 64
        %v1478 = vpop.permute.xlu0 %1477
        %v1481 = vsel %vm1001, %v1476, 0
        %1483 = vmatprep.subr.mxu0 0.0
        %1484 = vmatpush1.msra.mxu0 %v1478
        %1485 = vmatprep.subr.mxu0 0.0
        %1486 = vmatpush1.msra.mxu0 0.0
        %1487 = vmatprep.subr.mxu0 0.0
        %1488 = vmatpush1.msra.mxu0 0.0
        %1489 = vmatprep.subr.mxu0 0.0
        %1490 = vmatpush1.msra.mxu0 0.0
        %1491 = vmatprep.subr.mxu0 0.0
        %1492 = vmatpush1.msra.mxu0 0.0
        %1493 = vmatprep.subr.mxu0 0.0
        %1494 = vmatpush1.msra.mxu0 0.0
        %1495 = vmatprep.subr.mxu0 0.0
        %1496 = vmatpush1.msra.mxu0 0.0
        %1497 = vmatprep.subr.mxu0 0.0
        %1498 = vmatpush1.msra.mxu0 0.0
        %1499 = vmatprep.subr.mxu0 0.0
        %1500 = vmatpush1.msra.mxu0 0.0
        %1501 = vmatprep.subr.mxu0 0.0
        %1502 = vmatpush1.msra.mxu0 0.0
        %1503 = vmatprep.subr.mxu0 0.0
        %1504 = vmatpush1.msra.mxu0 0.0
        %1505 = vmatprep.subr.mxu0 0.0
        %1506 = vmatpush1.msra.mxu0 0.0
        %1507 = vmatprep.subr.mxu0 0.0
        %1508 = vmatpush1.msra.mxu0 0.0
        %1509 = vmatprep.subr.mxu0 0.0
        %1510 = vmatpush1.msra.mxu0 0.0
        %1511 = vmatprep.subr.mxu0 0.0
        %1512 = vmatpush1.msra.mxu0 0.0
        %1513 = vmatprep.subr.mxu0 0.0
        %1514 = vmatpush1.msra.mxu0 0.0
        %1515 = vmatprep.subr.mxu0 0.0
        %1516 = vmatpush1.msra.mxu0 0.0
        %1517 = vmatprep.subr.mxu0 0.0
        %1518 = vmatpush1.msra.mxu0 0.0
        %1519 = vmatprep.subr.mxu0 0.0
        %1520 = vmatpush1.msra.mxu0 0.0
        %1521 = vmatprep.subr.mxu0 0.0
        %1522 = vmatpush1.msra.mxu0 0.0
        %1523 = vmatprep.subr.mxu0 0.0
        %1524 = vmatpush1.msra.mxu0 0.0
        %1525 = vmatprep.subr.mxu0 0.0
        %1526 = vmatpush1.msra.mxu0 0.0
        %1527 = vmatprep.subr.mxu0 0.0
        %1528 = vmatpush1.msra.mxu0 0.0
        %1529 = vmatprep.subr.mxu0 0.0
        %1530 = vmatpush1.msra.mxu0 0.0
        %1531 = vmatprep.subr.mxu0 0.0
        %1532 = vmatpush1.msra.mxu0 0.0
        %1533 = vmatprep.subr.mxu0 0.0
        %1534 = vmatpush1.msra.mxu0 0.0
        %1535 = vmatprep.subr.mxu0 0.0
        %1536 = vmatpush1.msra.mxu0 0.0
        %1537 = vmatprep.subr.mxu0 0.0
        %1538 = vmatpush1.msra.mxu0 0.0
        %1539 = vmatprep.subr.mxu0 0.0
        %1540 = vmatpush1.msra.mxu0 0.0
        %1541 = vmatprep.subr.mxu0 0.0
        %1542 = vmatpush1.msra.mxu0 0.0
        %1543 = vmatprep.subr.mxu0 0.0
        %1544 = vmatpush1.msra.mxu0 0.0
        %1545 = vmatprep.subr.mxu0 0.0
        %1546 = vmatpush1.msra.mxu0 0.0
        %1547 = vmatprep.mubr.f32.mxu0 0.0
        %1548 = vmatmul.mubr.f32.gmra.mrb[0].mxu0 %v1481
        %v1549 = vpop.f32.mrb[0].mxu0
        %v1550 = vadd.f32 0.0, %v1549
        %v1551 = vpop.f32.mrb[0].mxu0
        %1552 = vdwg.mxu0
        %1553 = vrot.lane.b32.xlu0 %v417, 112
        %v1554 = vpop.permute.xlu0 %1553
        %1555 = vrot.lane.b32.xlu0 %v1389, 80
        %v1556 = vpop.permute.xlu0 %1555
        %v1557 = vsel %vm427, %v1554, 0
        %v1559 = vsel %vm427, %v1556, 0
        %1561 = vmatprep.subr.mxu0 0.0
        %1562 = vmatpush1.xpose.msra.mxu0 %v1559
        %1563 = vmatprep.subr.mxu0 0.0
        %1564 = vmatpush1.xpose.msra.mxu0 0.0
        %1565 = vmatprep.subr.mxu0 0.0
        %1566 = vmatpush1.xpose.msra.mxu0 0.0
        %1567 = vmatprep.subr.mxu0 0.0
        %1568 = vmatpush1.xpose.msra.mxu0 0.0
        %1569 = vmatprep.subr.mxu0 0.0
        %1570 = vmatpush1.xpose.msra.mxu0 0.0
        %1571 = vmatprep.subr.mxu0 0.0
        %1572 = vmatpush1.xpose.msra.mxu0 0.0
        %1573 = vmatprep.subr.mxu0 0.0
        %1574 = vmatpush1.xpose.msra.mxu0 0.0
        %1575 = vmatprep.subr.mxu0 0.0
        %1576 = vmatpush1.xpose.msra.mxu0 0.0
        %1577 = vmatprep.subr.mxu0 0.0
        %1578 = vmatpush1.xpose.msra.mxu0 0.0
        %1579 = vmatprep.subr.mxu0 0.0
        %1580 = vmatpush1.xpose.msra.mxu0 0.0
        %1581 = vmatprep.subr.mxu0 0.0
        %1582 = vmatpush1.xpose.msra.mxu0 0.0
        %1583 = vmatprep.subr.mxu0 0.0
        %1584 = vmatpush1.xpose.msra.mxu0 0.0
        %1585 = vmatprep.subr.mxu0 0.0
        %1586 = vmatpush1.xpose.msra.mxu0 0.0
        %1587 = vmatprep.subr.mxu0 0.0
        %1588 = vmatpush1.xpose.msra.mxu0 0.0
        %1589 = vmatprep.subr.mxu0 0.0
        %1590 = vmatpush1.xpose.msra.mxu0 0.0
        %1591 = vmatprep.subr.mxu0 0.0
        %1592 = vmatpush1.xpose.msra.mxu0 0.0
        %1593 = vmatprep.subr.mxu0 0.0
        %1594 = vmatpush1.xpose.msra.mxu0 0.0
        %1595 = vmatprep.subr.mxu0 0.0
        %1596 = vmatpush1.xpose.msra.mxu0 0.0
        %1597 = vmatprep.subr.mxu0 0.0
        %1598 = vmatpush1.xpose.msra.mxu0 0.0
        %1599 = vmatprep.subr.mxu0 0.0
        %1600 = vmatpush1.xpose.msra.mxu0 0.0
        %1601 = vmatprep.subr.mxu0 0.0
        %1602 = vmatpush1.xpose.msra.mxu0 0.0
        %1603 = vmatprep.subr.mxu0 0.0
        %1604 = vmatpush1.xpose.msra.mxu0 0.0
        %1605 = vmatprep.subr.mxu0 0.0
        %1606 = vmatpush1.xpose.msra.mxu0 0.0
        %1607 = vmatprep.subr.mxu0 0.0
        %1608 = vmatpush1.xpose.msra.mxu0 0.0
        %1609 = vmatprep.subr.mxu0 0.0
        %1610 = vmatpush1.xpose.msra.mxu0 0.0
        %1611 = vmatprep.subr.mxu0 0.0
        %1612 = vmatpush1.xpose.msra.mxu0 0.0
        %1613 = vmatprep.subr.mxu0 0.0
        %1614 = vmatpush1.xpose.msra.mxu0 0.0
        %1615 = vmatprep.subr.mxu0 0.0
        %1616 = vmatpush1.xpose.msra.mxu0 0.0
        %1617 = vmatprep.subr.mxu0 0.0
        %1618 = vmatpush1.xpose.msra.mxu0 0.0
        %1619 = vmatprep.subr.mxu0 0.0
        %1620 = vmatpush1.xpose.msra.mxu0 0.0
        %1621 = vmatprep.subr.mxu0 0.0
        %1622 = vmatpush1.xpose.msra.mxu0 0.0
        %1623 = vmatprep.subr.mxu0 0.0
        %1624 = vmatpush1.xpose.msra.mxu0 0.0
        %1625 = vmatprep.mubr.f32.mxu0 0.0
        %1626 = vmatmul.mubr.f32.gmra.mrb[0].mxu0 %v1557
        %v1627 = vpop.f32.mrb[0].mxu0
        %v1628 = vadd.f32 0.0, %v1627
        %v1629 = vpop.f32.mrb[0].mxu0
        %1630 = vdwg.mxu0
        %v1631 = vsel %vm986, %v1628, -inf
        %1632 = vmax.xlane.f32.xlu0 %v1631
        %v1633 = vpop.xlane.xlu0 %1632
        %v1634 = vsub.f32 %v1628, %v1633
        %v1635 = vmul.f32 %v1634, 1.442695
        %v1636 = vpow.pop %v1635
        %v1637 = vsel %vm986, %v1636, 0.0
        %1638 = vadd.xlane.f32.xlu0 %v1637
        %v1639 = vpop.xlane.xlu0 %1638
        %v1640 = vrcp.pop %v1639
        %v1641 = vmul.f32 %v1636, %v1640
        %1642 = vrot.lane.b32.xlu0 %v1389, 48
        %v1643 = vpop.permute.xlu0 %1642
        %v1646 = vsel %vm1001, %v1641, 0
        %1648 = vmatprep.subr.mxu0 0.0
        %1649 = vmatpush1.msra.mxu0 %v1643
        %1650 = vmatprep.subr.mxu0 0.0
        %1651 = vmatpush1.msra.mxu0 0.0
        %1652 = vmatprep.subr.mxu0 0.0
        %1653 = vmatpush1.msra.mxu0 0.0
        %1654 = vmatprep.subr.mxu0 0.0
        %1655 = vmatpush1.msra.mxu0 0.0
        %1656 = vmatprep.subr.mxu0 0.0
        %1657 = vmatpush1.msra.mxu0 0.0
        %1658 = vmatprep.subr.mxu0 0.0
        %1659 = vmatpush1.msra.mxu0 0.0
        %1660 = vmatprep.subr.mxu0 0.0
        %1661 = vmatpush1.msra.mxu0 0.0
        %1662 = vmatprep.subr.mxu0 0.0
        %1663 = vmatpush1.msra.mxu0 0.0
        %1664 = vmatprep.subr.mxu0 0.0
        %1665 = vmatpush1.msra.mxu0 0.0
        %1666 = vmatprep.subr.mxu0 0.0
        %1667 = vmatpush1.msra.mxu0 0.0
        %1668 = vmatprep.subr.mxu0 0.0
        %1669 = vmatpush1.msra.mxu0 0.0
        %1670 = vmatprep.subr.mxu0 0.0
        %1671 = vmatpush1.msra.mxu0 0.0
        %1672 = vmatprep.subr.mxu0 0.0
        %1673 = vmatpush1.msra.mxu0 0.0
        %1674 = vmatprep.subr.mxu0 0.0
        %1675 = vmatpush1.msra.mxu0 0.0
        %1676 = vmatprep.subr.mxu0 0.0
        %1677 = vmatpush1.msra.mxu0 0.0
        %1678 = vmatprep.subr.mxu0 0.0
        %1679 = vmatpush1.msra.mxu0 0.0
        %1680 = vmatprep.subr.mxu0 0.0
        %1681 = vmatpush1.msra.mxu0 0.0
        %1682 = vmatprep.subr.mxu0 0.0
        %1683 = vmatpush1.msra.mxu0 0.0
        %1684 = vmatprep.subr.mxu0 0.0
        %1685 = vmatpush1.msra.mxu0 0.0
        %1686 = vmatprep.subr.mxu0 0.0
        %1687 = vmatpush1.msra.mxu0 0.0
        %1688 = vmatprep.subr.mxu0 0.0
        %1689 = vmatpush1.msra.mxu0 0.0
        %1690 = vmatprep.subr.mxu0 0.0
        %1691 = vmatpush1.msra.mxu0 0.0
        %1692 = vmatprep.subr.mxu0 0.0
        %1693 = vmatpush1.msra.mxu0 0.0
        %1694 = vmatprep.subr.mxu0 0.0
        %1695 = vmatpush1.msra.mxu0 0.0
        %1696 = vmatprep.subr.mxu0 0.0
        %1697 = vmatpush1.msra.mxu0 0.0
        %1698 = vmatprep.subr.mxu0 0.0
        %1699 = vmatpush1.msra.mxu0 0.0
        %1700 = vmatprep.subr.mxu0 0.0
        %1701 = vmatpush1.msra.mxu0 0.0
        %1702 = vmatprep.subr.mxu0 0.0
        %1703 = vmatpush1.msra.mxu0 0.0
        %1704 = vmatprep.subr.mxu0 0.0
        %1705 = vmatpush1.msra.mxu0 0.0
        %1706 = vmatprep.subr.mxu0 0.0
        %1707 = vmatpush1.msra.mxu0 0.0
        %1708 = vmatprep.subr.mxu0 0.0
        %1709 = vmatpush1.msra.mxu0 0.0
        %1710 = vmatprep.subr.mxu0 0.0
        %1711 = vmatpush1.msra.mxu0 0.0
        %1712 = vmatprep.mubr.f32.mxu0 0.0
        %1713 = vmatmul.mubr.f32.gmra.mrb[0].mxu0 %v1646
        %v1714 = vpop.f32.mrb[0].mxu0
        %v1715 = vadd.f32 0.0, %v1714
        %v1716 = vpop.f32.mrb[0].mxu0
        %1717 = vdwg.mxu0
        %v1719 = vsel %vm427, %v1715, 0
        %1721 = vmatprep.subr.mxu0 0.0
        %1722 = vmatpush1.msra.mxu0 %v422
        %1723 = vmatprep.subr.mxu0 0.0
        %1724 = vmatpush1.msra.mxu0 %v423
        %1725 = vmatprep.subr.mxu0 0.0
        %1726 = vmatpush1.msra.mxu0 0.0
        %1727 = vmatprep.subr.mxu0 0.0
        %1728 = vmatpush1.msra.mxu0 0.0
        %1729 = vmatprep.subr.mxu0 0.0
        %1730 = vmatpush1.msra.mxu0 0.0
        %1731 = vmatprep.subr.mxu0 0.0
        %1732 = vmatpush1.msra.mxu0 0.0
        %1733 = vmatprep.subr.mxu0 0.0
        %1734 = vmatpush1.msra.mxu0 0.0
        %1735 = vmatprep.subr.mxu0 0.0
        %1736 = vmatpush1.msra.mxu0 0.0
        %1737 = vmatprep.subr.mxu0 0.0
        %1738 = vmatpush1.msra.mxu0 0.0
        %1739 = vmatprep.subr.mxu0 0.0
        %1740 = vmatpush1.msra.mxu0 0.0
        %1741 = vmatprep.subr.mxu0 0.0
        %1742 = vmatpush1.msra.mxu0 0.0
        %1743 = vmatprep.subr.mxu0 0.0
        %1744 = vmatpush1.msra.mxu0 0.0
        %1745 = vmatprep.subr.mxu0 0.0
        %1746 = vmatpush1.msra.mxu0 0.0
        %1747 = vmatprep.subr.mxu0 0.0
        %1748 = vmatpush1.msra.mxu0 0.0
        %1749 = vmatprep.subr.mxu0 0.0
        %1750 = vmatpush1.msra.mxu0 0.0
        %1751 = vmatprep.subr.mxu0 0.0
        %1752 = vmatpush1.msra.mxu0 0.0
        %1753 = vmatprep.subr.mxu0 0.0
        %1754 = vmatpush1.msra.mxu0 0.0
        %1755 = vmatprep.subr.mxu0 0.0
        %1756 = vmatpush1.msra.mxu0 0.0
        %1757 = vmatprep.subr.mxu0 0.0
        %1758 = vmatpush1.msra.mxu0 0.0
        %1759 = vmatprep.subr.mxu0 0.0
        %1760 = vmatpush1.msra.mxu0 0.0
        %1761 = vmatprep.subr.mxu0 0.0
        %1762 = vmatpush1.msra.mxu0 0.0
        %1763 = vmatprep.subr.mxu0 0.0
        %1764 = vmatpush1.msra.mxu0 0.0
        %1765 = vmatprep.subr.mxu0 0.0
        %1766 = vmatpush1.msra.mxu0 0.0
        %1767 = vmatprep.subr.mxu0 0.0
        %1768 = vmatpush1.msra.mxu0 0.0
        %1769 = vmatprep.subr.mxu0 0.0
        %1770 = vmatpush1.msra.mxu0 0.0
        %1771 = vmatprep.subr.mxu0 0.0
        %1772 = vmatpush1.msra.mxu0 0.0
        %1773 = vmatprep.subr.mxu0 0.0
        %1774 = vmatpush1.msra.mxu0 0.0
        %1775 = vmatprep.subr.mxu0 0.0
        %1776 = vmatpush1.msra.mxu0 0.0
        %1777 = vmatprep.subr.mxu0 0.0
        %1778 = vmatpush1.msra.mxu0 0.0
        %1779 = vmatprep.subr.mxu0 0.0
        %1780 = vmatpush1.msra.mxu0 0.0
        %1781 = vmatprep.subr.mxu0 0.0
        %1782 = vmatpush1.msra.mxu0 0.0
        %1783 = vmatprep.subr.mxu0 0.0
        %1784 = vmatpush1.msra.mxu0 0.0
        %1785 = vmatprep.mubr.f32.mxu0 0.0
        %1786 = vmatmul.mubr.f32.gmra.mrb[0].mxu0 %v1719
        %v1787 = vpop.f32.mrb[0].mxu0
        %v1788 = vadd.f32 0.0, %v1787
        %v1789 = vpop.f32.mrb[0].mxu0
        %1790 = vdwg.mxu0
        %v1792 = vsel %vm427, %v1550, 0
        %1794 = vmatprep.subr.mxu0 0.0
        %1795 = vmatpush1.msra.mxu0 %v420
        %1796 = vmatprep.subr.mxu0 0.0
        %1797 = vmatpush1.msra.mxu0 %v421
        %1798 = vmatprep.subr.mxu0 0.0
        %1799 = vmatpush1.msra.mxu0 0.0
        %1800 = vmatprep.subr.mxu0 0.0
        %1801 = vmatpush1.msra.mxu0 0.0
        %1802 = vmatprep.subr.mxu0 0.0
        %1803 = vmatpush1.msra.mxu0 0.0
        %1804 = vmatprep.subr.mxu0 0.0
        %1805 = vmatpush1.msra.mxu0 0.0
        %1806 = vmatprep.subr.mxu0 0.0
        %1807 = vmatpush1.msra.mxu0 0.0
        %1808 = vmatprep.subr.mxu0 0.0
        %1809 = vmatpush1.msra.mxu0 0.0
        %1810 = vmatprep.subr.mxu0 0.0
        %1811 = vmatpush1.msra.mxu0 0.0
        %1812 = vmatprep.subr.mxu0 0.0
        %1813 = vmatpush1.msra.mxu0 0.0
        %1814 = vmatprep.subr.mxu0 0.0
        %1815 = vmatpush1.msra.mxu0 0.0
        %1816 = vmatprep.subr.mxu0 0.0
        %1817 = vmatpush1.msra.mxu0 0.0
        %1818 = vmatprep.subr.mxu0 0.0
        %1819 = vmatpush1.msra.mxu0 0.0
        %1820 = vmatprep.subr.mxu0 0.0
        %1821 = vmatpush1.msra.mxu0 0.0
        %1822 = vmatprep.subr.mxu0 0.0
        %1823 = vmatpush1.msra.mxu0 0.0
        %1824 = vmatprep.subr.mxu0 0.0
        %1825 = vmatpush1.msra.mxu0 0.0
        %1826 = vmatprep.subr.mxu0 0.0
        %1827 = vmatpush1.msra.mxu0 0.0
        %1828 = vmatprep.subr.mxu0 0.0
        %1829 = vmatpush1.msra.mxu0 0.0
        %1830 = vmatprep.subr.mxu0 0.0
        %1831 = vmatpush1.msra.mxu0 0.0
        %1832 = vmatprep.subr.mxu0 0.0
        %1833 = vmatpush1.msra.mxu0 0.0
        %1834 = vmatprep.subr.mxu0 0.0
        %1835 = vmatpush1.msra.mxu0 0.0
        %1836 = vmatprep.subr.mxu0 0.0
        %1837 = vmatpush1.msra.mxu0 0.0
        %1838 = vmatprep.subr.mxu0 0.0
        %1839 = vmatpush1.msra.mxu0 0.0
        %1840 = vmatprep.subr.mxu0 0.0
        %1841 = vmatpush1.msra.mxu0 0.0
        %1842 = vmatprep.subr.mxu0 0.0
        %1843 = vmatpush1.msra.mxu0 0.0
        %1844 = vmatprep.subr.mxu0 0.0
        %1845 = vmatpush1.msra.mxu0 0.0
        %1846 = vmatprep.subr.mxu0 0.0
        %1847 = vmatpush1.msra.mxu0 0.0
        %1848 = vmatprep.subr.mxu0 0.0
        %1849 = vmatpush1.msra.mxu0 0.0
        %1850 = vmatprep.subr.mxu0 0.0
        %1851 = vmatpush1.msra.mxu0 0.0
        %1852 = vmatprep.subr.mxu0 0.0
        %1853 = vmatpush1.msra.mxu0 0.0
        %1854 = vmatprep.subr.mxu0 0.0
        %1855 = vmatpush1.msra.mxu0 0.0
        %1856 = vmatprep.subr.mxu0 0.0
        %1857 = vmatpush1.msra.mxu0 0.0
        %1858 = vmatprep.mubr.f32.mxu0 0.0
        %1859 = vmatmul.mubr.f32.gmra.mrb[0].mxu0 %v1792
        %v1860 = vpop.f32.mrb[0].mxu0
        %v1861 = vadd.f32 %v1788, %v1860
        %v1862 = vpop.f32.mrb[0].mxu0
        %1863 = vdwg.mxu0
        %v1864 = vrot.slane %v417, 4
        %1865 = vrot.lane.b32.xlu0 %v908, 96
        %v1866 = vpop.permute.xlu0 %1865
        %v1867 = vsel %vm427, %v1864, 0
        %v1869 = vsel %vm427, %v1866, 0
        %1871 = vmatprep.subr.mxu0 0.0
        %1872 = vmatpush1.xpose.msra.mxu0 %v1869
        %1873 = vmatprep.subr.mxu0 0.0
        %1874 = vmatpush1.xpose.msra.mxu0 0.0
        %1875 = vmatprep.subr.mxu0 0.0
        %1876 = vmatpush1.xpose.msra.mxu0 0.0
        %1877 = vmatprep.subr.mxu0 0.0
        %1878 = vmatpush1.xpose.msra.mxu0 0.0
        %1879 = vmatprep.subr.mxu0 0.0
        %1880 = vmatpush1.xpose.msra.mxu0 0.0
        %1881 = vmatprep.subr.mxu0 0.0
        %1882 = vmatpush1.xpose.msra.mxu0 0.0
        %1883 = vmatprep.subr.mxu0 0.0
        %1884 = vmatpush1.xpose.msra.mxu0 0.0
        %1885 = vmatprep.subr.mxu0 0.0
        %1886 = vmatpush1.xpose.msra.mxu0 0.0
        %1887 = vmatprep.subr.mxu0 0.0
        %1888 = vmatpush1.xpose.msra.mxu0 0.0
        %1889 = vmatprep.subr.mxu0 0.0
        %1890 = vmatpush1.xpose.msra.mxu0 0.0
        %1891 = vmatprep.subr.mxu0 0.0
        %1892 = vmatpush1.xpose.msra.mxu0 0.0
        %1893 = vmatprep.subr.mxu0 0.0
        %1894 = vmatpush1.xpose.msra.mxu0 0.0
        %1895 = vmatprep.subr.mxu0 0.0
        %1896 = vmatpush1.xpose.msra.mxu0 0.0
        %1897 = vmatprep.subr.mxu0 0.0
        %1898 = vmatpush1.xpose.msra.mxu0 0.0
        %1899 = vmatprep.subr.mxu0 0.0
        %1900 = vmatpush1.xpose.msra.mxu0 0.0
        %1901 = vmatprep.subr.mxu0 0.0
        %1902 = vmatpush1.xpose.msra.mxu0 0.0
        %1903 = vmatprep.subr.mxu0 0.0
        %1904 = vmatpush1.xpose.msra.mxu0 0.0
        %1905 = vmatprep.subr.mxu0 0.0
        %1906 = vmatpush1.xpose.msra.mxu0 0.0
        %1907 = vmatprep.subr.mxu0 0.0
        %1908 = vmatpush1.xpose.msra.mxu0 0.0
        %1909 = vmatprep.subr.mxu0 0.0
        %1910 = vmatpush1.xpose.msra.mxu0 0.0
        %1911 = vmatprep.subr.mxu0 0.0
        %1912 = vmatpush1.xpose.msra.mxu0 0.0
        %1913 = vmatprep.subr.mxu0 0.0
        %1914 = vmatpush1.xpose.msra.mxu0 0.0
        %1915 = vmatprep.subr.mxu0 0.0
        %1916 = vmatpush1.xpose.msra.mxu0 0.0
        %1917 = vmatprep.subr.mxu0 0.0
        %1918 = vmatpush1.xpose.msra.mxu0 0.0
        %1919 = vmatprep.subr.mxu0 0.0
        %1920 = vmatpush1.xpose.msra.mxu0 0.0
        %1921 = vmatprep.subr.mxu0 0.0
        %1922 = vmatpush1.xpose.msra.mxu0 0.0
        %1923 = vmatprep.subr.mxu0 0.0
        %1924 = vmatpush1.xpose.msra.mxu0 0.0
        %1925 = vmatprep.subr.mxu0 0.0
        %1926 = vmatpush1.xpose.msra.mxu0 0.0
        %1927 = vmatprep.subr.mxu0 0.0
        %1928 = vmatpush1.xpose.msra.mxu0 0.0
        %1929 = vmatprep.subr.mxu0 0.0
        %1930 = vmatpush1.xpose.msra.mxu0 0.0
        %1931 = vmatprep.subr.mxu0 0.0
        %1932 = vmatpush1.xpose.msra.mxu0 0.0
        %1933 = vmatprep.subr.mxu0 0.0
        %1934 = vmatpush1.xpose.msra.mxu0 0.0
        %1935 = vmatprep.mubr.f32.mxu0 0.0
        %1936 = vmatmul.mubr.f32.gmra.mrb[0].mxu0 %v1867
        %v1937 = vpop.f32.mrb[0].mxu0
        %v1938 = vadd.f32 0.0, %v1937
        %v1939 = vpop.f32.mrb[0].mxu0
        %1940 = vdwg.mxu0
        %v1941 = vsel %vm502, %v1938, -inf
        %1942 = vmax.xlane.f32.xlu0 %v1941
        %v1943 = vpop.xlane.xlu0 %1942
        %v1944 = vsub.f32 %v1938, %v1943
        %v1945 = vmul.f32 %v1944, 1.442695
        %v1946 = vpow.pop %v1945
        %v1947 = vsel %vm502, %v1946, 0.0
        %1948 = vadd.xlane.f32.xlu0 %v1947
        %v1949 = vpop.xlane.xlu0 %1948
        %v1950 = vrcp.pop %v1949
        %v1951 = vmul.f32 %v1946, %v1950
        %1952 = vrot.lane.b32.xlu0 %v908, 64
        %v1953 = vpop.permute.xlu0 %1952
        %v1955 = vsel %vm516, %v1951, 0
        %v1957 = vsel %vm520, %v1953, 0
        %1959 = vmatprep.subr.mxu0 0.0
        %1960 = vmatpush1.msra.mxu0 %v1957
        %1961 = vmatprep.subr.mxu0 0.0
        %1962 = vmatpush1.msra.mxu0 0.0
        %1963 = vmatprep.subr.mxu0 0.0
        %1964 = vmatpush1.msra.mxu0 0.0
        %1965 = vmatprep.subr.mxu0 0.0
        %1966 = vmatpush1.msra.mxu0 0.0
        %1967 = vmatprep.subr.mxu0 0.0
        %1968 = vmatpush1.msra.mxu0 0.0
        %1969 = vmatprep.subr.mxu0 0.0
        %1970 = vmatpush1.msra.mxu0 0.0
        %1971 = vmatprep.subr.mxu0 0.0
        %1972 = vmatpush1.msra.mxu0 0.0
        %1973 = vmatprep.subr.mxu0 0.0
        %1974 = vmatpush1.msra.mxu0 0.0
        %1975 = vmatprep.subr.mxu0 0.0
        %1976 = vmatpush1.msra.mxu0 0.0
        %1977 = vmatprep.subr.mxu0 0.0
        %1978 = vmatpush1.msra.mxu0 0.0
        %1979 = vmatprep.subr.mxu0 0.0
        %1980 = vmatpush1.msra.mxu0 0.0
        %1981 = vmatprep.subr.mxu0 0.0
        %1982 = vmatpush1.msra.mxu0 0.0
        %1983 = vmatprep.subr.mxu0 0.0
        %1984 = vmatpush1.msra.mxu0 0.0
        %1985 = vmatprep.subr.mxu0 0.0
        %1986 = vmatpush1.msra.mxu0 0.0
        %1987 = vmatprep.subr.mxu0 0.0
        %1988 = vmatpush1.msra.mxu0 0.0
        %1989 = vmatprep.subr.mxu0 0.0
        %1990 = vmatpush1.msra.mxu0 0.0
        %1991 = vmatprep.subr.mxu0 0.0
        %1992 = vmatpush1.msra.mxu0 0.0
        %1993 = vmatprep.subr.mxu0 0.0
        %1994 = vmatpush1.msra.mxu0 0.0
        %1995 = vmatprep.subr.mxu0 0.0
        %1996 = vmatpush1.msra.mxu0 0.0
        %1997 = vmatprep.subr.mxu0 0.0
        %1998 = vmatpush1.msra.mxu0 0.0
        %1999 = vmatprep.subr.mxu0 0.0
        %2000 = vmatpush1.msra.mxu0 0.0
        %2001 = vmatprep.subr.mxu0 0.0
        %2002 = vmatpush1.msra.mxu0 0.0
        %2003 = vmatprep.subr.mxu0 0.0
        %2004 = vmatpush1.msra.mxu0 0.0
        %2005 = vmatprep.subr.mxu0 0.0
        %2006 = vmatpush1.msra.mxu0 0.0
        %2007 = vmatprep.subr.mxu0 0.0
        %2008 = vmatpush1.msra.mxu0 0.0
        %2009 = vmatprep.subr.mxu0 0.0
        %2010 = vmatpush1.msra.mxu0 0.0
        %2011 = vmatprep.subr.mxu0 0.0
        %2012 = vmatpush1.msra.mxu0 0.0
        %2013 = vmatprep.subr.mxu0 0.0
        %2014 = vmatpush1.msra.mxu0 0.0
        %2015 = vmatprep.subr.mxu0 0.0
        %2016 = vmatpush1.msra.mxu0 0.0
        %2017 = vmatprep.subr.mxu0 0.0
        %2018 = vmatpush1.msra.mxu0 0.0
        %2019 = vmatprep.subr.mxu0 0.0
        %2020 = vmatpush1.msra.mxu0 0.0
        %2021 = vmatprep.subr.mxu0 0.0
        %2022 = vmatpush1.msra.mxu0 0.0
        %2023 = vmatprep.mubr.f32.mxu0 0.0
        %2024 = vmatmul.mubr.f32.gmra.mrb[0].mxu0 %v1955
        %v2025 = vpop.f32.mrb[0].mxu0
        %v2026 = vadd.f32 0.0, %v2025
        %v2027 = vpop.f32.mrb[0].mxu0
        %2028 = vdwg.mxu0
        %2029 = vrot.lane.b32.xlu0 %v1864, 112
        %v2030 = vpop.permute.xlu0 %2029
        %2031 = vrot.lane.b32.xlu0 %v908, 80
        %v2032 = vpop.permute.xlu0 %2031
        %v2033 = vsel %vm427, %v2030, 0
        %v2035 = vsel %vm427, %v2032, 0
        %2037 = vmatprep.subr.mxu0 0.0
        %2038 = vmatpush1.xpose.msra.mxu0 %v2035
        %2039 = vmatprep.subr.mxu0 0.0
        %2040 = vmatpush1.xpose.msra.mxu0 0.0
        %2041 = vmatprep.subr.mxu0 0.0
        %2042 = vmatpush1.xpose.msra.mxu0 0.0
        %2043 = vmatprep.subr.mxu0 0.0
        %2044 = vmatpush1.xpose.msra.mxu0 0.0
        %2045 = vmatprep.subr.mxu0 0.0
        %2046 = vmatpush1.xpose.msra.mxu0 0.0
        %2047 = vmatprep.subr.mxu0 0.0
        %2048 = vmatpush1.xpose.msra.mxu0 0.0
        %2049 = vmatprep.subr.mxu0 0.0
        %2050 = vmatpush1.xpose.msra.mxu0 0.0
        %2051 = vmatprep.subr.mxu0 0.0
        %2052 = vmatpush1.xpose.msra.mxu0 0.0
        %2053 = vmatprep.subr.mxu0 0.0
        %2054 = vmatpush1.xpose.msra.mxu0 0.0
        %2055 = vmatprep.subr.mxu0 0.0
        %2056 = vmatpush1.xpose.msra.mxu0 0.0
        %2057 = vmatprep.subr.mxu0 0.0
        %2058 = vmatpush1.xpose.msra.mxu0 0.0
        %2059 = vmatprep.subr.mxu0 0.0
        %2060 = vmatpush1.xpose.msra.mxu0 0.0
        %2061 = vmatprep.subr.mxu0 0.0
        %2062 = vmatpush1.xpose.msra.mxu0 0.0
        %2063 = vmatprep.subr.mxu0 0.0
        %2064 = vmatpush1.xpose.msra.mxu0 0.0
        %2065 = vmatprep.subr.mxu0 0.0
        %2066 = vmatpush1.xpose.msra.mxu0 0.0
        %2067 = vmatprep.subr.mxu0 0.0
        %2068 = vmatpush1.xpose.msra.mxu0 0.0
        %2069 = vmatprep.subr.mxu0 0.0
        %2070 = vmatpush1.xpose.msra.mxu0 0.0
        %2071 = vmatprep.subr.mxu0 0.0
        %2072 = vmatpush1.xpose.msra.mxu0 0.0
        %2073 = vmatprep.subr.mxu0 0.0
        %2074 = vmatpush1.xpose.msra.mxu0 0.0
        %2075 = vmatprep.subr.mxu0 0.0
        %2076 = vmatpush1.xpose.msra.mxu0 0.0
        %2077 = vmatprep.subr.mxu0 0.0
        %2078 = vmatpush1.xpose.msra.mxu0 0.0
        %2079 = vmatprep.subr.mxu0 0.0
        %2080 = vmatpush1.xpose.msra.mxu0 0.0
        %2081 = vmatprep.subr.mxu0 0.0
        %2082 = vmatpush1.xpose.msra.mxu0 0.0
        %2083 = vmatprep.subr.mxu0 0.0
        %2084 = vmatpush1.xpose.msra.mxu0 0.0
        %2085 = vmatprep.subr.mxu0 0.0
        %2086 = vmatpush1.xpose.msra.mxu0 0.0
        %2087 = vmatprep.subr.mxu0 0.0
        %2088 = vmatpush1.xpose.msra.mxu0 0.0
        %2089 = vmatprep.subr.mxu0 0.0
        %2090 = vmatpush1.xpose.msra.mxu0 0.0
        %2091 = vmatprep.subr.mxu0 0.0
        %2092 = vmatpush1.xpose.msra.mxu0 0.0
        %2093 = vmatprep.subr.mxu0 0.0
        %2094 = vmatpush1.xpose.msra.mxu0 0.0
        %2095 = vmatprep.subr.mxu0 0.0
        %2096 = vmatpush1.xpose.msra.mxu0 0.0
        %2097 = vmatprep.subr.mxu0 0.0
        %2098 = vmatpush1.xpose.msra.mxu0 0.0
        %2099 = vmatprep.subr.mxu0 0.0
        %2100 = vmatpush1.xpose.msra.mxu0 0.0
        %2101 = vmatprep.mubr.f32.mxu0 0.0
        %2102 = vmatmul.mubr.f32.gmra.mrb[0].mxu0 %v2033
        %v2103 = vpop.f32.mrb[0].mxu0
        %v2104 = vadd.f32 0.0, %v2103
        %v2105 = vpop.f32.mrb[0].mxu0
        %2106 = vdwg.mxu0
        %v2107 = vsel %vm502, %v2104, -inf
        %2108 = vmax.xlane.f32.xlu0 %v2107
        %v2109 = vpop.xlane.xlu0 %2108
        %v2110 = vsub.f32 %v2104, %v2109
        %v2111 = vmul.f32 %v2110, 1.442695
        %v2112 = vpow.pop %v2111
        %v2113 = vsel %vm502, %v2112, 0.0
        %2114 = vadd.xlane.f32.xlu0 %v2113
        %v2115 = vpop.xlane.xlu0 %2114
        %v2116 = vrcp.pop %v2115
        %v2117 = vmul.f32 %v2112, %v2116
        %2118 = vrot.lane.b32.xlu0 %v908, 48
        %v2119 = vpop.permute.xlu0 %2118
        %v2121 = vsel %vm516, %v2117, 0
        %v2123 = vsel %vm520, %v2119, 0
        %2125 = vmatprep.subr.mxu0 0.0
        %2126 = vmatpush1.msra.mxu0 %v2123
        %2127 = vmatprep.subr.mxu0 0.0
        %2128 = vmatpush1.msra.mxu0 0.0
        %2129 = vmatprep.subr.mxu0 0.0
        %2130 = vmatpush1.msra.mxu0 0.0
        %2131 = vmatprep.subr.mxu0 0.0
        %2132 = vmatpush1.msra.mxu0 0.0
        %2133 = vmatprep.subr.mxu0 0.0
        %2134 = vmatpush1.msra.mxu0 0.0
        %2135 = vmatprep.subr.mxu0 0.0
        %2136 = vmatpush1.msra.mxu0 0.0
        %2137 = vmatprep.subr.mxu0 0.0
        %2138 = vmatpush1.msra.mxu0 0.0
        %2139 = vmatprep.subr.mxu0 0.0
        %2140 = vmatpush1.msra.mxu0 0.0
        %2141 = vmatprep.subr.mxu0 0.0
        %2142 = vmatpush1.msra.mxu0 0.0
        %2143 = vmatprep.subr.mxu0 0.0
        %2144 = vmatpush1.msra.mxu0 0.0
        %2145 = vmatprep.subr.mxu0 0.0
        %2146 = vmatpush1.msra.mxu0 0.0
        %2147 = vmatprep.subr.mxu0 0.0
        %2148 = vmatpush1.msra.mxu0 0.0
        %2149 = vmatprep.subr.mxu0 0.0
        %2150 = vmatpush1.msra.mxu0 0.0
        %2151 = vmatprep.subr.mxu0 0.0
        %2152 = vmatpush1.msra.mxu0 0.0
        %2153 = vmatprep.subr.mxu0 0.0
        %2154 = vmatpush1.msra.mxu0 0.0
        %2155 = vmatprep.subr.mxu0 0.0
        %2156 = vmatpush1.msra.mxu0 0.0
        %2157 = vmatprep.subr.mxu0 0.0
        %2158 = vmatpush1.msra.mxu0 0.0
        %2159 = vmatprep.subr.mxu0 0.0
        %2160 = vmatpush1.msra.mxu0 0.0
        %2161 = vmatprep.subr.mxu0 0.0
        %2162 = vmatpush1.msra.mxu0 0.0
        %2163 = vmatprep.subr.mxu0 0.0
        %2164 = vmatpush1.msra.mxu0 0.0
        %2165 = vmatprep.subr.mxu0 0.0
        %2166 = vmatpush1.msra.mxu0 0.0
        %2167 = vmatprep.subr.mxu0 0.0
        %2168 = vmatpush1.msra.mxu0 0.0
        %2169 = vmatprep.subr.mxu0 0.0
        %2170 = vmatpush1.msra.mxu0 0.0
        %2171 = vmatprep.subr.mxu0 0.0
        %2172 = vmatpush1.msra.mxu0 0.0
        %2173 = vmatprep.subr.mxu0 0.0
        %2174 = vmatpush1.msra.mxu0 0.0
        %2175 = vmatprep.subr.mxu0 0.0
        %2176 = vmatpush1.msra.mxu0 0.0
        %2177 = vmatprep.subr.mxu0 0.0
        %2178 = vmatpush1.msra.mxu0 0.0
        %2179 = vmatprep.subr.mxu0 0.0
        %2180 = vmatpush1.msra.mxu0 0.0
        %2181 = vmatprep.subr.mxu0 0.0
        %2182 = vmatpush1.msra.mxu0 0.0
        %2183 = vmatprep.subr.mxu0 0.0
        %2184 = vmatpush1.msra.mxu0 0.0
        %2185 = vmatprep.subr.mxu0 0.0
        %2186 = vmatpush1.msra.mxu0 0.0
        %2187 = vmatprep.subr.mxu0 0.0
        %2188 = vmatpush1.msra.mxu0 0.0
        %2189 = vmatprep.mubr.f32.mxu0 0.0
        %2190 = vmatmul.mubr.f32.gmra.mrb[0].mxu0 %v2121
        %v2191 = vpop.f32.mrb[0].mxu0
        %v2192 = vadd.f32 0.0, %v2191
        %v2193 = vpop.f32.mrb[0].mxu0
        %2194 = vdwg.mxu0
        %v2196 = vsel %vm427, %v2192, 0
        %2198 = vmatprep.subr.mxu0 0.0
        %2199 = vmatpush1.msra.mxu0 %v422
        %2200 = vmatprep.subr.mxu0 0.0
        %2201 = vmatpush1.msra.mxu0 %v423
        %2202 = vmatprep.subr.mxu0 0.0
        %2203 = vmatpush1.msra.mxu0 0.0
        %2204 = vmatprep.subr.mxu0 0.0
        %2205 = vmatpush1.msra.mxu0 0.0
        %2206 = vmatprep.subr.mxu0 0.0
        %2207 = vmatpush1.msra.mxu0 0.0
        %2208 = vmatprep.subr.mxu0 0.0
        %2209 = vmatpush1.msra.mxu0 0.0
        %2210 = vmatprep.subr.mxu0 0.0
        %2211 = vmatpush1.msra.mxu0 0.0
        %2212 = vmatprep.subr.mxu0 0.0
        %2213 = vmatpush1.msra.mxu0 0.0
        %2214 = vmatprep.subr.mxu0 0.0
        %2215 = vmatpush1.msra.mxu0 0.0
        %2216 = vmatprep.subr.mxu0 0.0
        %2217 = vmatpush1.msra.mxu0 0.0
        %2218 = vmatprep.subr.mxu0 0.0
        %2219 = vmatpush1.msra.mxu0 0.0
        %2220 = vmatprep.subr.mxu0 0.0
        %2221 = vmatpush1.msra.mxu0 0.0
        %2222 = vmatprep.subr.mxu0 0.0
        %2223 = vmatpush1.msra.mxu0 0.0
        %2224 = vmatprep.subr.mxu0 0.0
        %2225 = vmatpush1.msra.mxu0 0.0
        %2226 = vmatprep.subr.mxu0 0.0
        %2227 = vmatpush1.msra.mxu0 0.0
        %2228 = vmatprep.subr.mxu0 0.0
        %2229 = vmatpush1.msra.mxu0 0.0
        %2230 = vmatprep.subr.mxu0 0.0
        %2231 = vmatpush1.msra.mxu0 0.0
        %2232 = vmatprep.subr.mxu0 0.0
        %2233 = vmatpush1.msra.mxu0 0.0
        %2234 = vmatprep.subr.mxu0 0.0
        %2235 = vmatpush1.msra.mxu0 0.0
        %2236 = vmatprep.subr.mxu0 0.0
        %2237 = vmatpush1.msra.mxu0 0.0
        %2238 = vmatprep.subr.mxu0 0.0
        %2239 = vmatpush1.msra.mxu0 0.0
        %2240 = vmatprep.subr.mxu0 0.0
        %2241 = vmatpush1.msra.mxu0 0.0
        %2242 = vmatprep.subr.mxu0 0.0
        %2243 = vmatpush1.msra.mxu0 0.0
        %2244 = vmatprep.subr.mxu0 0.0
        %2245 = vmatpush1.msra.mxu0 0.0
        %2246 = vmatprep.subr.mxu0 0.0
        %2247 = vmatpush1.msra.mxu0 0.0
        %2248 = vmatprep.subr.mxu0 0.0
        %2249 = vmatpush1.msra.mxu0 0.0
        %2250 = vmatprep.subr.mxu0 0.0
        %2251 = vmatpush1.msra.mxu0 0.0
        %2252 = vmatprep.subr.mxu0 0.0
        %2253 = vmatpush1.msra.mxu0 0.0
        %2254 = vmatprep.subr.mxu0 0.0
        %2255 = vmatpush1.msra.mxu0 0.0
        %2256 = vmatprep.subr.mxu0 0.0
        %2257 = vmatpush1.msra.mxu0 0.0
        %2258 = vmatprep.subr.mxu0 0.0
        %2259 = vmatpush1.msra.mxu0 0.0
        %2260 = vmatprep.subr.mxu0 0.0
        %2261 = vmatpush1.msra.mxu0 0.0
        %2262 = vmatprep.mubr.f32.mxu0 0.0
        %2263 = vmatmul.mubr.f32.gmra.mrb[0].mxu0 %v2196
        %v2264 = vpop.f32.mrb[0].mxu0
        %v2265 = vadd.f32 0.0, %v2264
        %v2266 = vpop.f32.mrb[0].mxu0
        %2267 = vdwg.mxu0
        %v2269 = vsel %vm427, %v2026, 0
        %2271 = vmatprep.subr.mxu0 0.0
        %2272 = vmatpush1.msra.mxu0 %v420
        %2273 = vmatprep.subr.mxu0 0.0
        %2274 = vmatpush1.msra.mxu0 %v421
        %2275 = vmatprep.subr.mxu0 0.0
        %2276 = vmatpush1.msra.mxu0 0.0
        %2277 = vmatprep.subr.mxu0 0.0
        %2278 = vmatpush1.msra.mxu0 0.0
        %2279 = vmatprep.subr.mxu0 0.0
        %2280 = vmatpush1.msra.mxu0 0.0
        %2281 = vmatprep.subr.mxu0 0.0
        %2282 = vmatpush1.msra.mxu0 0.0
        %2283 = vmatprep.subr.mxu0 0.0
        %2284 = vmatpush1.msra.mxu0 0.0
        %2285 = vmatprep.subr.mxu0 0.0
        %2286 = vmatpush1.msra.mxu0 0.0
        %2287 = vmatprep.subr.mxu0 0.0
        %2288 = vmatpush1.msra.mxu0 0.0
        %2289 = vmatprep.subr.mxu0 0.0
        %2290 = vmatpush1.msra.mxu0 0.0
        %2291 = vmatprep.subr.mxu0 0.0
        %2292 = vmatpush1.msra.mxu0 0.0
        %2293 = vmatprep.subr.mxu0 0.0
        %2294 = vmatpush1.msra.mxu0 0.0
        %2295 = vmatprep.subr.mxu0 0.0
        %2296 = vmatpush1.msra.mxu0 0.0
        %2297 = vmatprep.subr.mxu0 0.0
        %2298 = vmatpush1.msra.mxu0 0.0
        %2299 = vmatprep.subr.mxu0 0.0
        %2300 = vmatpush1.msra.mxu0 0.0
        %2301 = vmatprep.subr.mxu0 0.0
        %2302 = vmatpush1.msra.mxu0 0.0
        %2303 = vmatprep.subr.mxu0 0.0
        %2304 = vmatpush1.msra.mxu0 0.0
        %2305 = vmatprep.subr.mxu0 0.0
        %2306 = vmatpush1.msra.mxu0 0.0
        %2307 = vmatprep.subr.mxu0 0.0
        %2308 = vmatpush1.msra.mxu0 0.0
        %2309 = vmatprep.subr.mxu0 0.0
        %2310 = vmatpush1.msra.mxu0 0.0
        %2311 = vmatprep.subr.mxu0 0.0
        %2312 = vmatpush1.msra.mxu0 0.0
        %2313 = vmatprep.subr.mxu0 0.0
        %2314 = vmatpush1.msra.mxu0 0.0
        %2315 = vmatprep.subr.mxu0 0.0
        %2316 = vmatpush1.msra.mxu0 0.0
        %2317 = vmatprep.subr.mxu0 0.0
        %2318 = vmatpush1.msra.mxu0 0.0
        %2319 = vmatprep.subr.mxu0 0.0
        %2320 = vmatpush1.msra.mxu0 0.0
        %2321 = vmatprep.subr.mxu0 0.0
        %2322 = vmatpush1.msra.mxu0 0.0
        %2323 = vmatprep.subr.mxu0 0.0
        %2324 = vmatpush1.msra.mxu0 0.0
        %2325 = vmatprep.subr.mxu0 0.0
        %2326 = vmatpush1.msra.mxu0 0.0
        %2327 = vmatprep.subr.mxu0 0.0
        %2328 = vmatpush1.msra.mxu0 0.0
        %2329 = vmatprep.subr.mxu0 0.0
        %2330 = vmatpush1.msra.mxu0 0.0
        %2331 = vmatprep.subr.mxu0 0.0
        %2332 = vmatpush1.msra.mxu0 0.0
        %2333 = vmatprep.subr.mxu0 0.0
        %2334 = vmatpush1.msra.mxu0 0.0
        %2335 = vmatprep.mubr.f32.mxu0 0.0
        %2336 = vmatmul.mubr.f32.gmra.mrb[0].mxu0 %v2269
        %v2337 = vpop.f32.mrb[0].mxu0
        %v2338 = vadd.f32 %v2265, %v2337
        %v2339 = vpop.f32.mrb[0].mxu0
        %2340 = vdwg.mxu0
        %v2342 = vrot.slane %v1383, 4
        %v2345 = vrot.slane %v2338, 4
        %vm2347 = vcmask 1043456
        %v2348 = vsel %vm2347, %v902, %v2342
        %v2349 = vsel %vm2347, %v1861, %v2345
        %v2350 = vlaneseq
        %v2351 = vshrl.u32 %v2350, 7
        %v2352 = vsub.s32 0, %v2351
        %v2353 = vrot.slane %v326, %v2352
        %v2354 = vadd.f32 %v2348, %v2353
        %v2355 = vadd.f32 %v2349, %v2353
        %v2356 = vadd.f32 %v2354, %v324
        %v2357 = vadd.f32 %v2355, %v325
        %v2358 = vsel %vm338, %v2356, 0.0
        %2359 = vadd.xlane.f32.xlu0 %v2358
        %v2360 = vpop.xlane.xlu0 %2359
        %v2361 = vsel %vm338, %v2357, 0.0
        %2362 = vadd.xlane.f32.xlu0 %v2361
        %v2363 = vpop.xlane.xlu0 %2362
        %v2364 = vrcp.pop 32.0
        %v2365 = vmul.f32 %v2360, %v2364
        %v2366 = vmul.f32 %v2363, %v2364
        %v2367 = vsub.f32 %v2356, %v2365
        %v2368 = vsub.f32 %v2357, %v2366
        %v2369 = vmul.f32 %v2367, %v2367
        %v2370 = vmul.f32 %v2368, %v2368
        %v2371 = vsel %vm338, %v2369, 0.0
        %2372 = vadd.xlane.f32.xlu0 %v2371
        %v2373 = vpop.xlane.xlu0 %2372
        %v2374 = vsel %vm338, %v2370, 0.0
        %2375 = vadd.xlane.f32.xlu0 %v2374
        %v2376 = vpop.xlane.xlu0 %2375
        %v2377 = vmul.f32 %v2373, %v2364
        %v2378 = vmul.f32 %v2376, %v2364
        %v2379 = vadd.f32 %v2377, 1e-12
        %v2380 = vadd.f32 %v2378, 1e-12
        %v2381 = vrsqrt.pop %v2379
        %v2382 = vrsqrt.pop %v2380
        %v2383 = vmul.f32 %v2367, %v2381
        %v2384 = vmul.f32 %v2368, %v2382
        %v2385 = vlaneseq
        %v2386 = vshrl.u32 %v2385, 7
        %v2387 = vsub.s32 1, %v2386
        %v2388 = vrot.slane %v326, %v2387
        %v2389 = vmul.f32 %v2383, %v2388
        %v2390 = vmul.f32 %v2384, %v2388
        %v2391 = vlaneseq
        %v2392 = vshrl.u32 %v2391, 7
        %v2393 = vsub.s32 2, %v2392
        %v2394 = vrot.slane %v326, %v2393
        %v2395 = vadd.f32 %v2389, %v2394
        %v2396 = vadd.f32 %v2390, %v2394
        %v2397 = vld [vmem:[%s4] sm:$0xff]
        %v2398 = vld [vmem:[%s4 + $0x8] sm:$0xff]
        %v2399 = vld [vmem:[%s4 + $0x10] sm:$0xff]
        %v2400 = vld [vmem:[%s4 + $0x18] sm:$0xff]
        %v2401 = vld [vmem:[%s5] sm:$0x1]
        %v2403 = vlaneseq
        %v2404 = vshrl.u32 %v2403, 7
        %v2405 = vsub.s32 0, %v2404
        %v2406 = vrot.slane %v2401, %v2405
        %v2409 = vsel %vm338, %v2395, 0
        %v2412 = vsel %vm338, %v2396, 0
        %2414 = vmatprep.subr.mxu0 0.0
        %2415 = vmatpush1.msra.mxu0 %v2397
        %2416 = vmatprep.subr.mxu0 0.0
        %2417 = vmatpush1.msra.mxu0 %v2398
        %2418 = vmatprep.subr.mxu0 0.0
        %2419 = vmatpush1.msra.mxu0 %v2399
        %2420 = vmatprep.subr.mxu0 0.0
        %2421 = vmatpush1.msra.mxu0 %v2400
        %2422 = vmatprep.subr.mxu0 0.0
        %2423 = vmatpush1.msra.mxu0 0.0
        %2424 = vmatprep.subr.mxu0 0.0
        %2425 = vmatpush1.msra.mxu0 0.0
        %2426 = vmatprep.subr.mxu0 0.0
        %2427 = vmatpush1.msra.mxu0 0.0
        %2428 = vmatprep.subr.mxu0 0.0
        %2429 = vmatpush1.msra.mxu0 0.0
        %2430 = vmatprep.subr.mxu0 0.0
        %2431 = vmatpush1.msra.mxu0 0.0
        %2432 = vmatprep.subr.mxu0 0.0
        %2433 = vmatpush1.msra.mxu0 0.0
        %2434 = vmatprep.subr.mxu0 0.0
        %2435 = vmatpush1.msra.mxu0 0.0
        %2436 = vmatprep.subr.mxu0 0.0
        %2437 = vmatpush1.msra.mxu0 0.0
        %2438 = vmatprep.subr.mxu0 0.0
        %2439 = vmatpush1.msra.mxu0 0.0
        %2440 = vmatprep.subr.mxu0 0.0
        %2441 = vmatpush1.msra.mxu0 0.0
        %2442 = vmatprep.subr.mxu0 0.0
        %2443 = vmatpush1.msra.mxu0 0.0
        %2444 = vmatprep.subr.mxu0 0.0
        %2445 = vmatpush1.msra.mxu0 0.0
        %2446 = vmatprep.subr.mxu0 0.0
        %2447 = vmatpush1.msra.mxu0 0.0
        %2448 = vmatprep.subr.mxu0 0.0
        %2449 = vmatpush1.msra.mxu0 0.0
        %2450 = vmatprep.subr.mxu0 0.0
        %2451 = vmatpush1.msra.mxu0 0.0
        %2452 = vmatprep.subr.mxu0 0.0
        %2453 = vmatpush1.msra.mxu0 0.0
        %2454 = vmatprep.subr.mxu0 0.0
        %2455 = vmatpush1.msra.mxu0 0.0
        %2456 = vmatprep.subr.mxu0 0.0
        %2457 = vmatpush1.msra.mxu0 0.0
        %2458 = vmatprep.subr.mxu0 0.0
        %2459 = vmatpush1.msra.mxu0 0.0
        %2460 = vmatprep.subr.mxu0 0.0
        %2461 = vmatpush1.msra.mxu0 0.0
        %2462 = vmatprep.subr.mxu0 0.0
        %2463 = vmatpush1.msra.mxu0 0.0
        %2464 = vmatprep.subr.mxu0 0.0
        %2465 = vmatpush1.msra.mxu0 0.0
        %2466 = vmatprep.subr.mxu0 0.0
        %2467 = vmatpush1.msra.mxu0 0.0
        %2468 = vmatprep.subr.mxu0 0.0
        %2469 = vmatpush1.msra.mxu0 0.0
        %2470 = vmatprep.subr.mxu0 0.0
        %2471 = vmatpush1.msra.mxu0 0.0
        %2472 = vmatprep.subr.mxu0 0.0
        %2473 = vmatpush1.msra.mxu0 0.0
        %2474 = vmatprep.subr.mxu0 0.0
        %2475 = vmatpush1.msra.mxu0 0.0
        %2476 = vmatprep.subr.mxu0 0.0
        %2477 = vmatpush1.msra.mxu0 0.0
        %2478 = vmatprep.mubr.f32.mxu0 0.0
        %2479 = vmatmul.mubr.f32.gmra.mrb[0].mxu0 %v2409
        %v2480 = vpop.f32.mrb[0].mxu0
        %v2481 = vadd.f32 %v2406, %v2480
        %v2482 = vpop.f32.mrb[0].mxu0
        %2483 = vmatprep.mubr.f32.mxu0 0.0
        %2484 = vmatmul.mubr.f32.gmra.mrb[0].mxu0 %v2412
        %v2485 = vpop.f32.mrb[0].mxu0
        %v2486 = vadd.f32 %v2406, %v2485
        %v2487 = vpop.f32.mrb[0].mxu0
        %2488 = vdwg.mxu0
        %v2489 = vmul.f32 %v2481, 0.5
        %v2490 = vmul.f32 %v2486, 0.5
        %v2491 = vrcp.pop 1.4142135
        %v2492 = vmul.f32 %v2481, %v2491
        %v2493 = vmul.f32 %v2486, %v2491
        %v2494 = verf.f32.pop %v2492
        %v2495 = verf.f32.pop %v2493
        %v2496 = vadd.f32 %v2494, 1.0
        %v2497 = vadd.f32 %v2495, 1.0
        %v2498 = vmul.f32 %v2489, %v2496
        %v2499 = vmul.f32 %v2490, %v2497
        %v2500 = vld [vmem:[%s6] sm:$0xff]
        %v2501 = vld [vmem:[%s6 + $0x8] sm:$0xff]
        %v2502 = vld [vmem:[%s6 + $0x10] sm:$0xff]
        %v2503 = vld [vmem:[%s6 + $0x18] sm:$0xff]
        %v2504 = vld [vmem:[%s6 + $0x20] sm:$0xff]
        %v2505 = vld [vmem:[%s6 + $0x28] sm:$0xff]
        %v2506 = vld [vmem:[%s6 + $0x30] sm:$0xff]
        %v2507 = vld [vmem:[%s6 + $0x38] sm:$0xff]
        %v2508 = vlaneseq
        %v2509 = vshrl.u32 %v2508, 7
        %v2510 = vsub.s32 3, %v2509
        %v2511 = vrot.slane %v326, %v2510
        %vm2512 = vcmask 523264
        %v2514 = vsel %vm2512, %v2498, 0
        %v2517 = vsel %vm2512, %v2499, 0
        %2519 = vmatprep.subr.mxu0 0.0
        %2520 = vmatpush1.msra.mxu0 %v2500
        %2521 = vmatprep.subr.mxu0 0.0
        %2522 = vmatpush1.msra.mxu0 %v2501
        %2523 = vmatprep.subr.mxu0 0.0
        %2524 = vmatpush1.msra.mxu0 %v2502
        %2525 = vmatprep.subr.mxu0 0.0
        %2526 = vmatpush1.msra.mxu0 %v2503
        %2527 = vmatprep.subr.mxu0 0.0
        %2528 = vmatpush1.msra.mxu0 %v2504
        %2529 = vmatprep.subr.mxu0 0.0
        %2530 = vmatpush1.msra.mxu0 %v2505
        %2531 = vmatprep.subr.mxu0 0.0
        %2532 = vmatpush1.msra.mxu0 %v2506
        %2533 = vmatprep.subr.mxu0 0.0
        %2534 = vmatpush1.msra.mxu0 %v2507
        %2535 = vmatprep.subr.mxu0 0.0
        %2536 = vmatpush1.msra.mxu0 0.0
        %2537 = vmatprep.subr.mxu0 0.0
        %2538 = vmatpush1.msra.mxu0 0.0
        %2539 = vmatprep.subr.mxu0 0.0
        %2540 = vmatpush1.msra.mxu0 0.0
        %2541 = vmatprep.subr.mxu0 0.0
        %2542 = vmatpush1.msra.mxu0 0.0
        %2543 = vmatprep.subr.mxu0 0.0
        %2544 = vmatpush1.msra.mxu0 0.0
        %2545 = vmatprep.subr.mxu0 0.0
        %2546 = vmatpush1.msra.mxu0 0.0
        %2547 = vmatprep.subr.mxu0 0.0
        %2548 = vmatpush1.msra.mxu0 0.0
        %2549 = vmatprep.subr.mxu0 0.0
        %2550 = vmatpush1.msra.mxu0 0.0
        %2551 = vmatprep.subr.mxu0 0.0
        %2552 = vmatpush1.msra.mxu0 0.0
        %2553 = vmatprep.subr.mxu0 0.0
        %2554 = vmatpush1.msra.mxu0 0.0
        %2555 = vmatprep.subr.mxu0 0.0
        %2556 = vmatpush1.msra.mxu0 0.0
        %2557 = vmatprep.subr.mxu0 0.0
        %2558 = vmatpush1.msra.mxu0 0.0
        %2559 = vmatprep.subr.mxu0 0.0
        %2560 = vmatpush1.msra.mxu0 0.0
        %2561 = vmatprep.subr.mxu0 0.0
        %2562 = vmatpush1.msra.mxu0 0.0
        %2563 = vmatprep.subr.mxu0 0.0
        %2564 = vmatpush1.msra.mxu0 0.0
        %2565 = vmatprep.subr.mxu0 0.0
        %2566 = vmatpush1.msra.mxu0 0.0
        %2567 = vmatprep.subr.mxu0 0.0
        %2568 = vmatpush1.msra.mxu0 0.0
        %2569 = vmatprep.subr.mxu0 0.0
        %2570 = vmatpush1.msra.mxu0 0.0
        %2571 = vmatprep.subr.mxu0 0.0
        %2572 = vmatpush1.msra.mxu0 0.0
        %2573 = vmatprep.subr.mxu0 0.0
        %2574 = vmatpush1.msra.mxu0 0.0
        %2575 = vmatprep.subr.mxu0 0.0
        %2576 = vmatpush1.msra.mxu0 0.0
        %2577 = vmatprep.subr.mxu0 0.0
        %2578 = vmatpush1.msra.mxu0 0.0
        %2579 = vmatprep.subr.mxu0 0.0
        %2580 = vmatpush1.msra.mxu0 0.0
        %2581 = vmatprep.subr.mxu0 0.0
        %2582 = vmatpush1.msra.mxu0 0.0
        %2583 = vmatprep.mubr.f32.mxu0 0.0
        %2584 = vmatmul.mubr.f32.gmra.mrb[0].mxu0 %v2514
        %v2585 = vpop.f32.mrb[0].mxu0
        %v2586 = vadd.f32 %v2511, %v2585
        %v2587 = vpop.f32.mrb[0].mxu0
        %2588 = vmatprep.mubr.f32.mxu0 0.0
        %2589 = vmatmul.mubr.f32.gmra.mrb[0].mxu0 %v2517
        %v2590 = vpop.f32.mrb[0].mxu0
        %v2591 = vadd.f32 %v2511, %v2590
        %v2592 = vpop.f32.mrb[0].mxu0
        %2593 = vdwg.mxu0
        %v2594 = vadd.f32 %v2586, %v2395
        %v2595 = vadd.f32 %v2591, %v2396
        %v2596 = vsel %vm338, %v2594, 0.0
        %2597 = vadd.xlane.f32.xlu0 %v2596
        %v2598 = vpop.xlane.xlu0 %2597
        %v2599 = vsel %vm338, %v2595, 0.0
        %2600 = vadd.xlane.f32.xlu0 %v2599
        %v2601 = vpop.xlane.xlu0 %2600
        %v2602 = vmul.f32 %v2598, %v2364
        %v2603 = vmul.f32 %v2601, %v2364
        %v2604 = vsub.f32 %v2594, %v2602
        %v2605 = vsub.f32 %v2595, %v2603
        %v2606 = vmul.f32 %v2604, %v2604
        %v2607 = vmul.f32 %v2605, %v2605
        %v2608 = vsel %vm338, %v2606, 0.0
        %2609 = vadd.xlane.f32.xlu0 %v2608
        %v2610 = vpop.xlane.xlu0 %2609
        %v2611 = vsel %vm338, %v2607, 0.0
        %2612 = vadd.xlane.f32.xlu0 %v2611
        %v2613 = vpop.xlane.xlu0 %2612
        %v2614 = vmul.f32 %v2610, %v2364
        %v2615 = vmul.f32 %v2613, %v2364
        %v2616 = vadd.f32 %v2614, 1e-12
        %v2617 = vadd.f32 %v2615, 1e-12
        %v2618 = vrsqrt.pop %v2616
        %v2619 = vrsqrt.pop %v2617
        %v2620 = vmul.f32 %v2604, %v2618
        %v2621 = vmul.f32 %v2605, %v2619
        %v2622 = vlaneseq
        %v2623 = vshrl.u32 %v2622, 7
        %v2624 = vsub.s32 4, %v2623
        %v2625 = vrot.slane %v326, %v2624
        %v2626 = vmul.f32 %v2620, %v2625
        %v2627 = vmul.f32 %v2621, %v2625
        %v2628 = vlaneseq
        %v2629 = vshrl.u32 %v2628, 7
        %v2630 = vsub.s32 5, %v2629
        %v2631 = vrot.slane %v326, %v2630
        %v2632 = vadd.f32 %v2626, %v2631
        %v2633 = vadd.f32 %v2627, %v2631
        %2634 = vst.msk [vmem:[%s323] sm:$0xff] %vm338, %v2632
        %2635 = vst.msk [vmem:[%s323 + $0x8] sm:$0xff] %vm338, %v2633
        %s2636 = scalar_lea.vmem %s7, 8
        %v2637 = vld [vmem:[%s2636] sm:$0x3f]
        %s2638 = scalar_lea.vmem %s1, 32
        %v2639 = vld [vmem:[%s2638] sm:$0xff]
        %v2640 = vld [vmem:[%s2638 + $0x8] sm:$0xff]
        %v2641 = vld [vmem:[%s2638 + $0x10] sm:$0xff]
        %v2642 = vld [vmem:[%s2638 + $0x18] sm:$0xff]
        %s2643 = scalar_lea.vmem %s2, 1
        %v2644 = vld [vmem:[%s2643] sm:$0x1]
        %v2646 = vlaneseq
        %v2647 = vshrl.u32 %v2646, 7
        %v2648 = vsub.s32 0, %v2647
        %v2649 = vrot.slane %v2644, %v2648
        %v2652 = vsel %vm338, %v2632, 0
        %v2655 = vsel %vm338, %v2633, 0
        %2657 = vmatprep.subr.mxu0 0.0
        %2658 = vmatpush1.msra.mxu0 %v2639
        %2659 = vmatprep.subr.mxu0 0.0
        %2660 = vmatpush1.msra.mxu0 %v2640
        %2661 = vmatprep.subr.mxu0 0.0
        %2662 = vmatpush1.msra.mxu0 %v2641
        %2663 = vmatprep.subr.mxu0 0.0
        %2664 = vmatpush1.msra.mxu0 %v2642
        %2665 = vmatprep.subr.mxu0 0.0
        %2666 = vmatpush1.msra.mxu0 0.0
        %2667 = vmatprep.subr.mxu0 0.0
        %2668 = vmatpush1.msra.mxu0 0.0
        %2669 = vmatprep.subr.mxu0 0.0
        %2670 = vmatpush1.msra.mxu0 0.0
        %2671 = vmatprep.subr.mxu0 0.0
        %2672 = vmatpush1.msra.mxu0 0.0
        %2673 = vmatprep.subr.mxu0 0.0
        %2674 = vmatpush1.msra.mxu0 0.0
        %2675 = vmatprep.subr.mxu0 0.0
        %2676 = vmatpush1.msra.mxu0 0.0
        %2677 = vmatprep.subr.mxu0 0.0
        %2678 = vmatpush1.msra.mxu0 0.0
        %2679 = vmatprep.subr.mxu0 0.0
        %2680 = vmatpush1.msra.mxu0 0.0
        %2681 = vmatprep.subr.mxu0 0.0
        %2682 = vmatpush1.msra.mxu0 0.0
        %2683 = vmatprep.subr.mxu0 0.0
        %2684 = vmatpush1.msra.mxu0 0.0
        %2685 = vmatprep.subr.mxu0 0.0
        %2686 = vmatpush1.msra.mxu0 0.0
        %2687 = vmatprep.subr.mxu0 0.0
        %2688 = vmatpush1.msra.mxu0 0.0
        %2689 = vmatprep.subr.mxu0 0.0
        %2690 = vmatpush1.msra.mxu0 0.0
        %2691 = vmatprep.subr.mxu0 0.0
        %2692 = vmatpush1.msra.mxu0 0.0
        %2693 = vmatprep.subr.mxu0 0.0
        %2694 = vmatpush1.msra.mxu0 0.0
        %2695 = vmatprep.subr.mxu0 0.0
        %2696 = vmatpush1.msra.mxu0 0.0
        %2697 = vmatprep.subr.mxu0 0.0
        %2698 = vmatpush1.msra.mxu0 0.0
        %2699 = vmatprep.subr.mxu0 0.0
        %2700 = vmatpush1.msra.mxu0 0.0
        %2701 = vmatprep.subr.mxu0 0.0
        %2702 = vmatpush1.msra.mxu0 0.0
        %2703 = vmatprep.subr.mxu0 0.0
        %2704 = vmatpush1.msra.mxu0 0.0
        %2705 = vmatprep.subr.mxu0 0.0
        %2706 = vmatpush1.msra.mxu0 0.0
        %2707 = vmatprep.subr.mxu0 0.0
        %2708 = vmatpush1.msra.mxu0 0.0
        %2709 = vmatprep.subr.mxu0 0.0
        %2710 = vmatpush1.msra.mxu0 0.0
        %2711 = vmatprep.subr.mxu0 0.0
        %2712 = vmatpush1.msra.mxu0 0.0
        %2713 = vmatprep.subr.mxu0 0.0
        %2714 = vmatpush1.msra.mxu0 0.0
        %2715 = vmatprep.subr.mxu0 0.0
        %2716 = vmatpush1.msra.mxu0 0.0
        %2717 = vmatprep.subr.mxu0 0.0
        %2718 = vmatpush1.msra.mxu0 0.0
        %2719 = vmatprep.subr.mxu0 0.0
        %2720 = vmatpush1.msra.mxu0 0.0
        %2721 = vmatprep.mubr.f32.mxu0 0.0
        %2722 = vmatmul.mubr.f32.gmra.mrb[0].mxu0 %v2652
        %v2723 = vpop.f32.mrb[0].mxu0
        %v2724 = vadd.f32 %v2649, %v2723
        %v2725 = vpop.f32.mrb[0].mxu0
        %2726 = vmatprep.mubr.f32.mxu0 0.0
        %2727 = vmatmul.mubr.f32.gmra.mrb[0].mxu0 %v2655
        %v2728 = vpop.f32.mrb[0].mxu0
        %v2729 = vadd.f32 %v2649, %v2728
        %v2730 = vpop.f32.mrb[0].mxu0
        %2731 = vdwg.mxu0
        %s2732 = scalar_lea.vmem %s3, 32
        %v2733 = vld [vmem:[%s2732] sm:$0xff]
        %v2734 = vld [vmem:[%s2732 + $0x8] sm:$0xff]
        %v2735 = vld [vmem:[%s2732 + $0x10] sm:$0xff]
        %v2736 = vld [vmem:[%s2732 + $0x18] sm:$0xff]
        %2738 = vrot.lane.b32.xlu0 %v2724, 96
        %v2739 = vpop.permute.xlu0 %2738
        %v2740 = vsel %vm427, %v2724, 0
        %v2742 = vsel %vm427, %v2739, 0
        %2744 = vmatprep.subr.mxu0 0.0
        %2745 = vmatpush1.xpose.msra.mxu0 %v2742
        %2746 = vmatprep.subr.mxu0 0.0
        %2747 = vmatpush1.xpose.msra.mxu0 0.0
        %2748 = vmatprep.subr.mxu0 0.0
        %2749 = vmatpush1.xpose.msra.mxu0 0.0
        %2750 = vmatprep.subr.mxu0 0.0
        %2751 = vmatpush1.xpose.msra.mxu0 0.0
        %2752 = vmatprep.subr.mxu0 0.0
        %2753 = vmatpush1.xpose.msra.mxu0 0.0
        %2754 = vmatprep.subr.mxu0 0.0
        %2755 = vmatpush1.xpose.msra.mxu0 0.0
        %2756 = vmatprep.subr.mxu0 0.0
        %2757 = vmatpush1.xpose.msra.mxu0 0.0
        %2758 = vmatprep.subr.mxu0 0.0
        %2759 = vmatpush1.xpose.msra.mxu0 0.0
        %2760 = vmatprep.subr.mxu0 0.0
        %2761 = vmatpush1.xpose.msra.mxu0 0.0
        %2762 = vmatprep.subr.mxu0 0.0
        %2763 = vmatpush1.xpose.msra.mxu0 0.0
        %2764 = vmatprep.subr.mxu0 0.0
        %2765 = vmatpush1.xpose.msra.mxu0 0.0
        %2766 = vmatprep.subr.mxu0 0.0
        %2767 = vmatpush1.xpose.msra.mxu0 0.0
        %2768 = vmatprep.subr.mxu0 0.0
        %2769 = vmatpush1.xpose.msra.mxu0 0.0
        %2770 = vmatprep.subr.mxu0 0.0
        %2771 = vmatpush1.xpose.msra.mxu0 0.0
        %2772 = vmatprep.subr.mxu0 0.0
        %2773 = vmatpush1.xpose.msra.mxu0 0.0
        %2774 = vmatprep.subr.mxu0 0.0
        %2775 = vmatpush1.xpose.msra.mxu0 0.0
        %2776 = vmatprep.subr.mxu0 0.0
        %2777 = vmatpush1.xpose.msra.mxu0 0.0
        %2778 = vmatprep.subr.mxu0 0.0
        %2779 = vmatpush1.xpose.msra.mxu0 0.0
        %2780 = vmatprep.subr.mxu0 0.0
        %2781 = vmatpush1.xpose.msra.mxu0 0.0
        %2782 = vmatprep.subr.mxu0 0.0
        %2783 = vmatpush1.xpose.msra.mxu0 0.0
        %2784 = vmatprep.subr.mxu0 0.0
        %2785 = vmatpush1.xpose.msra.mxu0 0.0
        %2786 = vmatprep.subr.mxu0 0.0
        %2787 = vmatpush1.xpose.msra.mxu0 0.0
        %2788 = vmatprep.subr.mxu0 0.0
        %2789 = vmatpush1.xpose.msra.mxu0 0.0
        %2790 = vmatprep.subr.mxu0 0.0
        %2791 = vmatpush1.xpose.msra.mxu0 0.0
        %2792 = vmatprep.subr.mxu0 0.0
        %2793 = vmatpush1.xpose.msra.mxu0 0.0
        %2794 = vmatprep.subr.mxu0 0.0
        %2795 = vmatpush1.xpose.msra.mxu0 0.0
        %2796 = vmatprep.subr.mxu0 0.0
        %2797 = vmatpush1.xpose.msra.mxu0 0.0
        %2798 = vmatprep.subr.mxu0 0.0
        %2799 = vmatpush1.xpose.msra.mxu0 0.0
        %2800 = vmatprep.subr.mxu0 0.0
        %2801 = vmatpush1.xpose.msra.mxu0 0.0
        %2802 = vmatprep.subr.mxu0 0.0
        %2803 = vmatpush1.xpose.msra.mxu0 0.0
        %2804 = vmatprep.subr.mxu0 0.0
        %2805 = vmatpush1.xpose.msra.mxu0 0.0
        %2806 = vmatprep.subr.mxu0 0.0
        %2807 = vmatpush1.xpose.msra.mxu0 0.0
        %2808 = vmatprep.mubr.f32.mxu0 0.0
        %2809 = vmatmul.mubr.f32.gmra.mrb[0].mxu0 %v2740
        %v2810 = vpop.f32.mrb[0].mxu0
        %v2811 = vadd.f32 0.0, %v2810
        %v2812 = vpop.f32.mrb[0].mxu0
        %2813 = vdwg.mxu0
        %v2814 = vsel %vm502, %v2811, -inf
        %2815 = vmax.xlane.f32.xlu0 %v2814
        %v2816 = vpop.xlane.xlu0 %2815
        %v2817 = vsub.f32 %v2811, %v2816
        %v2818 = vmul.f32 %v2817, 1.442695
        %v2819 = vpow.pop %v2818
        %v2820 = vsel %vm502, %v2819, 0.0
        %2821 = vadd.xlane.f32.xlu0 %v2820
        %v2822 = vpop.xlane.xlu0 %2821
        %v2823 = vrcp.pop %v2822
        %v2824 = vmul.f32 %v2819, %v2823
        %2825 = vrot.lane.b32.xlu0 %v2724, 64
        %v2826 = vpop.permute.xlu0 %2825
        %v2828 = vsel %vm516, %v2824, 0
        %v2830 = vsel %vm520, %v2826, 0
        %2832 = vmatprep.subr.mxu0 0.0
        %2833 = vmatpush1.msra.mxu0 %v2830
        %2834 = vmatprep.subr.mxu0 0.0
        %2835 = vmatpush1.msra.mxu0 0.0
        %2836 = vmatprep.subr.mxu0 0.0
        %2837 = vmatpush1.msra.mxu0 0.0
        %2838 = vmatprep.subr.mxu0 0.0
        %2839 = vmatpush1.msra.mxu0 0.0
        %2840 = vmatprep.subr.mxu0 0.0
        %2841 = vmatpush1.msra.mxu0 0.0
        %2842 = vmatprep.subr.mxu0 0.0
        %2843 = vmatpush1.msra.mxu0 0.0
        %2844 = vmatprep.subr.mxu0 0.0
        %2845 = vmatpush1.msra.mxu0 0.0
        %2846 = vmatprep.subr.mxu0 0.0
        %2847 = vmatpush1.msra.mxu0 0.0
        %2848 = vmatprep.subr.mxu0 0.0
        %2849 = vmatpush1.msra.mxu0 0.0
        %2850 = vmatprep.subr.mxu0 0.0
        %2851 = vmatpush1.msra.mxu0 0.0
        %2852 = vmatprep.subr.mxu0 0.0
        %2853 = vmatpush1.msra.mxu0 0.0
        %2854 = vmatprep.subr.mxu0 0.0
        %2855 = vmatpush1.msra.mxu0 0.0
        %2856 = vmatprep.subr.mxu0 0.0
        %2857 = vmatpush1.msra.mxu0 0.0
        %2858 = vmatprep.subr.mxu0 0.0
        %2859 = vmatpush1.msra.mxu0 0.0
        %2860 = vmatprep.subr.mxu0 0.0
        %2861 = vmatpush1.msra.mxu0 0.0
        %2862 = vmatprep.subr.mxu0 0.0
        %2863 = vmatpush1.msra.mxu0 0.0
        %2864 = vmatprep.subr.mxu0 0.0
        %2865 = vmatpush1.msra.mxu0 0.0
        %2866 = vmatprep.subr.mxu0 0.0
        %2867 = vmatpush1.msra.mxu0 0.0
        %2868 = vmatprep.subr.mxu0 0.0
        %2869 = vmatpush1.msra.mxu0 0.0
        %2870 = vmatprep.subr.mxu0 0.0
        %2871 = vmatpush1.msra.mxu0 0.0
        %2872 = vmatprep.subr.mxu0 0.0
        %2873 = vmatpush1.msra.mxu0 0.0
        %2874 = vmatprep.subr.mxu0 0.0
        %2875 = vmatpush1.msra.mxu0 0.0
        %2876 = vmatprep.subr.mxu0 0.0
        %2877 = vmatpush1.msra.mxu0 0.0
        %2878 = vmatprep.subr.mxu0 0.0
        %2879 = vmatpush1.msra.mxu0 0.0
        %2880 = vmatprep.subr.mxu0 0.0
        %2881 = vmatpush1.msra.mxu0 0.0
        %2882 = vmatprep.subr.mxu0 0.0
        %2883 = vmatpush1.msra.mxu0 0.0
        %2884 = vmatprep.subr.mxu0 0.0
        %2885 = vmatpush1.msra.mxu0 0.0
        %2886 = vmatprep.subr.mxu0 0.0
        %2887 = vmatpush1.msra.mxu0 0.0
        %2888 = vmatprep.subr.mxu0 0.0
        %2889 = vmatpush1.msra.mxu0 0.0
        %2890 = vmatprep.subr.mxu0 0.0
        %2891 = vmatpush1.msra.mxu0 0.0
        %2892 = vmatprep.subr.mxu0 0.0
        %2893 = vmatpush1.msra.mxu0 0.0
        %2894 = vmatprep.subr.mxu0 0.0
        %2895 = vmatpush1.msra.mxu0 0.0
        %2896 = vmatprep.mubr.f32.mxu0 0.0
        %2897 = vmatmul.mubr.f32.gmra.mrb[0].mxu0 %v2828
        %v2898 = vpop.f32.mrb[0].mxu0
        %v2899 = vadd.f32 0.0, %v2898
        %v2900 = vpop.f32.mrb[0].mxu0
        %2901 = vdwg.mxu0
        %2902 = vrot.lane.b32.xlu0 %v2724, 112
        %v2903 = vpop.permute.xlu0 %2902
        %2904 = vrot.lane.b32.xlu0 %v2724, 80
        %v2905 = vpop.permute.xlu0 %2904
        %v2906 = vsel %vm427, %v2903, 0
        %v2908 = vsel %vm427, %v2905, 0
        %2910 = vmatprep.subr.mxu0 0.0
        %2911 = vmatpush1.xpose.msra.mxu0 %v2908
        %2912 = vmatprep.subr.mxu0 0.0
        %2913 = vmatpush1.xpose.msra.mxu0 0.0
        %2914 = vmatprep.subr.mxu0 0.0
        %2915 = vmatpush1.xpose.msra.mxu0 0.0
        %2916 = vmatprep.subr.mxu0 0.0
        %2917 = vmatpush1.xpose.msra.mxu0 0.0
        %2918 = vmatprep.subr.mxu0 0.0
        %2919 = vmatpush1.xpose.msra.mxu0 0.0
        %2920 = vmatprep.subr.mxu0 0.0
        %2921 = vmatpush1.xpose.msra.mxu0 0.0
        %2922 = vmatprep.subr.mxu0 0.0
        %2923 = vmatpush1.xpose.msra.mxu0 0.0
        %2924 = vmatprep.subr.mxu0 0.0
        %2925 = vmatpush1.xpose.msra.mxu0 0.0
        %2926 = vmatprep.subr.mxu0 0.0
        %2927 = vmatpush1.xpose.msra.mxu0 0.0
        %2928 = vmatprep.subr.mxu0 0.0
        %2929 = vmatpush1.xpose.msra.mxu0 0.0
        %2930 = vmatprep.subr.mxu0 0.0
        %2931 = vmatpush1.xpose.msra.mxu0 0.0
        %2932 = vmatprep.subr.mxu0 0.0
        %2933 = vmatpush1.xpose.msra.mxu0 0.0
        %2934 = vmatprep.subr.mxu0 0.0
        %2935 = vmatpush1.xpose.msra.mxu0 0.0
        %2936 = vmatprep.subr.mxu0 0.0
        %2937 = vmatpush1.xpose.msra.mxu0 0.0
        %2938 = vmatprep.subr.mxu0 0.0
        %2939 = vmatpush1.xpose.msra.mxu0 0.0
        %2940 = vmatprep.subr.mxu0 0.0
        %2941 = vmatpush1.xpose.msra.mxu0 0.0
        %2942 = vmatprep.subr.mxu0 0.0
        %2943 = vmatpush1.xpose.msra.mxu0 0.0
        %2944 = vmatprep.subr.mxu0 0.0
        %2945 = vmatpush1.xpose.msra.mxu0 0.0
        %2946 = vmatprep.subr.mxu0 0.0
        %2947 = vmatpush1.xpose.msra.mxu0 0.0
        %2948 = vmatprep.subr.mxu0 0.0
        %2949 = vmatpush1.xpose.msra.mxu0 0.0
        %2950 = vmatprep.subr.mxu0 0.0
        %2951 = vmatpush1.xpose.msra.mxu0 0.0
        %2952 = vmatprep.subr.mxu0 0.0
        %2953 = vmatpush1.xpose.msra.mxu0 0.0
        %2954 = vmatprep.subr.mxu0 0.0
        %2955 = vmatpush1.xpose.msra.mxu0 0.0
        %2956 = vmatprep.subr.mxu0 0.0
        %2957 = vmatpush1.xpose.msra.mxu0 0.0
        %2958 = vmatprep.subr.mxu0 0.0
        %2959 = vmatpush1.xpose.msra.mxu0 0.0
        %2960 = vmatprep.subr.mxu0 0.0
        %2961 = vmatpush1.xpose.msra.mxu0 0.0
        %2962 = vmatprep.subr.mxu0 0.0
        %2963 = vmatpush1.xpose.msra.mxu0 0.0
        %2964 = vmatprep.subr.mxu0 0.0
        %2965 = vmatpush1.xpose.msra.mxu0 0.0
        %2966 = vmatprep.subr.mxu0 0.0
        %2967 = vmatpush1.xpose.msra.mxu0 0.0
        %2968 = vmatprep.subr.mxu0 0.0
        %2969 = vmatpush1.xpose.msra.mxu0 0.0
        %2970 = vmatprep.subr.mxu0 0.0
        %2971 = vmatpush1.xpose.msra.mxu0 0.0
        %2972 = vmatprep.subr.mxu0 0.0
        %2973 = vmatpush1.xpose.msra.mxu0 0.0
        %2974 = vmatprep.mubr.f32.mxu0 0.0
        %2975 = vmatmul.mubr.f32.gmra.mrb[0].mxu0 %v2906
        %v2976 = vpop.f32.mrb[0].mxu0
        %v2977 = vadd.f32 0.0, %v2976
        %v2978 = vpop.f32.mrb[0].mxu0
        %2979 = vdwg.mxu0
        %v2980 = vsel %vm502, %v2977, -inf
        %2981 = vmax.xlane.f32.xlu0 %v2980
        %v2982 = vpop.xlane.xlu0 %2981
        %v2983 = vsub.f32 %v2977, %v2982
        %v2984 = vmul.f32 %v2983, 1.442695
        %v2985 = vpow.pop %v2984
        %v2986 = vsel %vm502, %v2985, 0.0
        %2987 = vadd.xlane.f32.xlu0 %v2986
        %v2988 = vpop.xlane.xlu0 %2987
        %v2989 = vrcp.pop %v2988
        %v2990 = vmul.f32 %v2985, %v2989
        %2991 = vrot.lane.b32.xlu0 %v2724, 48
        %v2992 = vpop.permute.xlu0 %2991
        %v2994 = vsel %vm516, %v2990, 0
        %v2996 = vsel %vm520, %v2992, 0
        %2998 = vmatprep.subr.mxu0 0.0
        %2999 = vmatpush1.msra.mxu0 %v2996
        %3000 = vmatprep.subr.mxu0 0.0
        %3001 = vmatpush1.msra.mxu0 0.0
        %3002 = vmatprep.subr.mxu0 0.0
        %3003 = vmatpush1.msra.mxu0 0.0
        %3004 = vmatprep.subr.mxu0 0.0
        %3005 = vmatpush1.msra.mxu0 0.0
        %3006 = vmatprep.subr.mxu0 0.0
        %3007 = vmatpush1.msra.mxu0 0.0
        %3008 = vmatprep.subr.mxu0 0.0
        %3009 = vmatpush1.msra.mxu0 0.0
        %3010 = vmatprep.subr.mxu0 0.0
        %3011 = vmatpush1.msra.mxu0 0.0
        %3012 = vmatprep.subr.mxu0 0.0
        %3013 = vmatpush1.msra.mxu0 0.0
        %3014 = vmatprep.subr.mxu0 0.0
        %3015 = vmatpush1.msra.mxu0 0.0
        %3016 = vmatprep.subr.mxu0 0.0
        %3017 = vmatpush1.msra.mxu0 0.0
        %3018 = vmatprep.subr.mxu0 0.0
        %3019 = vmatpush1.msra.mxu0 0.0
        %3020 = vmatprep.subr.mxu0 0.0
        %3021 = vmatpush1.msra.mxu0 0.0
        %3022 = vmatprep.subr.mxu0 0.0
        %3023 = vmatpush1.msra.mxu0 0.0
        %3024 = vmatprep.subr.mxu0 0.0
        %3025 = vmatpush1.msra.mxu0 0.0
        %3026 = vmatprep.subr.mxu0 0.0
        %3027 = vmatpush1.msra.mxu0 0.0
        %3028 = vmatprep.subr.mxu0 0.0
        %3029 = vmatpush1.msra.mxu0 0.0
        %3030 = vmatprep.subr.mxu0 0.0
        %3031 = vmatpush1.msra.mxu0 0.0
        %3032 = vmatprep.subr.mxu0 0.0
        %3033 = vmatpush1.msra.mxu0 0.0
        %3034 = vmatprep.subr.mxu0 0.0
        %3035 = vmatpush1.msra.mxu0 0.0
        %3036 = vmatprep.subr.mxu0 0.0
        %3037 = vmatpush1.msra.mxu0 0.0
        %3038 = vmatprep.subr.mxu0 0.0
        %3039 = vmatpush1.msra.mxu0 0.0
        %3040 = vmatprep.subr.mxu0 0.0
        %3041 = vmatpush1.msra.mxu0 0.0
        %3042 = vmatprep.subr.mxu0 0.0
        %3043 = vmatpush1.msra.mxu0 0.0
        %3044 = vmatprep.subr.mxu0 0.0
        %3045 = vmatpush1.msra.mxu0 0.0
        %3046 = vmatprep.subr.mxu0 0.0
        %3047 = vmatpush1.msra.mxu0 0.0
        %3048 = vmatprep.subr.mxu0 0.0
        %3049 = vmatpush1.msra.mxu0 0.0
        %3050 = vmatprep.subr.mxu0 0.0
        %3051 = vmatpush1.msra.mxu0 0.0
        %3052 = vmatprep.subr.mxu0 0.0
        %3053 = vmatpush1.msra.mxu0 0.0
        %3054 = vmatprep.subr.mxu0 0.0
        %3055 = vmatpush1.msra.mxu0 0.0
        %3056 = vmatprep.subr.mxu0 0.0
        %3057 = vmatpush1.msra.mxu0 0.0
        %3058 = vmatprep.subr.mxu0 0.0
        %3059 = vmatpush1.msra.mxu0 0.0
        %3060 = vmatprep.subr.mxu0 0.0
        %3061 = vmatpush1.msra.mxu0 0.0
        %3062 = vmatprep.mubr.f32.mxu0 0.0
        %3063 = vmatmul.mubr.f32.gmra.mrb[0].mxu0 %v2994
        %v3064 = vpop.f32.mrb[0].mxu0
        %v3065 = vadd.f32 0.0, %v3064
        %v3066 = vpop.f32.mrb[0].mxu0
        %3067 = vdwg.mxu0
        %v3069 = vsel %vm427, %v3065, 0
        %3071 = vmatprep.subr.mxu0 0.0
        %3072 = vmatpush1.msra.mxu0 %v2735
        %3073 = vmatprep.subr.mxu0 0.0
        %3074 = vmatpush1.msra.mxu0 %v2736
        %3075 = vmatprep.subr.mxu0 0.0
        %3076 = vmatpush1.msra.mxu0 0.0
        %3077 = vmatprep.subr.mxu0 0.0
        %3078 = vmatpush1.msra.mxu0 0.0
        %3079 = vmatprep.subr.mxu0 0.0
        %3080 = vmatpush1.msra.mxu0 0.0
        %3081 = vmatprep.subr.mxu0 0.0
        %3082 = vmatpush1.msra.mxu0 0.0
        %3083 = vmatprep.subr.mxu0 0.0
        %3084 = vmatpush1.msra.mxu0 0.0
        %3085 = vmatprep.subr.mxu0 0.0
        %3086 = vmatpush1.msra.mxu0 0.0
        %3087 = vmatprep.subr.mxu0 0.0
        %3088 = vmatpush1.msra.mxu0 0.0
        %3089 = vmatprep.subr.mxu0 0.0
        %3090 = vmatpush1.msra.mxu0 0.0
        %3091 = vmatprep.subr.mxu0 0.0
        %3092 = vmatpush1.msra.mxu0 0.0
        %3093 = vmatprep.subr.mxu0 0.0
        %3094 = vmatpush1.msra.mxu0 0.0
        %3095 = vmatprep.subr.mxu0 0.0
        %3096 = vmatpush1.msra.mxu0 0.0
        %3097 = vmatprep.subr.mxu0 0.0
        %3098 = vmatpush1.msra.mxu0 0.0
        %3099 = vmatprep.subr.mxu0 0.0
        %3100 = vmatpush1.msra.mxu0 0.0
        %3101 = vmatprep.subr.mxu0 0.0
        %3102 = vmatpush1.msra.mxu0 0.0
        %3103 = vmatprep.subr.mxu0 0.0
        %3104 = vmatpush1.msra.mxu0 0.0
        %3105 = vmatprep.subr.mxu0 0.0
        %3106 = vmatpush1.msra.mxu0 0.0
        %3107 = vmatprep.subr.mxu0 0.0
        %3108 = vmatpush1.msra.mxu0 0.0
        %3109 = vmatprep.subr.mxu0 0.0
        %3110 = vmatpush1.msra.mxu0 0.0
        %3111 = vmatprep.subr.mxu0 0.0
        %3112 = vmatpush1.msra.mxu0 0.0
        %3113 = vmatprep.subr.mxu0 0.0
        %3114 = vmatpush1.msra.mxu0 0.0
        %3115 = vmatprep.subr.mxu0 0.0
        %3116 = vmatpush1.msra.mxu0 0.0
        %3117 = vmatprep.subr.mxu0 0.0
        %3118 = vmatpush1.msra.mxu0 0.0
        %3119 = vmatprep.subr.mxu0 0.0
        %3120 = vmatpush1.msra.mxu0 0.0
        %3121 = vmatprep.subr.mxu0 0.0
        %3122 = vmatpush1.msra.mxu0 0.0
        %3123 = vmatprep.subr.mxu0 0.0
        %3124 = vmatpush1.msra.mxu0 0.0
        %3125 = vmatprep.subr.mxu0 0.0
        %3126 = vmatpush1.msra.mxu0 0.0
        %3127 = vmatprep.subr.mxu0 0.0
        %3128 = vmatpush1.msra.mxu0 0.0
        %3129 = vmatprep.subr.mxu0 0.0
        %3130 = vmatpush1.msra.mxu0 0.0
        %3131 = vmatprep.subr.mxu0 0.0
        %3132 = vmatpush1.msra.mxu0 0.0
        %3133 = vmatprep.subr.mxu0 0.0
        %3134 = vmatpush1.msra.mxu0 0.0
        %3135 = vmatprep.mubr.f32.mxu0 0.0
        %3136 = vmatmul.mubr.f32.gmra.mrb[0].mxu0 %v3069
        %v3137 = vpop.f32.mrb[0].mxu0
        %v3138 = vadd.f32 0.0, %v3137
        %v3139 = vpop.f32.mrb[0].mxu0
        %3140 = vdwg.mxu0
        %v3142 = vsel %vm427, %v2899, 0
        %3144 = vmatprep.subr.mxu0 0.0
        %3145 = vmatpush1.msra.mxu0 %v2733
        %3146 = vmatprep.subr.mxu0 0.0
        %3147 = vmatpush1.msra.mxu0 %v2734
        %3148 = vmatprep.subr.mxu0 0.0
        %3149 = vmatpush1.msra.mxu0 0.0
        %3150 = vmatprep.subr.mxu0 0.0
        %3151 = vmatpush1.msra.mxu0 0.0
        %3152 = vmatprep.subr.mxu0 0.0
        %3153 = vmatpush1.msra.mxu0 0.0
        %3154 = vmatprep.subr.mxu0 0.0
        %3155 = vmatpush1.msra.mxu0 0.0
        %3156 = vmatprep.subr.mxu0 0.0
        %3157 = vmatpush1.msra.mxu0 0.0
        %3158 = vmatprep.subr.mxu0 0.0
        %3159 = vmatpush1.msra.mxu0 0.0
        %3160 = vmatprep.subr.mxu0 0.0
        %3161 = vmatpush1.msra.mxu0 0.0
        %3162 = vmatprep.subr.mxu0 0.0
        %3163 = vmatpush1.msra.mxu0 0.0
        %3164 = vmatprep.subr.mxu0 0.0
        %3165 = vmatpush1.msra.mxu0 0.0
        %3166 = vmatprep.subr.mxu0 0.0
        %3167 = vmatpush1.msra.mxu0 0.0
        %3168 = vmatprep.subr.mxu0 0.0
        %3169 = vmatpush1.msra.mxu0 0.0
        %3170 = vmatprep.subr.mxu0 0.0
        %3171 = vmatpush1.msra.mxu0 0.0
        %3172 = vmatprep.subr.mxu0 0.0
        %3173 = vmatpush1.msra.mxu0 0.0
        %3174 = vmatprep.subr.mxu0 0.0
        %3175 = vmatpush1.msra.mxu0 0.0
        %3176 = vmatprep.subr.mxu0 0.0
        %3177 = vmatpush1.msra.mxu0 0.0
        %3178 = vmatprep.subr.mxu0 0.0
        %3179 = vmatpush1.msra.mxu0 0.0
        %3180 = vmatprep.subr.mxu0 0.0
        %3181 = vmatpush1.msra.mxu0 0.0
        %3182 = vmatprep.subr.mxu0 0.0
        %3183 = vmatpush1.msra.mxu0 0.0
        %3184 = vmatprep.subr.mxu0 0.0
        %3185 = vmatpush1.msra.mxu0 0.0
        %3186 = vmatprep.subr.mxu0 0.0
        %3187 = vmatpush1.msra.mxu0 0.0
        %3188 = vmatprep.subr.mxu0 0.0
        %3189 = vmatpush1.msra.mxu0 0.0
        %3190 = vmatprep.subr.mxu0 0.0
        %3191 = vmatpush1.msra.mxu0 0.0
        %3192 = vmatprep.subr.mxu0 0.0
        %3193 = vmatpush1.msra.mxu0 0.0
        %3194 = vmatprep.subr.mxu0 0.0
        %3195 = vmatpush1.msra.mxu0 0.0
        %3196 = vmatprep.subr.mxu0 0.0
        %3197 = vmatpush1.msra.mxu0 0.0
        %3198 = vmatprep.subr.mxu0 0.0
        %3199 = vmatpush1.msra.mxu0 0.0
        %3200 = vmatprep.subr.mxu0 0.0
        %3201 = vmatpush1.msra.mxu0 0.0
        %3202 = vmatprep.subr.mxu0 0.0
        %3203 = vmatpush1.msra.mxu0 0.0
        %3204 = vmatprep.subr.mxu0 0.0
        %3205 = vmatpush1.msra.mxu0 0.0
        %3206 = vmatprep.subr.mxu0 0.0
        %3207 = vmatpush1.msra.mxu0 0.0
        %3208 = vmatprep.mubr.f32.mxu0 0.0
        %3209 = vmatmul.mubr.f32.gmra.mrb[0].mxu0 %v3142
        %v3210 = vpop.f32.mrb[0].mxu0
        %v3211 = vadd.f32 %v3138, %v3210
        %v3212 = vpop.f32.mrb[0].mxu0
        %3213 = vdwg.mxu0
        %v3214 = vrot.slane %v2724, 4
        %v3216 = vrot.slane %v2724, 2
        %v3217 = vrot.slane %v2729, 2
        %v3218 = vsel %vm520, %v3216, %v3217
        %3219 = vrot.lane.b32.xlu0 %v3218, 96
        %v3220 = vpop.permute.xlu0 %3219
        %v3221 = vsel %vm427, %v3214, 0
        %v3223 = vsel %vm427, %v3220, 0
        %3225 = vmatprep.subr.mxu0 0.0
        %3226 = vmatpush1.xpose.msra.mxu0 %v3223
        %3227 = vmatprep.subr.mxu0 0.0
        %3228 = vmatpush1.xpose.msra.mxu0 0.0
        %3229 = vmatprep.subr.mxu0 0.0
        %3230 = vmatpush1.xpose.msra.mxu0 0.0
        %3231 = vmatprep.subr.mxu0 0.0
        %3232 = vmatpush1.xpose.msra.mxu0 0.0
        %3233 = vmatprep.subr.mxu0 0.0
        %3234 = vmatpush1.xpose.msra.mxu0 0.0
        %3235 = vmatprep.subr.mxu0 0.0
        %3236 = vmatpush1.xpose.msra.mxu0 0.0
        %3237 = vmatprep.subr.mxu0 0.0
        %3238 = vmatpush1.xpose.msra.mxu0 0.0
        %3239 = vmatprep.subr.mxu0 0.0
        %3240 = vmatpush1.xpose.msra.mxu0 0.0
        %3241 = vmatprep.subr.mxu0 0.0
        %3242 = vmatpush1.xpose.msra.mxu0 0.0
        %3243 = vmatprep.subr.mxu0 0.0
        %3244 = vmatpush1.xpose.msra.mxu0 0.0
        %3245 = vmatprep.subr.mxu0 0.0
        %3246 = vmatpush1.xpose.msra.mxu0 0.0
        %3247 = vmatprep.subr.mxu0 0.0
        %3248 = vmatpush1.xpose.msra.mxu0 0.0
        %3249 = vmatprep.subr.mxu0 0.0
        %3250 = vmatpush1.xpose.msra.mxu0 0.0
        %3251 = vmatprep.subr.mxu0 0.0
        %3252 = vmatpush1.xpose.msra.mxu0 0.0
        %3253 = vmatprep.subr.mxu0 0.0
        %3254 = vmatpush1.xpose.msra.mxu0 0.0
        %3255 = vmatprep.subr.mxu0 0.0
        %3256 = vmatpush1.xpose.msra.mxu0 0.0
        %3257 = vmatprep.subr.mxu0 0.0
        %3258 = vmatpush1.xpose.msra.mxu0 0.0
        %3259 = vmatprep.subr.mxu0 0.0
        %3260 = vmatpush1.xpose.msra.mxu0 0.0
        %3261 = vmatprep.subr.mxu0 0.0
        %3262 = vmatpush1.xpose.msra.mxu0 0.0
        %3263 = vmatprep.subr.mxu0 0.0
        %3264 = vmatpush1.xpose.msra.mxu0 0.0
        %3265 = vmatprep.subr.mxu0 0.0
        %3266 = vmatpush1.xpose.msra.mxu0 0.0
        %3267 = vmatprep.subr.mxu0 0.0
        %3268 = vmatpush1.xpose.msra.mxu0 0.0
        %3269 = vmatprep.subr.mxu0 0.0
        %3270 = vmatpush1.xpose.msra.mxu0 0.0
        %3271 = vmatprep.subr.mxu0 0.0
        %3272 = vmatpush1.xpose.msra.mxu0 0.0
        %3273 = vmatprep.subr.mxu0 0.0
        %3274 = vmatpush1.xpose.msra.mxu0 0.0
        %3275 = vmatprep.subr.mxu0 0.0
        %3276 = vmatpush1.xpose.msra.mxu0 0.0
        %3277 = vmatprep.subr.mxu0 0.0
        %3278 = vmatpush1.xpose.msra.mxu0 0.0
        %3279 = vmatprep.subr.mxu0 0.0
        %3280 = vmatpush1.xpose.msra.mxu0 0.0
        %3281 = vmatprep.subr.mxu0 0.0
        %3282 = vmatpush1.xpose.msra.mxu0 0.0
        %3283 = vmatprep.subr.mxu0 0.0
        %3284 = vmatpush1.xpose.msra.mxu0 0.0
        %3285 = vmatprep.subr.mxu0 0.0
        %3286 = vmatpush1.xpose.msra.mxu0 0.0
        %3287 = vmatprep.subr.mxu0 0.0
        %3288 = vmatpush1.xpose.msra.mxu0 0.0
        %3289 = vmatprep.mubr.f32.mxu0 0.0
        %3290 = vmatmul.mubr.f32.gmra.mrb[0].mxu0 %v3221
        %v3291 = vpop.f32.mrb[0].mxu0
        %v3292 = vadd.f32 0.0, %v3291
        %v3293 = vpop.f32.mrb[0].mxu0
        %3294 = vdwg.mxu0
        %v3295 = vsel %vm986, %v3292, -inf
        %3296 = vmax.xlane.f32.xlu0 %v3295
        %v3297 = vpop.xlane.xlu0 %3296
        %v3298 = vsub.f32 %v3292, %v3297
        %v3299 = vmul.f32 %v3298, 1.442695
        %v3300 = vpow.pop %v3299
        %v3301 = vsel %vm986, %v3300, 0.0
        %3302 = vadd.xlane.f32.xlu0 %v3301
        %v3303 = vpop.xlane.xlu0 %3302
        %v3304 = vrcp.pop %v3303
        %v3305 = vmul.f32 %v3300, %v3304
        %3306 = vrot.lane.b32.xlu0 %v3218, 64
        %v3307 = vpop.permute.xlu0 %3306
        %v3310 = vsel %vm1001, %v3305, 0
        %3312 = vmatprep.subr.mxu0 0.0
        %3313 = vmatpush1.msra.mxu0 %v3307
        %3314 = vmatprep.subr.mxu0 0.0
        %3315 = vmatpush1.msra.mxu0 0.0
        %3316 = vmatprep.subr.mxu0 0.0
        %3317 = vmatpush1.msra.mxu0 0.0
        %3318 = vmatprep.subr.mxu0 0.0
        %3319 = vmatpush1.msra.mxu0 0.0
        %3320 = vmatprep.subr.mxu0 0.0
        %3321 = vmatpush1.msra.mxu0 0.0
        %3322 = vmatprep.subr.mxu0 0.0
        %3323 = vmatpush1.msra.mxu0 0.0
        %3324 = vmatprep.subr.mxu0 0.0
        %3325 = vmatpush1.msra.mxu0 0.0
        %3326 = vmatprep.subr.mxu0 0.0
        %3327 = vmatpush1.msra.mxu0 0.0
        %3328 = vmatprep.subr.mxu0 0.0
        %3329 = vmatpush1.msra.mxu0 0.0
        %3330 = vmatprep.subr.mxu0 0.0
        %3331 = vmatpush1.msra.mxu0 0.0
        %3332 = vmatprep.subr.mxu0 0.0
        %3333 = vmatpush1.msra.mxu0 0.0
        %3334 = vmatprep.subr.mxu0 0.0
        %3335 = vmatpush1.msra.mxu0 0.0
        %3336 = vmatprep.subr.mxu0 0.0
        %3337 = vmatpush1.msra.mxu0 0.0
        %3338 = vmatprep.subr.mxu0 0.0
        %3339 = vmatpush1.msra.mxu0 0.0
        %3340 = vmatprep.subr.mxu0 0.0
        %3341 = vmatpush1.msra.mxu0 0.0
        %3342 = vmatprep.subr.mxu0 0.0
        %3343 = vmatpush1.msra.mxu0 0.0
        %3344 = vmatprep.subr.mxu0 0.0
        %3345 = vmatpush1.msra.mxu0 0.0
        %3346 = vmatprep.subr.mxu0 0.0
        %3347 = vmatpush1.msra.mxu0 0.0
        %3348 = vmatprep.subr.mxu0 0.0
        %3349 = vmatpush1.msra.mxu0 0.0
        %3350 = vmatprep.subr.mxu0 0.0
        %3351 = vmatpush1.msra.mxu0 0.0
        %3352 = vmatprep.subr.mxu0 0.0
        %3353 = vmatpush1.msra.mxu0 0.0
        %3354 = vmatprep.subr.mxu0 0.0
        %3355 = vmatpush1.msra.mxu0 0.0
        %3356 = vmatprep.subr.mxu0 0.0
        %3357 = vmatpush1.msra.mxu0 0.0
        %3358 = vmatprep.subr.mxu0 0.0
        %3359 = vmatpush1.msra.mxu0 0.0
        %3360 = vmatprep.subr.mxu0 0.0
        %3361 = vmatpush1.msra.mxu0 0.0
        %3362 = vmatprep.subr.mxu0 0.0
        %3363 = vmatpush1.msra.mxu0 0.0
        %3364 = vmatprep.subr.mxu0 0.0
        %3365 = vmatpush1.msra.mxu0 0.0
        %3366 = vmatprep.subr.mxu0 0.0
        %3367 = vmatpush1.msra.mxu0 0.0
        %3368 = vmatprep.subr.mxu0 0.0
        %3369 = vmatpush1.msra.mxu0 0.0
        %3370 = vmatprep.subr.mxu0 0.0
        %3371 = vmatpush1.msra.mxu0 0.0
        %3372 = vmatprep.subr.mxu0 0.0
        %3373 = vmatpush1.msra.mxu0 0.0
        %3374 = vmatprep.subr.mxu0 0.0
        %3375 = vmatpush1.msra.mxu0 0.0
        %3376 = vmatprep.mubr.f32.mxu0 0.0
        %3377 = vmatmul.mubr.f32.gmra.mrb[0].mxu0 %v3310
        %v3378 = vpop.f32.mrb[0].mxu0
        %v3379 = vadd.f32 0.0, %v3378
        %v3380 = vpop.f32.mrb[0].mxu0
        %3381 = vdwg.mxu0
        %3382 = vrot.lane.b32.xlu0 %v3214, 112
        %v3383 = vpop.permute.xlu0 %3382
        %3384 = vrot.lane.b32.xlu0 %v3218, 80
        %v3385 = vpop.permute.xlu0 %3384
        %v3386 = vsel %vm427, %v3383, 0
        %v3388 = vsel %vm427, %v3385, 0
        %3390 = vmatprep.subr.mxu0 0.0
        %3391 = vmatpush1.xpose.msra.mxu0 %v3388
        %3392 = vmatprep.subr.mxu0 0.0
        %3393 = vmatpush1.xpose.msra.mxu0 0.0
        %3394 = vmatprep.subr.mxu0 0.0
        %3395 = vmatpush1.xpose.msra.mxu0 0.0
        %3396 = vmatprep.subr.mxu0 0.0
        %3397 = vmatpush1.xpose.msra.mxu0 0.0
        %3398 = vmatprep.subr.mxu0 0.0
        %3399 = vmatpush1.xpose.msra.mxu0 0.0
        %3400 = vmatprep.subr.mxu0 0.0
        %3401 = vmatpush1.xpose.msra.mxu0 0.0
        %3402 = vmatprep.subr.mxu0 0.0
        %3403 = vmatpush1.xpose.msra.mxu0 0.0
        %3404 = vmatprep.subr.mxu0 0.0
        %3405 = vmatpush1.xpose.msra.mxu0 0.0
        %3406 = vmatprep.subr.mxu0 0.0
        %3407 = vmatpush1.xpose.msra.mxu0 0.0
        %3408 = vmatprep.subr.mxu0 0.0
        %3409 = vmatpush1.xpose.msra.mxu0 0.0
        %3410 = vmatprep.subr.mxu0 0.0
        %3411 = vmatpush1.xpose.msra.mxu0 0.0
        %3412 = vmatprep.subr.mxu0 0.0
        %3413 = vmatpush1.xpose.msra.mxu0 0.0
        %3414 = vmatprep.subr.mxu0 0.0
        %3415 = vmatpush1.xpose.msra.mxu0 0.0
        %3416 = vmatprep.subr.mxu0 0.0
        %3417 = vmatpush1.xpose.msra.mxu0 0.0
        %3418 = vmatprep.subr.mxu0 0.0
        %3419 = vmatpush1.xpose.msra.mxu0 0.0
        %3420 = vmatprep.subr.mxu0 0.0
        %3421 = vmatpush1.xpose.msra.mxu0 0.0
        %3422 = vmatprep.subr.mxu0 0.0
        %3423 = vmatpush1.xpose.msra.mxu0 0.0
        %3424 = vmatprep.subr.mxu0 0.0
        %3425 = vmatpush1.xpose.msra.mxu0 0.0
        %3426 = vmatprep.subr.mxu0 0.0
        %3427 = vmatpush1.xpose.msra.mxu0 0.0
        %3428 = vmatprep.subr.mxu0 0.0
        %3429 = vmatpush1.xpose.msra.mxu0 0.0
        %3430 = vmatprep.subr.mxu0 0.0
        %3431 = vmatpush1.xpose.msra.mxu0 0.0
        %3432 = vmatprep.subr.mxu0 0.0
        %3433 = vmatpush1.xpose.msra.mxu0 0.0
        %3434 = vmatprep.subr.mxu0 0.0
        %3435 = vmatpush1.xpose.msra.mxu0 0.0
        %3436 = vmatprep.subr.mxu0 0.0
        %3437 = vmatpush1.xpose.msra.mxu0 0.0
        %3438 = vmatprep.subr.mxu0 0.0
        %3439 = vmatpush1.xpose.msra.mxu0 0.0
        %3440 = vmatprep.subr.mxu0 0.0
        %3441 = vmatpush1.xpose.msra.mxu0 0.0
        %3442 = vmatprep.subr.mxu0 0.0
        %3443 = vmatpush1.xpose.msra.mxu0 0.0
        %3444 = vmatprep.subr.mxu0 0.0
        %3445 = vmatpush1.xpose.msra.mxu0 0.0
        %3446 = vmatprep.subr.mxu0 0.0
        %3447 = vmatpush1.xpose.msra.mxu0 0.0
        %3448 = vmatprep.subr.mxu0 0.0
        %3449 = vmatpush1.xpose.msra.mxu0 0.0
        %3450 = vmatprep.subr.mxu0 0.0
        %3451 = vmatpush1.xpose.msra.mxu0 0.0
        %3452 = vmatprep.subr.mxu0 0.0
        %3453 = vmatpush1.xpose.msra.mxu0 0.0
        %3454 = vmatprep.mubr.f32.mxu0 0.0
        %3455 = vmatmul.mubr.f32.gmra.mrb[0].mxu0 %v3386
        %v3456 = vpop.f32.mrb[0].mxu0
        %v3457 = vadd.f32 0.0, %v3456
        %v3458 = vpop.f32.mrb[0].mxu0
        %3459 = vdwg.mxu0
        %v3460 = vsel %vm986, %v3457, -inf
        %3461 = vmax.xlane.f32.xlu0 %v3460
        %v3462 = vpop.xlane.xlu0 %3461
        %v3463 = vsub.f32 %v3457, %v3462
        %v3464 = vmul.f32 %v3463, 1.442695
        %v3465 = vpow.pop %v3464
        %v3466 = vsel %vm986, %v3465, 0.0
        %3467 = vadd.xlane.f32.xlu0 %v3466
        %v3468 = vpop.xlane.xlu0 %3467
        %v3469 = vrcp.pop %v3468
        %v3470 = vmul.f32 %v3465, %v3469
        %3471 = vrot.lane.b32.xlu0 %v3218, 48
        %v3472 = vpop.permute.xlu0 %3471
        %v3475 = vsel %vm1001, %v3470, 0
        %3477 = vmatprep.subr.mxu0 0.0
        %3478 = vmatpush1.msra.mxu0 %v3472
        %3479 = vmatprep.subr.mxu0 0.0
        %3480 = vmatpush1.msra.mxu0 0.0
        %3481 = vmatprep.subr.mxu0 0.0
        %3482 = vmatpush1.msra.mxu0 0.0
        %3483 = vmatprep.subr.mxu0 0.0
        %3484 = vmatpush1.msra.mxu0 0.0
        %3485 = vmatprep.subr.mxu0 0.0
        %3486 = vmatpush1.msra.mxu0 0.0
        %3487 = vmatprep.subr.mxu0 0.0
        %3488 = vmatpush1.msra.mxu0 0.0
        %3489 = vmatprep.subr.mxu0 0.0
        %3490 = vmatpush1.msra.mxu0 0.0
        %3491 = vmatprep.subr.mxu0 0.0
        %3492 = vmatpush1.msra.mxu0 0.0
        %3493 = vmatprep.subr.mxu0 0.0
        %3494 = vmatpush1.msra.mxu0 0.0
        %3495 = vmatprep.subr.mxu0 0.0
        %3496 = vmatpush1.msra.mxu0 0.0
        %3497 = vmatprep.subr.mxu0 0.0
        %3498 = vmatpush1.msra.mxu0 0.0
        %3499 = vmatprep.subr.mxu0 0.0
        %3500 = vmatpush1.msra.mxu0 0.0
        %3501 = vmatprep.subr.mxu0 0.0
        %3502 = vmatpush1.msra.mxu0 0.0
        %3503 = vmatprep.subr.mxu0 0.0
        %3504 = vmatpush1.msra.mxu0 0.0
        %3505 = vmatprep.subr.mxu0 0.0
        %3506 = vmatpush1.msra.mxu0 0.0
        %3507 = vmatprep.subr.mxu0 0.0
        %3508 = vmatpush1.msra.mxu0 0.0
        %3509 = vmatprep.subr.mxu0 0.0
        %3510 = vmatpush1.msra.mxu0 0.0
        %3511 = vmatprep.subr.mxu0 0.0
        %3512 = vmatpush1.msra.mxu0 0.0
        %3513 = vmatprep.subr.mxu0 0.0
        %3514 = vmatpush1.msra.mxu0 0.0
        %3515 = vmatprep.subr.mxu0 0.0
        %3516 = vmatpush1.msra.mxu0 0.0
        %3517 = vmatprep.subr.mxu0 0.0
        %3518 = vmatpush1.msra.mxu0 0.0
        %3519 = vmatprep.subr.mxu0 0.0
        %3520 = vmatpush1.msra.mxu0 0.0
        %3521 = vmatprep.subr.mxu0 0.0
        %3522 = vmatpush1.msra.mxu0 0.0
        %3523 = vmatprep.subr.mxu0 0.0
        %3524 = vmatpush1.msra.mxu0 0.0
        %3525 = vmatprep.subr.mxu0 0.0
        %3526 = vmatpush1.msra.mxu0 0.0
        %3527 = vmatprep.subr.mxu0 0.0
        %3528 = vmatpush1.msra.mxu0 0.0
        %3529 = vmatprep.subr.mxu0 0.0
        %3530 = vmatpush1.msra.mxu0 0.0
        %3531 = vmatprep.subr.mxu0 0.0
        %3532 = vmatpush1.msra.mxu0 0.0
        %3533 = vmatprep.subr.mxu0 0.0
        %3534 = vmatpush1.msra.mxu0 0.0
        %3535 = vmatprep.subr.mxu0 0.0
        %3536 = vmatpush1.msra.mxu0 0.0
        %3537 = vmatprep.subr.mxu0 0.0
        %3538 = vmatpush1.msra.mxu0 0.0
        %3539 = vmatprep.subr.mxu0 0.0
        %3540 = vmatpush1.msra.mxu0 0.0
        %3541 = vmatprep.mubr.f32.mxu0 0.0
        %3542 = vmatmul.mubr.f32.gmra.mrb[0].mxu0 %v3475
        %v3543 = vpop.f32.mrb[0].mxu0
        %v3544 = vadd.f32 0.0, %v3543
        %v3545 = vpop.f32.mrb[0].mxu0
        %3546 = vdwg.mxu0
        %v3548 = vsel %vm427, %v3544, 0
        %3550 = vmatprep.subr.mxu0 0.0
        %3551 = vmatpush1.msra.mxu0 %v2735
        %3552 = vmatprep.subr.mxu0 0.0
        %3553 = vmatpush1.msra.mxu0 %v2736
        %3554 = vmatprep.subr.mxu0 0.0
        %3555 = vmatpush1.msra.mxu0 0.0
        %3556 = vmatprep.subr.mxu0 0.0
        %3557 = vmatpush1.msra.mxu0 0.0
        %3558 = vmatprep.subr.mxu0 0.0
        %3559 = vmatpush1.msra.mxu0 0.0
        %3560 = vmatprep.subr.mxu0 0.0
        %3561 = vmatpush1.msra.mxu0 0.0
        %3562 = vmatprep.subr.mxu0 0.0
        %3563 = vmatpush1.msra.mxu0 0.0
        %3564 = vmatprep.subr.mxu0 0.0
        %3565 = vmatpush1.msra.mxu0 0.0
        %3566 = vmatprep.subr.mxu0 0.0
        %3567 = vmatpush1.msra.mxu0 0.0
        %3568 = vmatprep.subr.mxu0 0.0
        %3569 = vmatpush1.msra.mxu0 0.0
        %3570 = vmatprep.subr.mxu0 0.0
        %3571 = vmatpush1.msra.mxu0 0.0
        %3572 = vmatprep.subr.mxu0 0.0
        %3573 = vmatpush1.msra.mxu0 0.0
        %3574 = vmatprep.subr.mxu0 0.0
        %3575 = vmatpush1.msra.mxu0 0.0
        %3576 = vmatprep.subr.mxu0 0.0
        %3577 = vmatpush1.msra.mxu0 0.0
        %3578 = vmatprep.subr.mxu0 0.0
        %3579 = vmatpush1.msra.mxu0 0.0
        %3580 = vmatprep.subr.mxu0 0.0
        %3581 = vmatpush1.msra.mxu0 0.0
        %3582 = vmatprep.subr.mxu0 0.0
        %3583 = vmatpush1.msra.mxu0 0.0
        %3584 = vmatprep.subr.mxu0 0.0
        %3585 = vmatpush1.msra.mxu0 0.0
        %3586 = vmatprep.subr.mxu0 0.0
        %3587 = vmatpush1.msra.mxu0 0.0
        %3588 = vmatprep.subr.mxu0 0.0
        %3589 = vmatpush1.msra.mxu0 0.0
        %3590 = vmatprep.subr.mxu0 0.0
        %3591 = vmatpush1.msra.mxu0 0.0
        %3592 = vmatprep.subr.mxu0 0.0
        %3593 = vmatpush1.msra.mxu0 0.0
        %3594 = vmatprep.subr.mxu0 0.0
        %3595 = vmatpush1.msra.mxu0 0.0
        %3596 = vmatprep.subr.mxu0 0.0
        %3597 = vmatpush1.msra.mxu0 0.0
        %3598 = vmatprep.subr.mxu0 0.0
        %3599 = vmatpush1.msra.mxu0 0.0
        %3600 = vmatprep.subr.mxu0 0.0
        %3601 = vmatpush1.msra.mxu0 0.0
        %3602 = vmatprep.subr.mxu0 0.0
        %3603 = vmatpush1.msra.mxu0 0.0
        %3604 = vmatprep.subr.mxu0 0.0
        %3605 = vmatpush1.msra.mxu0 0.0
        %3606 = vmatprep.subr.mxu0 0.0
        %3607 = vmatpush1.msra.mxu0 0.0
        %3608 = vmatprep.subr.mxu0 0.0
        %3609 = vmatpush1.msra.mxu0 0.0
        %3610 = vmatprep.subr.mxu0 0.0
        %3611 = vmatpush1.msra.mxu0 0.0
        %3612 = vmatprep.subr.mxu0 0.0
        %3613 = vmatpush1.msra.mxu0 0.0
        %3614 = vmatprep.mubr.f32.mxu0 0.0
        %3615 = vmatmul.mubr.f32.gmra.mrb[0].mxu0 %v3548
        %v3616 = vpop.f32.mrb[0].mxu0
        %v3617 = vadd.f32 0.0, %v3616
        %v3618 = vpop.f32.mrb[0].mxu0
        %3619 = vdwg.mxu0
        %v3621 = vsel %vm427, %v3379, 0
        %3623 = vmatprep.subr.mxu0 0.0
        %3624 = vmatpush1.msra.mxu0 %v2733
        %3625 = vmatprep.subr.mxu0 0.0
        %3626 = vmatpush1.msra.mxu0 %v2734
        %3627 = vmatprep.subr.mxu0 0.0
        %3628 = vmatpush1.msra.mxu0 0.0
        %3629 = vmatprep.subr.mxu0 0.0
        %3630 = vmatpush1.msra.mxu0 0.0
        %3631 = vmatprep.subr.mxu0 0.0
        %3632 = vmatpush1.msra.mxu0 0.0
        %3633 = vmatprep.subr.mxu0 0.0
        %3634 = vmatpush1.msra.mxu0 0.0
        %3635 = vmatprep.subr.mxu0 0.0
        %3636 = vmatpush1.msra.mxu0 0.0
        %3637 = vmatprep.subr.mxu0 0.0
        %3638 = vmatpush1.msra.mxu0 0.0
        %3639 = vmatprep.subr.mxu0 0.0
        %3640 = vmatpush1.msra.mxu0 0.0
        %3641 = vmatprep.subr.mxu0 0.0
        %3642 = vmatpush1.msra.mxu0 0.0
        %3643 = vmatprep.subr.mxu0 0.0
        %3644 = vmatpush1.msra.mxu0 0.0
        %3645 = vmatprep.subr.mxu0 0.0
        %3646 = vmatpush1.msra.mxu0 0.0
        %3647 = vmatprep.subr.mxu0 0.0
        %3648 = vmatpush1.msra.mxu0 0.0
        %3649 = vmatprep.subr.mxu0 0.0
        %3650 = vmatpush1.msra.mxu0 0.0
        %3651 = vmatprep.subr.mxu0 0.0
        %3652 = vmatpush1.msra.mxu0 0.0
        %3653 = vmatprep.subr.mxu0 0.0
        %3654 = vmatpush1.msra.mxu0 0.0
        %3655 = vmatprep.subr.mxu0 0.0
        %3656 = vmatpush1.msra.mxu0 0.0
        %3657 = vmatprep.subr.mxu0 0.0
        %3658 = vmatpush1.msra.mxu0 0.0
        %3659 = vmatprep.subr.mxu0 0.0
        %3660 = vmatpush1.msra.mxu0 0.0
        %3661 = vmatprep.subr.mxu0 0.0
        %3662 = vmatpush1.msra.mxu0 0.0
        %3663 = vmatprep.subr.mxu0 0.0
        %3664 = vmatpush1.msra.mxu0 0.0
        %3665 = vmatprep.subr.mxu0 0.0
        %3666 = vmatpush1.msra.mxu0 0.0
        %3667 = vmatprep.subr.mxu0 0.0
        %3668 = vmatpush1.msra.mxu0 0.0
        %3669 = vmatprep.subr.mxu0 0.0
        %3670 = vmatpush1.msra.mxu0 0.0
        %3671 = vmatprep.subr.mxu0 0.0
        %3672 = vmatpush1.msra.mxu0 0.0
        %3673 = vmatprep.subr.mxu0 0.0
        %3674 = vmatpush1.msra.mxu0 0.0
        %3675 = vmatprep.subr.mxu0 0.0
        %3676 = vmatpush1.msra.mxu0 0.0
        %3677 = vmatprep.subr.mxu0 0.0
        %3678 = vmatpush1.msra.mxu0 0.0
        %3679 = vmatprep.subr.mxu0 0.0
        %3680 = vmatpush1.msra.mxu0 0.0
        %3681 = vmatprep.subr.mxu0 0.0
        %3682 = vmatpush1.msra.mxu0 0.0
        %3683 = vmatprep.subr.mxu0 0.0
        %3684 = vmatpush1.msra.mxu0 0.0
        %3685 = vmatprep.subr.mxu0 0.0
        %3686 = vmatpush1.msra.mxu0 0.0
        %3687 = vmatprep.mubr.f32.mxu0 0.0
        %3688 = vmatmul.mubr.f32.gmra.mrb[0].mxu0 %v3621
        %v3689 = vpop.f32.mrb[0].mxu0
        %v3690 = vadd.f32 %v3617, %v3689
        %v3691 = vpop.f32.mrb[0].mxu0
        %3692 = vdwg.mxu0
        %v3693 = vrot.slane %v2724, 6
        %v3694 = vrot.slane %v2729, 6
        %v3695 = vsel %vm1386, %v3693, %v3694
        %3696 = vrot.lane.b32.xlu0 %v3695, 96
        %v3697 = vpop.permute.xlu0 %3696
        %v3698 = vsel %vm427, %v2729, 0
        %v3700 = vsel %vm427, %v3697, 0
        %3702 = vmatprep.subr.mxu0 0.0
        %3703 = vmatpush1.xpose.msra.mxu0 %v3700
        %3704 = vmatprep.subr.mxu0 0.0
        %3705 = vmatpush1.xpose.msra.mxu0 0.0
        %3706 = vmatprep.subr.mxu0 0.0
        %3707 = vmatpush1.xpose.msra.mxu0 0.0
        %3708 = vmatprep.subr.mxu0 0.0
        %3709 = vmatpush1.xpose.msra.mxu0 0.0
        %3710 = vmatprep.subr.mxu0 0.0
        %3711 = vmatpush1.xpose.msra.mxu0 0.0
        %3712 = vmatprep.subr.mxu0 0.0
        %3713 = vmatpush1.xpose.msra.mxu0 0.0
        %3714 = vmatprep.subr.mxu0 0.0
        %3715 = vmatpush1.xpose.msra.mxu0 0.0
        %3716 = vmatprep.subr.mxu0 0.0
        %3717 = vmatpush1.xpose.msra.mxu0 0.0
        %3718 = vmatprep.subr.mxu0 0.0
        %3719 = vmatpush1.xpose.msra.mxu0 0.0
        %3720 = vmatprep.subr.mxu0 0.0
        %3721 = vmatpush1.xpose.msra.mxu0 0.0
        %3722 = vmatprep.subr.mxu0 0.0
        %3723 = vmatpush1.xpose.msra.mxu0 0.0
        %3724 = vmatprep.subr.mxu0 0.0
        %3725 = vmatpush1.xpose.msra.mxu0 0.0
        %3726 = vmatprep.subr.mxu0 0.0
        %3727 = vmatpush1.xpose.msra.mxu0 0.0
        %3728 = vmatprep.subr.mxu0 0.0
        %3729 = vmatpush1.xpose.msra.mxu0 0.0
        %3730 = vmatprep.subr.mxu0 0.0
        %3731 = vmatpush1.xpose.msra.mxu0 0.0
        %3732 = vmatprep.subr.mxu0 0.0
        %3733 = vmatpush1.xpose.msra.mxu0 0.0
        %3734 = vmatprep.subr.mxu0 0.0
        %3735 = vmatpush1.xpose.msra.mxu0 0.0
        %3736 = vmatprep.subr.mxu0 0.0
        %3737 = vmatpush1.xpose.msra.mxu0 0.0
        %3738 = vmatprep.subr.mxu0 0.0
        %3739 = vmatpush1.xpose.msra.mxu0 0.0
        %3740 = vmatprep.subr.mxu0 0.0
        %3741 = vmatpush1.xpose.msra.mxu0 0.0
        %3742 = vmatprep.subr.mxu0 0.0
        %3743 = vmatpush1.xpose.msra.mxu0 0.0
        %3744 = vmatprep.subr.mxu0 0.0
        %3745 = vmatpush1.xpose.msra.mxu0 0.0
        %3746 = vmatprep.subr.mxu0 0.0
        %3747 = vmatpush1.xpose.msra.mxu0 0.0
        %3748 = vmatprep.subr.mxu0 0.0
        %3749 = vmatpush1.xpose.msra.mxu0 0.0
        %3750 = vmatprep.subr.mxu0 0.0
        %3751 = vmatpush1.xpose.msra.mxu0 0.0
        %3752 = vmatprep.subr.mxu0 0.0
        %3753 = vmatpush1.xpose.msra.mxu0 0.0
        %3754 = vmatprep.subr.mxu0 0.0
        %3755 = vmatpush1.xpose.msra.mxu0 0.0
        %3756 = vmatprep.subr.mxu0 0.0
        %3757 = vmatpush1.xpose.msra.mxu0 0.0
        %3758 = vmatprep.subr.mxu0 0.0
        %3759 = vmatpush1.xpose.msra.mxu0 0.0
        %3760 = vmatprep.subr.mxu0 0.0
        %3761 = vmatpush1.xpose.msra.mxu0 0.0
        %3762 = vmatprep.subr.mxu0 0.0
        %3763 = vmatpush1.xpose.msra.mxu0 0.0
        %3764 = vmatprep.subr.mxu0 0.0
        %3765 = vmatpush1.xpose.msra.mxu0 0.0
        %3766 = vmatprep.mubr.f32.mxu0 0.0
        %3767 = vmatmul.mubr.f32.gmra.mrb[0].mxu0 %v3698
        %v3768 = vpop.f32.mrb[0].mxu0
        %v3769 = vadd.f32 0.0, %v3768
        %v3770 = vpop.f32.mrb[0].mxu0
        %3771 = vdwg.mxu0
        %v3772 = vsel %vm986, %v3769, -inf
        %3773 = vmax.xlane.f32.xlu0 %v3772
        %v3774 = vpop.xlane.xlu0 %3773
        %v3775 = vsub.f32 %v3769, %v3774
        %v3776 = vmul.f32 %v3775, 1.442695
        %v3777 = vpow.pop %v3776
        %v3778 = vsel %vm986, %v3777, 0.0
        %3779 = vadd.xlane.f32.xlu0 %v3778
        %v3780 = vpop.xlane.xlu0 %3779
        %v3781 = vrcp.pop %v3780
        %v3782 = vmul.f32 %v3777, %v3781
        %3783 = vrot.lane.b32.xlu0 %v3695, 64
        %v3784 = vpop.permute.xlu0 %3783
        %v3787 = vsel %vm1001, %v3782, 0
        %3789 = vmatprep.subr.mxu0 0.0
        %3790 = vmatpush1.msra.mxu0 %v3784
        %3791 = vmatprep.subr.mxu0 0.0
        %3792 = vmatpush1.msra.mxu0 0.0
        %3793 = vmatprep.subr.mxu0 0.0
        %3794 = vmatpush1.msra.mxu0 0.0
        %3795 = vmatprep.subr.mxu0 0.0
        %3796 = vmatpush1.msra.mxu0 0.0
        %3797 = vmatprep.subr.mxu0 0.0
        %3798 = vmatpush1.msra.mxu0 0.0
        %3799 = vmatprep.subr.mxu0 0.0
        %3800 = vmatpush1.msra.mxu0 0.0
        %3801 = vmatprep.subr.mxu0 0.0
        %3802 = vmatpush1.msra.mxu0 0.0
        %3803 = vmatprep.subr.mxu0 0.0
        %3804 = vmatpush1.msra.mxu0 0.0
        %3805 = vmatprep.subr.mxu0 0.0
        %3806 = vmatpush1.msra.mxu0 0.0
        %3807 = vmatprep.subr.mxu0 0.0
        %3808 = vmatpush1.msra.mxu0 0.0
        %3809 = vmatprep.subr.mxu0 0.0
        %3810 = vmatpush1.msra.mxu0 0.0
        %3811 = vmatprep.subr.mxu0 0.0
        %3812 = vmatpush1.msra.mxu0 0.0
        %3813 = vmatprep.subr.mxu0 0.0
        %3814 = vmatpush1.msra.mxu0 0.0
        %3815 = vmatprep.subr.mxu0 0.0
        %3816 = vmatpush1.msra.mxu0 0.0
        %3817 = vmatprep.subr.mxu0 0.0
        %3818 = vmatpush1.msra.mxu0 0.0
        %3819 = vmatprep.subr.mxu0 0.0
        %3820 = vmatpush1.msra.mxu0 0.0
        %3821 = vmatprep.subr.mxu0 0.0
        %3822 = vmatpush1.msra.mxu0 0.0
        %3823 = vmatprep.subr.mxu0 0.0
        %3824 = vmatpush1.msra.mxu0 0.0
        %3825 = vmatprep.subr.mxu0 0.0
        %3826 = vmatpush1.msra.mxu0 0.0
        %3827 = vmatprep.subr.mxu0 0.0
        %3828 = vmatpush1.msra.mxu0 0.0
        %3829 = vmatprep.subr.mxu0 0.0
        %3830 = vmatpush1.msra.mxu0 0.0
        %3831 = vmatprep.subr.mxu0 0.0
        %3832 = vmatpush1.msra.mxu0 0.0
        %3833 = vmatprep.subr.mxu0 0.0
        %3834 = vmatpush1.msra.mxu0 0.0
        %3835 = vmatprep.subr.mxu0 0.0
        %3836 = vmatpush1.msra.mxu0 0.0
        %3837 = vmatprep.subr.mxu0 0.0
        %3838 = vmatpush1.msra.mxu0 0.0
        %3839 = vmatprep.subr.mxu0 0.0
        %3840 = vmatpush1.msra.mxu0 0.0
        %3841 = vmatprep.subr.mxu0 0.0
        %3842 = vmatpush1.msra.mxu0 0.0
        %3843 = vmatprep.subr.mxu0 0.0
        %3844 = vmatpush1.msra.mxu0 0.0
        %3845 = vmatprep.subr.mxu0 0.0
        %3846 = vmatpush1.msra.mxu0 0.0
        %3847 = vmatprep.subr.mxu0 0.0
        %3848 = vmatpush1.msra.mxu0 0.0
        %3849 = vmatprep.subr.mxu0 0.0
        %3850 = vmatpush1.msra.mxu0 0.0
        %3851 = vmatprep.subr.mxu0 0.0
        %3852 = vmatpush1.msra.mxu0 0.0
        %3853 = vmatprep.mubr.f32.mxu0 0.0
        %3854 = vmatmul.mubr.f32.gmra.mrb[0].mxu0 %v3787
        %v3855 = vpop.f32.mrb[0].mxu0
        %v3856 = vadd.f32 0.0, %v3855
        %v3857 = vpop.f32.mrb[0].mxu0
        %3858 = vdwg.mxu0
        %3859 = vrot.lane.b32.xlu0 %v2729, 112
        %v3860 = vpop.permute.xlu0 %3859
        %3861 = vrot.lane.b32.xlu0 %v3695, 80
        %v3862 = vpop.permute.xlu0 %3861
        %v3863 = vsel %vm427, %v3860, 0
        %v3865 = vsel %vm427, %v3862, 0
        %3867 = vmatprep.subr.mxu0 0.0
        %3868 = vmatpush1.xpose.msra.mxu0 %v3865
        %3869 = vmatprep.subr.mxu0 0.0
        %3870 = vmatpush1.xpose.msra.mxu0 0.0
        %3871 = vmatprep.subr.mxu0 0.0
        %3872 = vmatpush1.xpose.msra.mxu0 0.0
        %3873 = vmatprep.subr.mxu0 0.0
        %3874 = vmatpush1.xpose.msra.mxu0 0.0
        %3875 = vmatprep.subr.mxu0 0.0
        %3876 = vmatpush1.xpose.msra.mxu0 0.0
        %3877 = vmatprep.subr.mxu0 0.0
        %3878 = vmatpush1.xpose.msra.mxu0 0.0
        %3879 = vmatprep.subr.mxu0 0.0
        %3880 = vmatpush1.xpose.msra.mxu0 0.0
        %3881 = vmatprep.subr.mxu0 0.0
        %3882 = vmatpush1.xpose.msra.mxu0 0.0
        %3883 = vmatprep.subr.mxu0 0.0
        %3884 = vmatpush1.xpose.msra.mxu0 0.0
        %3885 = vmatprep.subr.mxu0 0.0
        %3886 = vmatpush1.xpose.msra.mxu0 0.0
        %3887 = vmatprep.subr.mxu0 0.0
        %3888 = vmatpush1.xpose.msra.mxu0 0.0
        %3889 = vmatprep.subr.mxu0 0.0
        %3890 = vmatpush1.xpose.msra.mxu0 0.0
        %3891 = vmatprep.subr.mxu0 0.0
        %3892 = vmatpush1.xpose.msra.mxu0 0.0
        %3893 = vmatprep.subr.mxu0 0.0
        %3894 = vmatpush1.xpose.msra.mxu0 0.0
        %3895 = vmatprep.subr.mxu0 0.0
        %3896 = vmatpush1.xpose.msra.mxu0 0.0
        %3897 = vmatprep.subr.mxu0 0.0
        %3898 = vmatpush1.xpose.msra.mxu0 0.0
        %3899 = vmatprep.subr.mxu0 0.0
        %3900 = vmatpush1.xpose.msra.mxu0 0.0
        %3901 = vmatprep.subr.mxu0 0.0
        %3902 = vmatpush1.xpose.msra.mxu0 0.0
        %3903 = vmatprep.subr.mxu0 0.0
        %3904 = vmatpush1.xpose.msra.mxu0 0.0
        %3905 = vmatprep.subr.mxu0 0.0
        %3906 = vmatpush1.xpose.msra.mxu0 0.0
        %3907 = vmatprep.subr.mxu0 0.0
        %3908 = vmatpush1.xpose.msra.mxu0 0.0
        %3909 = vmatprep.subr.mxu0 0.0
        %3910 = vmatpush1.xpose.msra.mxu0 0.0
        %3911 = vmatprep.subr.mxu0 0.0
        %3912 = vmatpush1.xpose.msra.mxu0 0.0
        %3913 = vmatprep.subr.mxu0 0.0
        %3914 = vmatpush1.xpose.msra.mxu0 0.0
        %3915 = vmatprep.subr.mxu0 0.0
        %3916 = vmatpush1.xpose.msra.mxu0 0.0
        %3917 = vmatprep.subr.mxu0 0.0
        %3918 = vmatpush1.xpose.msra.mxu0 0.0
        %3919 = vmatprep.subr.mxu0 0.0
        %3920 = vmatpush1.xpose.msra.mxu0 0.0
        %3921 = vmatprep.subr.mxu0 0.0
        %3922 = vmatpush1.xpose.msra.mxu0 0.0
        %3923 = vmatprep.subr.mxu0 0.0
        %3924 = vmatpush1.xpose.msra.mxu0 0.0
        %3925 = vmatprep.subr.mxu0 0.0
        %3926 = vmatpush1.xpose.msra.mxu0 0.0
        %3927 = vmatprep.subr.mxu0 0.0
        %3928 = vmatpush1.xpose.msra.mxu0 0.0
        %3929 = vmatprep.subr.mxu0 0.0
        %3930 = vmatpush1.xpose.msra.mxu0 0.0
        %3931 = vmatprep.mubr.f32.mxu0 0.0
        %3932 = vmatmul.mubr.f32.gmra.mrb[0].mxu0 %v3863
        %v3933 = vpop.f32.mrb[0].mxu0
        %v3934 = vadd.f32 0.0, %v3933
        %v3935 = vpop.f32.mrb[0].mxu0
        %3936 = vdwg.mxu0
        %v3937 = vsel %vm986, %v3934, -inf
        %3938 = vmax.xlane.f32.xlu0 %v3937
        %v3939 = vpop.xlane.xlu0 %3938
        %v3940 = vsub.f32 %v3934, %v3939
        %v3941 = vmul.f32 %v3940, 1.442695
        %v3942 = vpow.pop %v3941
        %v3943 = vsel %vm986, %v3942, 0.0
        %3944 = vadd.xlane.f32.xlu0 %v3943
        %v3945 = vpop.xlane.xlu0 %3944
        %v3946 = vrcp.pop %v3945
        %v3947 = vmul.f32 %v3942, %v3946
        %3948 = vrot.lane.b32.xlu0 %v3695, 48
        %v3949 = vpop.permute.xlu0 %3948
        %v3952 = vsel %vm1001, %v3947, 0
        %3954 = vmatprep.subr.mxu0 0.0
        %3955 = vmatpush1.msra.mxu0 %v3949
        %3956 = vmatprep.subr.mxu0 0.0
        %3957 = vmatpush1.msra.mxu0 0.0
        %3958 = vmatprep.subr.mxu0 0.0
        %3959 = vmatpush1.msra.mxu0 0.0
        %3960 = vmatprep.subr.mxu0 0.0
        %3961 = vmatpush1.msra.mxu0 0.0
        %3962 = vmatprep.subr.mxu0 0.0
        %3963 = vmatpush1.msra.mxu0 0.0
        %3964 = vmatprep.subr.mxu0 0.0
        %3965 = vmatpush1.msra.mxu0 0.0
        %3966 = vmatprep.subr.mxu0 0.0
        %3967 = vmatpush1.msra.mxu0 0.0
        %3968 = vmatprep.subr.mxu0 0.0
        %3969 = vmatpush1.msra.mxu0 0.0
        %3970 = vmatprep.subr.mxu0 0.0
        %3971 = vmatpush1.msra.mxu0 0.0
        %3972 = vmatprep.subr.mxu0 0.0
        %3973 = vmatpush1.msra.mxu0 0.0
        %3974 = vmatprep.subr.mxu0 0.0
        %3975 = vmatpush1.msra.mxu0 0.0
        %3976 = vmatprep.subr.mxu0 0.0
        %3977 = vmatpush1.msra.mxu0 0.0
        %3978 = vmatprep.subr.mxu0 0.0
        %3979 = vmatpush1.msra.mxu0 0.0
        %3980 = vmatprep.subr.mxu0 0.0
        %3981 = vmatpush1.msra.mxu0 0.0
        %3982 = vmatprep.subr.mxu0 0.0
        %3983 = vmatpush1.msra.mxu0 0.0
        %3984 = vmatprep.subr.mxu0 0.0
        %3985 = vmatpush1.msra.mxu0 0.0
        %3986 = vmatprep.subr.mxu0 0.0
        %3987 = vmatpush1.msra.mxu0 0.0
        %3988 = vmatprep.subr.mxu0 0.0
        %3989 = vmatpush1.msra.mxu0 0.0
        %3990 = vmatprep.subr.mxu0 0.0
        %3991 = vmatpush1.msra.mxu0 0.0
        %3992 = vmatprep.subr.mxu0 0.0
        %3993 = vmatpush1.msra.mxu0 0.0
        %3994 = vmatprep.subr.mxu0 0.0
        %3995 = vmatpush1.msra.mxu0 0.0
        %3996 = vmatprep.subr.mxu0 0.0
        %3997 = vmatpush1.msra.mxu0 0.0
        %3998 = vmatprep.subr.mxu0 0.0
        %3999 = vmatpush1.msra.mxu0 0.0
        %4000 = vmatprep.subr.mxu0 0.0
        %4001 = vmatpush1.msra.mxu0 0.0
        %4002 = vmatprep.subr.mxu0 0.0
        %4003 = vmatpush1.msra.mxu0 0.0
        %4004 = vmatprep.subr.mxu0 0.0
        %4005 = vmatpush1.msra.mxu0 0.0
        %4006 = vmatprep.subr.mxu0 0.0
        %4007 = vmatpush1.msra.mxu0 0.0
        %4008 = vmatprep.subr.mxu0 0.0
        %4009 = vmatpush1.msra.mxu0 0.0
        %4010 = vmatprep.subr.mxu0 0.0
        %4011 = vmatpush1.msra.mxu0 0.0
        %4012 = vmatprep.subr.mxu0 0.0
        %4013 = vmatpush1.msra.mxu0 0.0
        %4014 = vmatprep.subr.mxu0 0.0
        %4015 = vmatpush1.msra.mxu0 0.0
        %4016 = vmatprep.subr.mxu0 0.0
        %4017 = vmatpush1.msra.mxu0 0.0
        %4018 = vmatprep.mubr.f32.mxu0 0.0
        %4019 = vmatmul.mubr.f32.gmra.mrb[0].mxu0 %v3952
        %v4020 = vpop.f32.mrb[0].mxu0
        %v4021 = vadd.f32 0.0, %v4020
        %v4022 = vpop.f32.mrb[0].mxu0
        %4023 = vdwg.mxu0
        %v4025 = vsel %vm427, %v4021, 0
        %4027 = vmatprep.subr.mxu0 0.0
        %4028 = vmatpush1.msra.mxu0 %v2735
        %4029 = vmatprep.subr.mxu0 0.0
        %4030 = vmatpush1.msra.mxu0 %v2736
        %4031 = vmatprep.subr.mxu0 0.0
        %4032 = vmatpush1.msra.mxu0 0.0
        %4033 = vmatprep.subr.mxu0 0.0
        %4034 = vmatpush1.msra.mxu0 0.0
        %4035 = vmatprep.subr.mxu0 0.0
        %4036 = vmatpush1.msra.mxu0 0.0
        %4037 = vmatprep.subr.mxu0 0.0
        %4038 = vmatpush1.msra.mxu0 0.0
        %4039 = vmatprep.subr.mxu0 0.0
        %4040 = vmatpush1.msra.mxu0 0.0
        %4041 = vmatprep.subr.mxu0 0.0
        %4042 = vmatpush1.msra.mxu0 0.0
        %4043 = vmatprep.subr.mxu0 0.0
        %4044 = vmatpush1.msra.mxu0 0.0
        %4045 = vmatprep.subr.mxu0 0.0
        %4046 = vmatpush1.msra.mxu0 0.0
        %4047 = vmatprep.subr.mxu0 0.0
        %4048 = vmatpush1.msra.mxu0 0.0
        %4049 = vmatprep.subr.mxu0 0.0
        %4050 = vmatpush1.msra.mxu0 0.0
        %4051 = vmatprep.subr.mxu0 0.0
        %4052 = vmatpush1.msra.mxu0 0.0
        %4053 = vmatprep.subr.mxu0 0.0
        %4054 = vmatpush1.msra.mxu0 0.0
        %4055 = vmatprep.subr.mxu0 0.0
        %4056 = vmatpush1.msra.mxu0 0.0
        %4057 = vmatprep.subr.mxu0 0.0
        %4058 = vmatpush1.msra.mxu0 0.0
        %4059 = vmatprep.subr.mxu0 0.0
        %4060 = vmatpush1.msra.mxu0 0.0
        %4061 = vmatprep.subr.mxu0 0.0
        %4062 = vmatpush1.msra.mxu0 0.0
        %4063 = vmatprep.subr.mxu0 0.0
        %4064 = vmatpush1.msra.mxu0 0.0
        %4065 = vmatprep.subr.mxu0 0.0
        %4066 = vmatpush1.msra.mxu0 0.0
        %4067 = vmatprep.subr.mxu0 0.0
        %4068 = vmatpush1.msra.mxu0 0.0
        %4069 = vmatprep.subr.mxu0 0.0
        %4070 = vmatpush1.msra.mxu0 0.0
        %4071 = vmatprep.subr.mxu0 0.0
        %4072 = vmatpush1.msra.mxu0 0.0
        %4073 = vmatprep.subr.mxu0 0.0
        %4074 = vmatpush1.msra.mxu0 0.0
        %4075 = vmatprep.subr.mxu0 0.0
        %4076 = vmatpush1.msra.mxu0 0.0
        %4077 = vmatprep.subr.mxu0 0.0
        %4078 = vmatpush1.msra.mxu0 0.0
        %4079 = vmatprep.subr.mxu0 0.0
        %4080 = vmatpush1.msra.mxu0 0.0
        %4081 = vmatprep.subr.mxu0 0.0
        %4082 = vmatpush1.msra.mxu0 0.0
        %4083 = vmatprep.subr.mxu0 0.0
        %4084 = vmatpush1.msra.mxu0 0.0
        %4085 = vmatprep.subr.mxu0 0.0
        %4086 = vmatpush1.msra.mxu0 0.0
        %4087 = vmatprep.subr.mxu0 0.0
        %4088 = vmatpush1.msra.mxu0 0.0
        %4089 = vmatprep.subr.mxu0 0.0
        %4090 = vmatpush1.msra.mxu0 0.0
        %4091 = vmatprep.mubr.f32.mxu0 0.0
        %4092 = vmatmul.mubr.f32.gmra.mrb[0].mxu0 %v4025
        %v4093 = vpop.f32.mrb[0].mxu0
        %v4094 = vadd.f32 0.0, %v4093
        %v4095 = vpop.f32.mrb[0].mxu0
        %4096 = vdwg.mxu0
        %v4098 = vsel %vm427, %v3856, 0
        %4100 = vmatprep.subr.mxu0 0.0
        %4101 = vmatpush1.msra.mxu0 %v2733
        %4102 = vmatprep.subr.mxu0 0.0
        %4103 = vmatpush1.msra.mxu0 %v2734
        %4104 = vmatprep.subr.mxu0 0.0
        %4105 = vmatpush1.msra.mxu0 0.0
        %4106 = vmatprep.subr.mxu0 0.0
        %4107 = vmatpush1.msra.mxu0 0.0
        %4108 = vmatprep.subr.mxu0 0.0
        %4109 = vmatpush1.msra.mxu0 0.0
        %4110 = vmatprep.subr.mxu0 0.0
        %4111 = vmatpush1.msra.mxu0 0.0
        %4112 = vmatprep.subr.mxu0 0.0
        %4113 = vmatpush1.msra.mxu0 0.0
        %4114 = vmatprep.subr.mxu0 0.0
        %4115 = vmatpush1.msra.mxu0 0.0
        %4116 = vmatprep.subr.mxu0 0.0
        %4117 = vmatpush1.msra.mxu0 0.0
        %4118 = vmatprep.subr.mxu0 0.0
        %4119 = vmatpush1.msra.mxu0 0.0
        %4120 = vmatprep.subr.mxu0 0.0
        %4121 = vmatpush1.msra.mxu0 0.0
        %4122 = vmatprep.subr.mxu0 0.0
        %4123 = vmatpush1.msra.mxu0 0.0
        %4124 = vmatprep.subr.mxu0 0.0
        %4125 = vmatpush1.msra.mxu0 0.0
        %4126 = vmatprep.subr.mxu0 0.0
        %4127 = vmatpush1.msra.mxu0 0.0
        %4128 = vmatprep.subr.mxu0 0.0
        %4129 = vmatpush1.msra.mxu0 0.0
        %4130 = vmatprep.subr.mxu0 0.0
        %4131 = vmatpush1.msra.mxu0 0.0
        %4132 = vmatprep.subr.mxu0 0.0
        %4133 = vmatpush1.msra.mxu0 0.0
        %4134 = vmatprep.subr.mxu0 0.0
        %4135 = vmatpush1.msra.mxu0 0.0
        %4136 = vmatprep.subr.mxu0 0.0
        %4137 = vmatpush1.msra.mxu0 0.0
        %4138 = vmatprep.subr.mxu0 0.0
        %4139 = vmatpush1.msra.mxu0 0.0
        %4140 = vmatprep.subr.mxu0 0.0
        %4141 = vmatpush1.msra.mxu0 0.0
        %4142 = vmatprep.subr.mxu0 0.0
        %4143 = vmatpush1.msra.mxu0 0.0
        %4144 = vmatprep.subr.mxu0 0.0
        %4145 = vmatpush1.msra.mxu0 0.0
        %4146 = vmatprep.subr.mxu0 0.0
        %4147 = vmatpush1.msra.mxu0 0.0
        %4148 = vmatprep.subr.mxu0 0.0
        %4149 = vmatpush1.msra.mxu0 0.0
        %4150 = vmatprep.subr.mxu0 0.0
        %4151 = vmatpush1.msra.mxu0 0.0
        %4152 = vmatprep.subr.mxu0 0.0
        %4153 = vmatpush1.msra.mxu0 0.0
        %4154 = vmatprep.subr.mxu0 0.0
        %4155 = vmatpush1.msra.mxu0 0.0
        %4156 = vmatprep.subr.mxu0 0.0
        %4157 = vmatpush1.msra.mxu0 0.0
        %4158 = vmatprep.subr.mxu0 0.0
        %4159 = vmatpush1.msra.mxu0 0.0
        %4160 = vmatprep.subr.mxu0 0.0
        %4161 = vmatpush1.msra.mxu0 0.0
        %4162 = vmatprep.subr.mxu0 0.0
        %4163 = vmatpush1.msra.mxu0 0.0
        %4164 = vmatprep.mubr.f32.mxu0 0.0
        %4165 = vmatmul.mubr.f32.gmra.mrb[0].mxu0 %v4098
        %v4166 = vpop.f32.mrb[0].mxu0
        %v4167 = vadd.f32 %v4094, %v4166
        %v4168 = vpop.f32.mrb[0].mxu0
        %4169 = vdwg.mxu0
        %v4170 = vrot.slane %v2729, 4
        %4171 = vrot.lane.b32.xlu0 %v3217, 96
        %v4172 = vpop.permute.xlu0 %4171
        %v4173 = vsel %vm427, %v4170, 0
        %v4175 = vsel %vm427, %v4172, 0
        %4177 = vmatprep.subr.mxu0 0.0
        %4178 = vmatpush1.xpose.msra.mxu0 %v4175
        %4179 = vmatprep.subr.mxu0 0.0
        %4180 = vmatpush1.xpose.msra.mxu0 0.0
        %4181 = vmatprep.subr.mxu0 0.0
        %4182 = vmatpush1.xpose.msra.mxu0 0.0
        %4183 = vmatprep.subr.mxu0 0.0
        %4184 = vmatpush1.xpose.msra.mxu0 0.0
        %4185 = vmatprep.subr.mxu0 0.0
        %4186 = vmatpush1.xpose.msra.mxu0 0.0
        %4187 = vmatprep.subr.mxu0 0.0
        %4188 = vmatpush1.xpose.msra.mxu0 0.0
        %4189 = vmatprep.subr.mxu0 0.0
        %4190 = vmatpush1.xpose.msra.mxu0 0.0
        %4191 = vmatprep.subr.mxu0 0.0
        %4192 = vmatpush1.xpose.msra.mxu0 0.0
        %4193 = vmatprep.subr.mxu0 0.0
        %4194 = vmatpush1.xpose.msra.mxu0 0.0
        %4195 = vmatprep.subr.mxu0 0.0
        %4196 = vmatpush1.xpose.msra.mxu0 0.0
        %4197 = vmatprep.subr.mxu0 0.0
        %4198 = vmatpush1.xpose.msra.mxu0 0.0
        %4199 = vmatprep.subr.mxu0 0.0
        %4200 = vmatpush1.xpose.msra.mxu0 0.0
        %4201 = vmatprep.subr.mxu0 0.0
        %4202 = vmatpush1.xpose.msra.mxu0 0.0
        %4203 = vmatprep.subr.mxu0 0.0
        %4204 = vmatpush1.xpose.msra.mxu0 0.0
        %4205 = vmatprep.subr.mxu0 0.0
        %4206 = vmatpush1.xpose.msra.mxu0 0.0
        %4207 = vmatprep.subr.mxu0 0.0
        %4208 = vmatpush1.xpose.msra.mxu0 0.0
        %4209 = vmatprep.subr.mxu0 0.0
        %4210 = vmatpush1.xpose.msra.mxu0 0.0
        %4211 = vmatprep.subr.mxu0 0.0
        %4212 = vmatpush1.xpose.msra.mxu0 0.0
        %4213 = vmatprep.subr.mxu0 0.0
        %4214 = vmatpush1.xpose.msra.mxu0 0.0
        %4215 = vmatprep.subr.mxu0 0.0
        %4216 = vmatpush1.xpose.msra.mxu0 0.0
        %4217 = vmatprep.subr.mxu0 0.0
        %4218 = vmatpush1.xpose.msra.mxu0 0.0
        %4219 = vmatprep.subr.mxu0 0.0
        %4220 = vmatpush1.xpose.msra.mxu0 0.0
        %4221 = vmatprep.subr.mxu0 0.0
        %4222 = vmatpush1.xpose.msra.mxu0 0.0
        %4223 = vmatprep.subr.mxu0 0.0
        %4224 = vmatpush1.xpose.msra.mxu0 0.0
        %4225 = vmatprep.subr.mxu0 0.0
        %4226 = vmatpush1.xpose.msra.mxu0 0.0
        %4227 = vmatprep.subr.mxu0 0.0
        %4228 = vmatpush1.xpose.msra.mxu0 0.0
        %4229 = vmatprep.subr.mxu0 0.0
        %4230 = vmatpush1.xpose.msra.mxu0 0.0
        %4231 = vmatprep.subr.mxu0 0.0
        %4232 = vmatpush1.xpose.msra.mxu0 0.0
        %4233 = vmatprep.subr.mxu0 0.0
        %4234 = vmatpush1.xpose.msra.mxu0 0.0
        %4235 = vmatprep.subr.mxu0 0.0
        %4236 = vmatpush1.xpose.msra.mxu0 0.0
        %4237 = vmatprep.subr.mxu0 0.0
        %4238 = vmatpush1.xpose.msra.mxu0 0.0
        %4239 = vmatprep.subr.mxu0 0.0
        %4240 = vmatpush1.xpose.msra.mxu0 0.0
        %4241 = vmatprep.mubr.f32.mxu0 0.0
        %4242 = vmatmul.mubr.f32.gmra.mrb[0].mxu0 %v4173
        %v4243 = vpop.f32.mrb[0].mxu0
        %v4244 = vadd.f32 0.0, %v4243
        %v4245 = vpop.f32.mrb[0].mxu0
        %4246 = vdwg.mxu0
        %v4247 = vsel %vm502, %v4244, -inf
        %4248 = vmax.xlane.f32.xlu0 %v4247
        %v4249 = vpop.xlane.xlu0 %4248
        %v4250 = vsub.f32 %v4244, %v4249
        %v4251 = vmul.f32 %v4250, 1.442695
        %v4252 = vpow.pop %v4251
        %v4253 = vsel %vm502, %v4252, 0.0
        %4254 = vadd.xlane.f32.xlu0 %v4253
        %v4255 = vpop.xlane.xlu0 %4254
        %v4256 = vrcp.pop %v4255
        %v4257 = vmul.f32 %v4252, %v4256
        %4258 = vrot.lane.b32.xlu0 %v3217, 64
        %v4259 = vpop.permute.xlu0 %4258
        %v4261 = vsel %vm516, %v4257, 0
        %v4263 = vsel %vm520, %v4259, 0
        %4265 = vmatprep.subr.mxu0 0.0
        %4266 = vmatpush1.msra.mxu0 %v4263
        %4267 = vmatprep.subr.mxu0 0.0
        %4268 = vmatpush1.msra.mxu0 0.0
        %4269 = vmatprep.subr.mxu0 0.0
        %4270 = vmatpush1.msra.mxu0 0.0
        %4271 = vmatprep.subr.mxu0 0.0
        %4272 = vmatpush1.msra.mxu0 0.0
        %4273 = vmatprep.subr.mxu0 0.0
        %4274 = vmatpush1.msra.mxu0 0.0
        %4275 = vmatprep.subr.mxu0 0.0
        %4276 = vmatpush1.msra.mxu0 0.0
        %4277 = vmatprep.subr.mxu0 0.0
        %4278 = vmatpush1.msra.mxu0 0.0
        %4279 = vmatprep.subr.mxu0 0.0
        %4280 = vmatpush1.msra.mxu0 0.0
        %4281 = vmatprep.subr.mxu0 0.0
        %4282 = vmatpush1.msra.mxu0 0.0
        %4283 = vmatprep.subr.mxu0 0.0
        %4284 = vmatpush1.msra.mxu0 0.0
        %4285 = vmatprep.subr.mxu0 0.0
        %4286 = vmatpush1.msra.mxu0 0.0
        %4287 = vmatprep.subr.mxu0 0.0
        %4288 = vmatpush1.msra.mxu0 0.0
        %4289 = vmatprep.subr.mxu0 0.0
        %4290 = vmatpush1.msra.mxu0 0.0
        %4291 = vmatprep.subr.mxu0 0.0
        %4292 = vmatpush1.msra.mxu0 0.0
        %4293 = vmatprep.subr.mxu0 0.0
        %4294 = vmatpush1.msra.mxu0 0.0
        %4295 = vmatprep.subr.mxu0 0.0
        %4296 = vmatpush1.msra.mxu0 0.0
        %4297 = vmatprep.subr.mxu0 0.0
        %4298 = vmatpush1.msra.mxu0 0.0
        %4299 = vmatprep.subr.mxu0 0.0
        %4300 = vmatpush1.msra.mxu0 0.0
        %4301 = vmatprep.subr.mxu0 0.0
        %4302 = vmatpush1.msra.mxu0 0.0
        %4303 = vmatprep.subr.mxu0 0.0
        %4304 = vmatpush1.msra.mxu0 0.0
        %4305 = vmatprep.subr.mxu0 0.0
        %4306 = vmatpush1.msra.mxu0 0.0
        %4307 = vmatprep.subr.mxu0 0.0
        %4308 = vmatpush1.msra.mxu0 0.0
        %4309 = vmatprep.subr.mxu0 0.0
        %4310 = vmatpush1.msra.mxu0 0.0
        %4311 = vmatprep.subr.mxu0 0.0
        %4312 = vmatpush1.msra.mxu0 0.0
        %4313 = vmatprep.subr.mxu0 0.0
        %4314 = vmatpush1.msra.mxu0 0.0
        %4315 = vmatprep.subr.mxu0 0.0
        %4316 = vmatpush1.msra.mxu0 0.0
        %4317 = vmatprep.subr.mxu0 0.0
        %4318 = vmatpush1.msra.mxu0 0.0
        %4319 = vmatprep.subr.mxu0 0.0
        %4320 = vmatpush1.msra.mxu0 0.0
        %4321 = vmatprep.subr.mxu0 0.0
        %4322 = vmatpush1.msra.mxu0 0.0
        %4323 = vmatprep.subr.mxu0 0.0
        %4324 = vmatpush1.msra.mxu0 0.0
        %4325 = vmatprep.subr.mxu0 0.0
        %4326 = vmatpush1.msra.mxu0 0.0
        %4327 = vmatprep.subr.mxu0 0.0
        %4328 = vmatpush1.msra.mxu0 0.0
        %4329 = vmatprep.mubr.f32.mxu0 0.0
        %4330 = vmatmul.mubr.f32.gmra.mrb[0].mxu0 %v4261
        %v4331 = vpop.f32.mrb[0].mxu0
        %v4332 = vadd.f32 0.0, %v4331
        %v4333 = vpop.f32.mrb[0].mxu0
        %4334 = vdwg.mxu0
        %4335 = vrot.lane.b32.xlu0 %v4170, 112
        %v4336 = vpop.permute.xlu0 %4335
        %4337 = vrot.lane.b32.xlu0 %v3217, 80
        %v4338 = vpop.permute.xlu0 %4337
        %v4339 = vsel %vm427, %v4336, 0
        %v4341 = vsel %vm427, %v4338, 0
        %4343 = vmatprep.subr.mxu0 0.0
        %4344 = vmatpush1.xpose.msra.mxu0 %v4341
        %4345 = vmatprep.subr.mxu0 0.0
        %4346 = vmatpush1.xpose.msra.mxu0 0.0
        %4347 = vmatprep.subr.mxu0 0.0
        %4348 = vmatpush1.xpose.msra.mxu0 0.0
        %4349 = vmatprep.subr.mxu0 0.0
        %4350 = vmatpush1.xpose.msra.mxu0 0.0
        %4351 = vmatprep.subr.mxu0 0.0
        %4352 = vmatpush1.xpose.msra.mxu0 0.0
        %4353 = vmatprep.subr.mxu0 0.0
        %4354 = vmatpush1.xpose.msra.mxu0 0.0
        %4355 = vmatprep.subr.mxu0 0.0
        %4356 = vmatpush1.xpose.msra.mxu0 0.0
        %4357 = vmatprep.subr.mxu0 0.0
        %4358 = vmatpush1.xpose.msra.mxu0 0.0
        %4359 = vmatprep.subr.mxu0 0.0
        %4360 = vmatpush1.xpose.msra.mxu0 0.0
        %4361 = vmatprep.subr.mxu0 0.0
        %4362 = vmatpush1.xpose.msra.mxu0 0.0
        %4363 = vmatprep.subr.mxu0 0.0
        %4364 = vmatpush1.xpose.msra.mxu0 0.0
        %4365 = vmatprep.subr.mxu0 0.0
        %4366 = vmatpush1.xpose.msra.mxu0 0.0
        %4367 = vmatprep.subr.mxu0 0.0
        %4368 = vmatpush1.xpose.msra.mxu0 0.0
        %4369 = vmatprep.subr.mxu0 0.0
        %4370 = vmatpush1.xpose.msra.mxu0 0.0
        %4371 = vmatprep.subr.mxu0 0.0
        %4372 = vmatpush1.xpose.msra.mxu0 0.0
        %4373 = vmatprep.subr.mxu0 0.0
        %4374 = vmatpush1.xpose.msra.mxu0 0.0
        %4375 = vmatprep.subr.mxu0 0.0
        %4376 = vmatpush1.xpose.msra.mxu0 0.0
        %4377 = vmatprep.subr.mxu0 0.0
        %4378 = vmatpush1.xpose.msra.mxu0 0.0
        %4379 = vmatprep.subr.mxu0 0.0
        %4380 = vmatpush1.xpose.msra.mxu0 0.0
        %4381 = vmatprep.subr.mxu0 0.0
        %4382 = vmatpush1.xpose.msra.mxu0 0.0
        %4383 = vmatprep.subr.mxu0 0.0
        %4384 = vmatpush1.xpose.msra.mxu0 0.0
        %4385 = vmatprep.subr.mxu0 0.0
        %4386 = vmatpush1.xpose.msra.mxu0 0.0
        %4387 = vmatprep.subr.mxu0 0.0
        %4388 = vmatpush1.xpose.msra.mxu0 0.0
        %4389 = vmatprep.subr.mxu0 0.0
        %4390 = vmatpush1.xpose.msra.mxu0 0.0
        %4391 = vmatprep.subr.mxu0 0.0
        %4392 = vmatpush1.xpose.msra.mxu0 0.0
        %4393 = vmatprep.subr.mxu0 0.0
        %4394 = vmatpush1.xpose.msra.mxu0 0.0
        %4395 = vmatprep.subr.mxu0 0.0
        %4396 = vmatpush1.xpose.msra.mxu0 0.0
        %4397 = vmatprep.subr.mxu0 0.0
        %4398 = vmatpush1.xpose.msra.mxu0 0.0
        %4399 = vmatprep.subr.mxu0 0.0
        %4400 = vmatpush1.xpose.msra.mxu0 0.0
        %4401 = vmatprep.subr.mxu0 0.0
        %4402 = vmatpush1.xpose.msra.mxu0 0.0
        %4403 = vmatprep.subr.mxu0 0.0
        %4404 = vmatpush1.xpose.msra.mxu0 0.0
        %4405 = vmatprep.subr.mxu0 0.0
        %4406 = vmatpush1.xpose.msra.mxu0 0.0
        %4407 = vmatprep.mubr.f32.mxu0 0.0
        %4408 = vmatmul.mubr.f32.gmra.mrb[0].mxu0 %v4339
        %v4409 = vpop.f32.mrb[0].mxu0
        %v4410 = vadd.f32 0.0, %v4409
        %v4411 = vpop.f32.mrb[0].mxu0
        %4412 = vdwg.mxu0
        %v4413 = vsel %vm502, %v4410, -inf
        %4414 = vmax.xlane.f32.xlu0 %v4413
        %v4415 = vpop.xlane.xlu0 %4414
        %v4416 = vsub.f32 %v4410, %v4415
        %v4417 = vmul.f32 %v4416, 1.442695
        %v4418 = vpow.pop %v4417
        %v4419 = vsel %vm502, %v4418, 0.0
        %4420 = vadd.xlane.f32.xlu0 %v4419
        %v4421 = vpop.xlane.xlu0 %4420
        %v4422 = vrcp.pop %v4421
        %v4423 = vmul.f32 %v4418, %v4422
        %4424 = vrot.lane.b32.xlu0 %v3217, 48
        %v4425 = vpop.permute.xlu0 %4424
        %v4427 = vsel %vm516, %v4423, 0
        %v4429 = vsel %vm520, %v4425, 0
        %4431 = vmatprep.subr.mxu0 0.0
        %4432 = vmatpush1.msra.mxu0 %v4429
        %4433 = vmatprep.subr.mxu0 0.0
        %4434 = vmatpush1.msra.mxu0 0.0
        %4435 = vmatprep.subr.mxu0 0.0
        %4436 = vmatpush1.msra.mxu0 0.0
        %4437 = vmatprep.subr.mxu0 0.0
        %4438 = vmatpush1.msra.mxu0 0.0
        %4439 = vmatprep.subr.mxu0 0.0
        %4440 = vmatpush1.msra.mxu0 0.0
        %4441 = vmatprep.subr.mxu0 0.0
        %4442 = vmatpush1.msra.mxu0 0.0
        %4443 = vmatprep.subr.mxu0 0.0
        %4444 = vmatpush1.msra.mxu0 0.0
        %4445 = vmatprep.subr.mxu0 0.0
        %4446 = vmatpush1.msra.mxu0 0.0
        %4447 = vmatprep.subr.mxu0 0.0
        %4448 = vmatpush1.msra.mxu0 0.0
        %4449 = vmatprep.subr.mxu0 0.0
        %4450 = vmatpush1.msra.mxu0 0.0
        %4451 = vmatprep.subr.mxu0 0.0
        %4452 = vmatpush1.msra.mxu0 0.0
        %4453 = vmatprep.subr.mxu0 0.0
        %4454 = vmatpush1.msra.mxu0 0.0
        %4455 = vmatprep.subr.mxu0 0.0
        %4456 = vmatpush1.msra.mxu0 0.0
        %4457 = vmatprep.subr.mxu0 0.0
        %4458 = vmatpush1.msra.mxu0 0.0
        %4459 = vmatprep.subr.mxu0 0.0
        %4460 = vmatpush1.msra.mxu0 0.0
        %4461 = vmatprep.subr.mxu0 0.0
        %4462 = vmatpush1.msra.mxu0 0.0
        %4463 = vmatprep.subr.mxu0 0.0
        %4464 = vmatpush1.msra.mxu0 0.0
        %4465 = vmatprep.subr.mxu0 0.0
        %4466 = vmatpush1.msra.mxu0 0.0
        %4467 = vmatprep.subr.mxu0 0.0
        %4468 = vmatpush1.msra.mxu0 0.0
        %4469 = vmatprep.subr.mxu0 0.0
        %4470 = vmatpush1.msra.mxu0 0.0
        %4471 = vmatprep.subr.mxu0 0.0
        %4472 = vmatpush1.msra.mxu0 0.0
        %4473 = vmatprep.subr.mxu0 0.0
        %4474 = vmatpush1.msra.mxu0 0.0
        %4475 = vmatprep.subr.mxu0 0.0
        %4476 = vmatpush1.msra.mxu0 0.0
        %4477 = vmatprep.subr.mxu0 0.0
        %4478 = vmatpush1.msra.mxu0 0.0
        %4479 = vmatprep.subr.mxu0 0.0
        %4480 = vmatpush1.msra.mxu0 0.0
        %4481 = vmatprep.subr.mxu0 0.0
        %4482 = vmatpush1.msra.mxu0 0.0
        %4483 = vmatprep.subr.mxu0 0.0
        %4484 = vmatpush1.msra.mxu0 0.0
        %4485 = vmatprep.subr.mxu0 0.0
        %4486 = vmatpush1.msra.mxu0 0.0
        %4487 = vmatprep.subr.mxu0 0.0
        %4488 = vmatpush1.msra.mxu0 0.0
        %4489 = vmatprep.subr.mxu0 0.0
        %4490 = vmatpush1.msra.mxu0 0.0
        %4491 = vmatprep.subr.mxu0 0.0
        %4492 = vmatpush1.msra.mxu0 0.0
        %4493 = vmatprep.subr.mxu0 0.0
        %4494 = vmatpush1.msra.mxu0 0.0
        %4495 = vmatprep.mubr.f32.mxu0 0.0
        %4496 = vmatmul.mubr.f32.gmra.mrb[0].mxu0 %v4427
        %v4497 = vpop.f32.mrb[0].mxu0
        %v4498 = vadd.f32 0.0, %v4497
        %v4499 = vpop.f32.mrb[0].mxu0
        %4500 = vdwg.mxu0
        %v4502 = vsel %vm427, %v4498, 0
        %4504 = vmatprep.subr.mxu0 0.0
        %4505 = vmatpush1.msra.mxu0 %v2735
        %4506 = vmatprep.subr.mxu0 0.0
        %4507 = vmatpush1.msra.mxu0 %v2736
        %4508 = vmatprep.subr.mxu0 0.0
        %4509 = vmatpush1.msra.mxu0 0.0
        %4510 = vmatprep.subr.mxu0 0.0
        %4511 = vmatpush1.msra.mxu0 0.0
        %4512 = vmatprep.subr.mxu0 0.0
        %4513 = vmatpush1.msra.mxu0 0.0
        %4514 = vmatprep.subr.mxu0 0.0
        %4515 = vmatpush1.msra.mxu0 0.0
        %4516 = vmatprep.subr.mxu0 0.0
        %4517 = vmatpush1.msra.mxu0 0.0
        %4518 = vmatprep.subr.mxu0 0.0
        %4519 = vmatpush1.msra.mxu0 0.0
        %4520 = vmatprep.subr.mxu0 0.0
        %4521 = vmatpush1.msra.mxu0 0.0
        %4522 = vmatprep.subr.mxu0 0.0
        %4523 = vmatpush1.msra.mxu0 0.0
        %4524 = vmatprep.subr.mxu0 0.0
        %4525 = vmatpush1.msra.mxu0 0.0
        %4526 = vmatprep.subr.mxu0 0.0
        %4527 = vmatpush1.msra.mxu0 0.0
        %4528 = vmatprep.subr.mxu0 0.0
        %4529 = vmatpush1.msra.mxu0 0.0
        %4530 = vmatprep.subr.mxu0 0.0
        %4531 = vmatpush1.msra.mxu0 0.0
        %4532 = vmatprep.subr.mxu0 0.0
        %4533 = vmatpush1.msra.mxu0 0.0
        %4534 = vmatprep.subr.mxu0 0.0
        %4535 = vmatpush1.msra.mxu0 0.0
        %4536 = vmatprep.subr.mxu0 0.0
        %4537 = vmatpush1.msra.mxu0 0.0
        %4538 = vmatprep.subr.mxu0 0.0
        %4539 = vmatpush1.msra.mxu0 0.0
        %4540 = vmatprep.subr.mxu0 0.0
        %4541 = vmatpush1.msra.mxu0 0.0
        %4542 = vmatprep.subr.mxu0 0.0
        %4543 = vmatpush1.msra.mxu0 0.0
        %4544 = vmatprep.subr.mxu0 0.0
        %4545 = vmatpush1.msra.mxu0 0.0
        %4546 = vmatprep.subr.mxu0 0.0
        %4547 = vmatpush1.msra.mxu0 0.0
        %4548 = vmatprep.subr.mxu0 0.0
        %4549 = vmatpush1.msra.mxu0 0.0
        %4550 = vmatprep.subr.mxu0 0.0
        %4551 = vmatpush1.msra.mxu0 0.0
        %4552 = vmatprep.subr.mxu0 0.0
        %4553 = vmatpush1.msra.mxu0 0.0
        %4554 = vmatprep.subr.mxu0 0.0
        %4555 = vmatpush1.msra.mxu0 0.0
        %4556 = vmatprep.subr.mxu0 0.0
        %4557 = vmatpush1.msra.mxu0 0.0
        %4558 = vmatprep.subr.mxu0 0.0
        %4559 = vmatpush1.msra.mxu0 0.0
        %4560 = vmatprep.subr.mxu0 0.0
        %4561 = vmatpush1.msra.mxu0 0.0
        %4562 = vmatprep.subr.mxu0 0.0
        %4563 = vmatpush1.msra.mxu0 0.0
        %4564 = vmatprep.subr.mxu0 0.0
        %4565 = vmatpush1.msra.mxu0 0.0
        %4566 = vmatprep.subr.mxu0 0.0
        %4567 = vmatpush1.msra.mxu0 0.0
        %4568 = vmatprep.mubr.f32.mxu0 0.0
        %4569 = vmatmul.mubr.f32.gmra.mrb[0].mxu0 %v4502
        %v4570 = vpop.f32.mrb[0].mxu0
        %v4571 = vadd.f32 0.0, %v4570
        %v4572 = vpop.f32.mrb[0].mxu0
        %4573 = vdwg.mxu0
        %v4575 = vsel %vm427, %v4332, 0
        %4577 = vmatprep.subr.mxu0 0.0
        %4578 = vmatpush1.msra.mxu0 %v2733
        %4579 = vmatprep.subr.mxu0 0.0
        %4580 = vmatpush1.msra.mxu0 %v2734
        %4581 = vmatprep.subr.mxu0 0.0
        %4582 = vmatpush1.msra.mxu0 0.0
        %4583 = vmatprep.subr.mxu0 0.0
        %4584 = vmatpush1.msra.mxu0 0.0
        %4585 = vmatprep.subr.mxu0 0.0
        %4586 = vmatpush1.msra.mxu0 0.0
        %4587 = vmatprep.subr.mxu0 0.0
        %4588 = vmatpush1.msra.mxu0 0.0
        %4589 = vmatprep.subr.mxu0 0.0
        %4590 = vmatpush1.msra.mxu0 0.0
        %4591 = vmatprep.subr.mxu0 0.0
        %4592 = vmatpush1.msra.mxu0 0.0
        %4593 = vmatprep.subr.mxu0 0.0
        %4594 = vmatpush1.msra.mxu0 0.0
        %4595 = vmatprep.subr.mxu0 0.0
        %4596 = vmatpush1.msra.mxu0 0.0
        %4597 = vmatprep.subr.mxu0 0.0
        %4598 = vmatpush1.msra.mxu0 0.0
        %4599 = vmatprep.subr.mxu0 0.0
        %4600 = vmatpush1.msra.mxu0 0.0
        %4601 = vmatprep.subr.mxu0 0.0
        %4602 = vmatpush1.msra.mxu0 0.0
        %4603 = vmatprep.subr.mxu0 0.0
        %4604 = vmatpush1.msra.mxu0 0.0
        %4605 = vmatprep.subr.mxu0 0.0
        %4606 = vmatpush1.msra.mxu0 0.0
        %4607 = vmatprep.subr.mxu0 0.0
        %4608 = vmatpush1.msra.mxu0 0.0
        %4609 = vmatprep.subr.mxu0 0.0
        %4610 = vmatpush1.msra.mxu0 0.0
        %4611 = vmatprep.subr.mxu0 0.0
        %4612 = vmatpush1.msra.mxu0 0.0
        %4613 = vmatprep.subr.mxu0 0.0
        %4614 = vmatpush1.msra.mxu0 0.0
        %4615 = vmatprep.subr.mxu0 0.0
        %4616 = vmatpush1.msra.mxu0 0.0
        %4617 = vmatprep.subr.mxu0 0.0
        %4618 = vmatpush1.msra.mxu0 0.0
        %4619 = vmatprep.subr.mxu0 0.0
        %4620 = vmatpush1.msra.mxu0 0.0
        %4621 = vmatprep.subr.mxu0 0.0
        %4622 = vmatpush1.msra.mxu0 0.0
        %4623 = vmatprep.subr.mxu0 0.0
        %4624 = vmatpush1.msra.mxu0 0.0
        %4625 = vmatprep.subr.mxu0 0.0
        %4626 = vmatpush1.msra.mxu0 0.0
        %4627 = vmatprep.subr.mxu0 0.0
        %4628 = vmatpush1.msra.mxu0 0.0
        %4629 = vmatprep.subr.mxu0 0.0
        %4630 = vmatpush1.msra.mxu0 0.0
        %4631 = vmatprep.subr.mxu0 0.0
        %4632 = vmatpush1.msra.mxu0 0.0
        %4633 = vmatprep.subr.mxu0 0.0
        %4634 = vmatpush1.msra.mxu0 0.0
        %4635 = vmatprep.subr.mxu0 0.0
        %4636 = vmatpush1.msra.mxu0 0.0
        %4637 = vmatprep.subr.mxu0 0.0
        %4638 = vmatpush1.msra.mxu0 0.0
        %4639 = vmatprep.subr.mxu0 0.0
        %4640 = vmatpush1.msra.mxu0 0.0
        %4641 = vmatprep.mubr.f32.mxu0 0.0
        %4642 = vmatmul.mubr.f32.gmra.mrb[0].mxu0 %v4575
        %v4643 = vpop.f32.mrb[0].mxu0
        %v4644 = vadd.f32 %v4571, %v4643
        %v4645 = vpop.f32.mrb[0].mxu0
        %4646 = vdwg.mxu0
        %v4648 = vrot.slane %v3690, 4
        %v4651 = vrot.slane %v4644, 4
        %v4653 = vsel %vm2347, %v3211, %v4648
        %v4654 = vsel %vm2347, %v4167, %v4651
        %v4655 = vlaneseq
        %v4656 = vshrl.u32 %v4655, 7
        %v4657 = vsub.s32 0, %v4656
        %v4658 = vrot.slane %v2637, %v4657
        %v4659 = vadd.f32 %v4653, %v4658
        %v4660 = vadd.f32 %v4654, %v4658
        %v4661 = vadd.f32 %v4659, %v2632
        %v4662 = vadd.f32 %v4660, %v2633
        %v4663 = vsel %vm338, %v4661, 0.0
        %4664 = vadd.xlane.f32.xlu0 %v4663
        %v4665 = vpop.xlane.xlu0 %4664
        %v4666 = vsel %vm338, %v4662, 0.0
        %4667 = vadd.xlane.f32.xlu0 %v4666
        %v4668 = vpop.xlane.xlu0 %4667
        %v4669 = vmul.f32 %v4665, %v2364
        %v4670 = vmul.f32 %v4668, %v2364
        %v4671 = vsub.f32 %v4661, %v4669
        %v4672 = vsub.f32 %v4662, %v4670
        %v4673 = vmul.f32 %v4671, %v4671
        %v4674 = vmul.f32 %v4672, %v4672
        %v4675 = vsel %vm338, %v4673, 0.0
        %4676 = vadd.xlane.f32.xlu0 %v4675
        %v4677 = vpop.xlane.xlu0 %4676
        %v4678 = vsel %vm338, %v4674, 0.0
        %4679 = vadd.xlane.f32.xlu0 %v4678
        %v4680 = vpop.xlane.xlu0 %4679
        %v4681 = vmul.f32 %v4677, %v2364
        %v4682 = vmul.f32 %v4680, %v2364
        %v4683 = vadd.f32 %v4681, 1e-12
        %v4684 = vadd.f32 %v4682, 1e-12
        %v4685 = vrsqrt.pop %v4683
        %v4686 = vrsqrt.pop %v4684
        %v4687 = vmul.f32 %v4671, %v4685
        %v4688 = vmul.f32 %v4672, %v4686
        %v4689 = vlaneseq
        %v4690 = vshrl.u32 %v4689, 7
        %v4691 = vsub.s32 1, %v4690
        %v4692 = vrot.slane %v2637, %v4691
        %v4693 = vmul.f32 %v4687, %v4692
        %v4694 = vmul.f32 %v4688, %v4692
        %v4695 = vlaneseq
        %v4696 = vshrl.u32 %v4695, 7
        %v4697 = vsub.s32 2, %v4696
        %v4698 = vrot.slane %v2637, %v4697
        %v4699 = vadd.f32 %v4693, %v4698
        %v4700 = vadd.f32 %v4694, %v4698
        %s4701 = scalar_lea.vmem %s4, 32
        %v4702 = vld [vmem:[%s4701] sm:$0xff]
        %v4703 = vld [vmem:[%s4701 + $0x8] sm:$0xff]
        %v4704 = vld [vmem:[%s4701 + $0x10] sm:$0xff]
        %v4705 = vld [vmem:[%s4701 + $0x18] sm:$0xff]
        %s4706 = scalar_lea.vmem %s5, 1
        %v4707 = vld [vmem:[%s4706] sm:$0x1]
        %v4709 = vlaneseq
        %v4710 = vshrl.u32 %v4709, 7
        %v4711 = vsub.s32 0, %v4710
        %v4712 = vrot.slane %v4707, %v4711
        %v4715 = vsel %vm338, %v4699, 0
        %v4718 = vsel %vm338, %v4700, 0
        %4720 = vmatprep.subr.mxu0 0.0
        %4721 = vmatpush1.msra.mxu0 %v4702
        %4722 = vmatprep.subr.mxu0 0.0
        %4723 = vmatpush1.msra.mxu0 %v4703
        %4724 = vmatprep.subr.mxu0 0.0
        %4725 = vmatpush1.msra.mxu0 %v4704
        %4726 = vmatprep.subr.mxu0 0.0
        %4727 = vmatpush1.msra.mxu0 %v4705
        %4728 = vmatprep.subr.mxu0 0.0
        %4729 = vmatpush1.msra.mxu0 0.0
        %4730 = vmatprep.subr.mxu0 0.0
        %4731 = vmatpush1.msra.mxu0 0.0
        %4732 = vmatprep.subr.mxu0 0.0
        %4733 = vmatpush1.msra.mxu0 0.0
        %4734 = vmatprep.subr.mxu0 0.0
        %4735 = vmatpush1.msra.mxu0 0.0
        %4736 = vmatprep.subr.mxu0 0.0
        %4737 = vmatpush1.msra.mxu0 0.0
        %4738 = vmatprep.subr.mxu0 0.0
        %4739 = vmatpush1.msra.mxu0 0.0
        %4740 = vmatprep.subr.mxu0 0.0
        %4741 = vmatpush1.msra.mxu0 0.0
        %4742 = vmatprep.subr.mxu0 0.0
        %4743 = vmatpush1.msra.mxu0 0.0
        %4744 = vmatprep.subr.mxu0 0.0
        %4745 = vmatpush1.msra.mxu0 0.0
        %4746 = vmatprep.subr.mxu0 0.0
        %4747 = vmatpush1.msra.mxu0 0.0
        %4748 = vmatprep.subr.mxu0 0.0
        %4749 = vmatpush1.msra.mxu0 0.0
        %4750 = vmatprep.subr.mxu0 0.0
        %4751 = vmatpush1.msra.mxu0 0.0
        %4752 = vmatprep.subr.mxu0 0.0
        %4753 = vmatpush1.msra.mxu0 0.0
        %4754 = vmatprep.subr.mxu0 0.0
        %4755 = vmatpush1.msra.mxu0 0.0
        %4756 = vmatprep.subr.mxu0 0.0
        %4757 = vmatpush1.msra.mxu0 0.0
        %4758 = vmatprep.subr.mxu0 0.0
        %4759 = vmatpush1.msra.mxu0 0.0
        %4760 = vmatprep.subr.mxu0 0.0
        %4761 = vmatpush1.msra.mxu0 0.0
        %4762 = vmatprep.subr.mxu0 0.0
        %4763 = vmatpush1.msra.mxu0 0.0
        %4764 = vmatprep.subr.mxu0 0.0
        %4765 = vmatpush1.msra.mxu0 0.0
        %4766 = vmatprep.subr.mxu0 0.0
        %4767 = vmatpush1.msra.mxu0 0.0
        %4768 = vmatprep.subr.mxu0 0.0
        %4769 = vmatpush1.msra.mxu0 0.0
        %4770 = vmatprep.subr.mxu0 0.0
        %4771 = vmatpush1.msra.mxu0 0.0
        %4772 = vmatprep.subr.mxu0 0.0
        %4773 = vmatpush1.msra.mxu0 0.0
        %4774 = vmatprep.subr.mxu0 0.0
        %4775 = vmatpush1.msra.mxu0 0.0
        %4776 = vmatprep.subr.mxu0 0.0
        %4777 = vmatpush1.msra.mxu0 0.0
        %4778 = vmatprep.subr.mxu0 0.0
        %4779 = vmatpush1.msra.mxu0 0.0
        %4780 = vmatprep.subr.mxu0 0.0
        %4781 = vmatpush1.msra.mxu0 0.0
        %4782 = vmatprep.subr.mxu0 0.0
        %4783 = vmatpush1.msra.mxu0 0.0
        %4784 = vmatprep.mubr.f32.mxu0 0.0
        %4785 = vmatmul.mubr.f32.gmra.mrb[0].mxu0 %v4715
        %v4786 = vpop.f32.mrb[0].mxu0
        %v4787 = vadd.f32 %v4712, %v4786
        %v4788 = vpop.f32.mrb[0].mxu0
        %4789 = vmatprep.mubr.f32.mxu0 0.0
        %4790 = vmatmul.mubr.f32.gmra.mrb[0].mxu0 %v4718
        %v4791 = vpop.f32.mrb[0].mxu0
        %v4792 = vadd.f32 %v4712, %v4791
        %v4793 = vpop.f32.mrb[0].mxu0
        %4794 = vdwg.mxu0
        %v4795 = vmul.f32 %v4787, 0.5
        %v4796 = vmul.f32 %v4792, 0.5
        %v4797 = vmul.f32 %v4787, %v2491
        %v4798 = vmul.f32 %v4792, %v2491
        %v4799 = verf.f32.pop %v4797
        %v4800 = verf.f32.pop %v4798
        %v4801 = vadd.f32 %v4799, 1.0
        %v4802 = vadd.f32 %v4800, 1.0
        %v4803 = vmul.f32 %v4795, %v4801
        %v4804 = vmul.f32 %v4796, %v4802
        %s4805 = scalar_lea.vmem %s6, 64
        %v4806 = vld [vmem:[%s4805] sm:$0xff]
        %v4807 = vld [vmem:[%s4805 + $0x8] sm:$0xff]
        %v4808 = vld [vmem:[%s4805 + $0x10] sm:$0xff]
        %v4809 = vld [vmem:[%s4805 + $0x18] sm:$0xff]
        %v4810 = vld [vmem:[%s4805 + $0x20] sm:$0xff]
        %v4811 = vld [vmem:[%s4805 + $0x28] sm:$0xff]
        %v4812 = vld [vmem:[%s4805 + $0x30] sm:$0xff]
        %v4813 = vld [vmem:[%s4805 + $0x38] sm:$0xff]
        %v4814 = vlaneseq
        %v4815 = vshrl.u32 %v4814, 7
        %v4816 = vsub.s32 3, %v4815
        %v4817 = vrot.slane %v2637, %v4816
        %v4819 = vsel %vm2512, %v4803, 0
        %v4822 = vsel %vm2512, %v4804, 0
        %4824 = vmatprep.subr.mxu0 0.0
        %4825 = vmatpush1.msra.mxu0 %v4806
        %4826 = vmatprep.subr.mxu0 0.0
        %4827 = vmatpush1.msra.mxu0 %v4807
        %4828 = vmatprep.subr.mxu0 0.0
        %4829 = vmatpush1.msra.mxu0 %v4808
        %4830 = vmatprep.subr.mxu0 0.0
        %4831 = vmatpush1.msra.mxu0 %v4809
        %4832 = vmatprep.subr.mxu0 0.0
        %4833 = vmatpush1.msra.mxu0 %v4810
        %4834 = vmatprep.subr.mxu0 0.0
        %4835 = vmatpush1.msra.mxu0 %v4811
        %4836 = vmatprep.subr.mxu0 0.0
        %4837 = vmatpush1.msra.mxu0 %v4812
        %4838 = vmatprep.subr.mxu0 0.0
        %4839 = vmatpush1.msra.mxu0 %v4813
        %4840 = vmatprep.subr.mxu0 0.0
        %4841 = vmatpush1.msra.mxu0 0.0
        %4842 = vmatprep.subr.mxu0 0.0
        %4843 = vmatpush1.msra.mxu0 0.0
        %4844 = vmatprep.subr.mxu0 0.0
        %4845 = vmatpush1.msra.mxu0 0.0
        %4846 = vmatprep.subr.mxu0 0.0
        %4847 = vmatpush1.msra.mxu0 0.0
        %4848 = vmatprep.subr.mxu0 0.0
        %4849 = vmatpush1.msra.mxu0 0.0
        %4850 = vmatprep.subr.mxu0 0.0
        %4851 = vmatpush1.msra.mxu0 0.0
        %4852 = vmatprep.subr.mxu0 0.0
        %4853 = vmatpush1.msra.mxu0 0.0
        %4854 = vmatprep.subr.mxu0 0.0
        %4855 = vmatpush1.msra.mxu0 0.0
        %4856 = vmatprep.subr.mxu0 0.0
        %4857 = vmatpush1.msra.mxu0 0.0
        %4858 = vmatprep.subr.mxu0 0.0
        %4859 = vmatpush1.msra.mxu0 0.0
        %4860 = vmatprep.subr.mxu0 0.0
        %4861 = vmatpush1.msra.mxu0 0.0
        %4862 = vmatprep.subr.mxu0 0.0
        %4863 = vmatpush1.msra.mxu0 0.0
        %4864 = vmatprep.subr.mxu0 0.0
        %4865 = vmatpush1.msra.mxu0 0.0
        %4866 = vmatprep.subr.mxu0 0.0
        %4867 = vmatpush1.msra.mxu0 0.0
        %4868 = vmatprep.subr.mxu0 0.0
        %4869 = vmatpush1.msra.mxu0 0.0
        %4870 = vmatprep.subr.mxu0 0.0
        %4871 = vmatpush1.msra.mxu0 0.0
        %4872 = vmatprep.subr.mxu0 0.0
        %4873 = vmatpush1.msra.mxu0 0.0
        %4874 = vmatprep.subr.mxu0 0.0
        %4875 = vmatpush1.msra.mxu0 0.0
        %4876 = vmatprep.subr.mxu0 0.0
        %4877 = vmatpush1.msra.mxu0 0.0
        %4878 = vmatprep.subr.mxu0 0.0
        %4879 = vmatpush1.msra.mxu0 0.0
        %4880 = vmatprep.subr.mxu0 0.0
        %4881 = vmatpush1.msra.mxu0 0.0
        %4882 = vmatprep.subr.mxu0 0.0
        %4883 = vmatpush1.msra.mxu0 0.0
        %4884 = vmatprep.subr.mxu0 0.0
        %4885 = vmatpush1.msra.mxu0 0.0
        %4886 = vmatprep.subr.mxu0 0.0
        %4887 = vmatpush1.msra.mxu0 0.0
        %4888 = vmatprep.mubr.f32.mxu0 0.0
        %4889 = vmatmul.mubr.f32.gmra.mrb[0].mxu0 %v4819
        %v4890 = vpop.f32.mrb[0].mxu0
        %v4891 = vadd.f32 %v4817, %v4890
        %v4892 = vpop.f32.mrb[0].mxu0
        %4893 = vmatprep.mubr.f32.mxu0 0.0
        %4894 = vmatmul.mubr.f32.gmra.mrb[0].mxu0 %v4822
        %v4895 = vpop.f32.mrb[0].mxu0
        %v4896 = vadd.f32 %v4817, %v4895
        %v4897 = vpop.f32.mrb[0].mxu0
        %4898 = vdwg.mxu0
        %v4899 = vadd.f32 %v4891, %v4699
        %v4900 = vadd.f32 %v4896, %v4700
        %v4901 = vsel %vm338, %v4899, 0.0
        %4902 = vadd.xlane.f32.xlu0 %v4901
        %v4903 = vpop.xlane.xlu0 %4902
        %v4904 = vsel %vm338, %v4900, 0.0
        %4905 = vadd.xlane.f32.xlu0 %v4904
        %v4906 = vpop.xlane.xlu0 %4905
        %v4907 = vmul.f32 %v4903, %v2364
        %v4908 = vmul.f32 %v4906, %v2364
        %v4909 = vsub.f32 %v4899, %v4907
        %v4910 = vsub.f32 %v4900, %v4908
        %v4911 = vmul.f32 %v4909, %v4909
        %v4912 = vmul.f32 %v4910, %v4910
        %v4913 = vsel %vm338, %v4911, 0.0
        %4914 = vadd.xlane.f32.xlu0 %v4913
        %v4915 = vpop.xlane.xlu0 %4914
        %v4916 = vsel %vm338, %v4912, 0.0
        %4917 = vadd.xlane.f32.xlu0 %v4916
        %v4918 = vpop.xlane.xlu0 %4917
        %v4919 = vmul.f32 %v4915, %v2364
        %v4920 = vmul.f32 %v4918, %v2364
        %v4921 = vadd.f32 %v4919, 1e-12
        %v4922 = vadd.f32 %v4920, 1e-12
        %v4923 = vrsqrt.pop %v4921
        %v4924 = vrsqrt.pop %v4922
        %v4925 = vmul.f32 %v4909, %v4923
        %v4926 = vmul.f32 %v4910, %v4924
        %v4927 = vlaneseq
        %v4928 = vshrl.u32 %v4927, 7
        %v4929 = vsub.s32 4, %v4928
        %v4930 = vrot.slane %v2637, %v4929
        %v4931 = vmul.f32 %v4925, %v4930
        %v4932 = vmul.f32 %v4926, %v4930
        %v4933 = vlaneseq
        %v4934 = vshrl.u32 %v4933, 7
        %v4935 = vsub.s32 5, %v4934
        %v4936 = vrot.slane %v2637, %v4935
        %v4937 = vadd.f32 %v4931, %v4936
        %v4938 = vadd.f32 %v4932, %v4936
        %s4939 = scalar_lea.vmem %s323, 16 [#allocation5]
        %4940 = vst.msk [vmem:[%s4939] sm:$0xff] %vm338, %v4937
        %4941 = vst.msk [vmem:[%s4939 + $0x8] sm:$0xff] %vm338, %v4938
        %s4942 = sand.u32 %s206, 1
        %s4943 = scalar_lea.sflag [#allocation4], %s4942
        %s4944 = sand.u32 %s206, 1
        %s4945 = smul.addr %s4944, 32
        %s4946 = scalar_lea.vmem [#allocation5], %s4945
        // Predicated region
        $region57: #{tpu_custom_call.1} parent=51 // pred_check
          %p4947 = pneg %p216
        $region58: #{tpu_custom_call.1} parent=51 // pred_check_branch
          %4949 = sbr.rel (%p4947) target = $region60
        $region59: #{tpu_custom_call.1} parent=51 // pred_region
          #allocation7 [shape = 'u32[6]{0}', space=smem, size = 0x18, scoped, tag = 'DMA stride descriptor']
          %s4951 = ssub.s32 512, 512
          %4952 = vsyncadd %s4943, %s4951
          %s4953 = smul.addr %s25, 2
          %s4954 = smul.addr %s4953, 128
          %s4955 = scalar_lea.hbm %s8, %s4954
          %s4957 = sshll.u32 1, 14
          %s4958 = sxor.u32 4294967295, %s4957
          %s4961 = sshll.u32 7, 18
          %s4962 = sxor.u32 4294967295, %s4961
          %s4963 = sand.u32 0, %s4962
          %s4965 = sor.u32 %s4963, 0
          %s4967 = sshll.u32 3, 24
          %s4968 = sxor.u32 4294967295, %s4967
          %s4969 = sand.u32 %s4965, %s4968
          %s4971 = sor.u32 %s4969, 0
          %s4972 = sshll.u32 %s4946, 4
          %s4973 = int_to_ptr.vmem [resolvable:$true] %s4972
          %4979 = sst [smem:[#allocation7]] 256
          %s4980 = scalar_lea.smem [#allocation7], 1
          %4981 = sst [smem:[%s4980]] 512
          %s4982 = scalar_lea.smem [#allocation7], 2
          %4983 = sst [smem:[%s4982]] 2
          %s4984 = scalar_lea.smem [#allocation7], 3
          %4985 = sst [smem:[%s4984]] 128
          %s4986 = scalar_lea.smem [#allocation7], 4
          %4987 = sst [smem:[%s4986]] 128
          %s4988 = scalar_lea.smem [#allocation7], 5
          %4989 = sst [smem:[%s4988]] 8
          %4991 = dma.general %s4973, 512, %s4955, %s4943, [#allocation6], [#allocation7], %s4971, 0
        $region60: #{tpu_custom_call.1} parent=51 // pred_fallthru
          _
      $region52: #{tpu_custom_call.1} parent=5 // pred_fallthru
        _
      %p4992 = scmp.le.s32.totalorder 2, %s20
      // Predicated region
      $region61: #{tpu_custom_call.1} parent=5 // pred_check
        %p4993 = pneg %p4992
      $region62: #{tpu_custom_call.1} parent=5 // pred_check_branch
        %4995 = sbr.rel (%p4993) target = $region64
      $region63: #{tpu_custom_call.1} parent=5 // pred_region
        %s4996 = ssub.s32 %s20, 2
        // Predicated region
        $region65: #{tpu_custom_call.1} parent=63 // pred_check
          %p4997 = pneg %p222
        $region66: #{tpu_custom_call.1} parent=63 // pred_check_branch
          %4999 = sbr.rel (%p4997) target = $region68
        $region67: #{tpu_custom_call.1} parent=63 // pred_region
          %s5000 = sand.u32 %s207, 1
          %s5001 = scalar_lea.sflag [#allocation4], %s5000
          %s5002 = sand.u32 %s207, 1
          %s5003 = smul.addr %s5002, 32
          %s5004 = scalar_lea.vmem [#allocation5], %s5003
          %5005 = dma.done %s5001, 512
        $region68: #{tpu_custom_call.1} parent=63 // pred_fallthru
          _
      $region64: #{tpu_custom_call.1} parent=5 // pred_fallthru
        _
    $region6: #{tpu_custom_call.1} parent=1 // loop_footer
      %s24 = sadd.s32 1, %s20
    $region7: #{tpu_custom_call.1} parent=1 // loop_footer_branch
      %19 = sbr.rel target = $region3
    $region8: #{tpu_custom_call.1} parent=1 // loop_exit
      _
    %5006 = vsyncpa [#allocation3], 1
    %s5007 = scalar_lea.sflag [#allocation3], 1
    %5008 = vsyncpa %s5007, 1
    %5009 = vsyncpa [#allocation4], 1
    %s5010 = scalar_lea.sflag [#allocation4], 1
    %5011 = vsyncpa %s5010, 1

</llo_original>
